<compile_context>
chip_gen: v7x
topology: tpu7x:2x2x1
jax: 0.10.0
libtpu: 0.0.40
codegen_flags: <defaults>
</compile_context>

<pallas_src>
import jax
import jax.numpy as jnp
from jax import lax
from jax.experimental import pallas as pl
from jax.experimental.pallas import tpu as pltpu

# ----------------------------- config --------------------------------------
B = 2            # batch
S = 8            # sequence length
D_IN = 16        # input_dim
D_MODEL = 64
NHEAD = 4
HEAD_DIM = D_MODEL // NHEAD
D_FF = 256
NUM_LAYERS = 2
LN_EPS = 1e-5


# ----------------------------- layernorm helpers ----------------------------
def _layernorm(z, g, b):
    # var = E[x^2] - mu^2 : the two lane-reductions are independent -> can overlap.
    mu = jnp.mean(z, axis=-1, keepdims=True)
    ms = jnp.mean(z * z, axis=-1, keepdims=True)
    var = ms - mu * mu
    return (z - mu) * lax.rsqrt(var + LN_EPS) * g + b


def _layernorm_ref(z, g, b):
    mu = jnp.mean(z, axis=-1, keepdims=True)
    var = jnp.mean((z - mu) * (z - mu), axis=-1, keepdims=True)
    return (z - mu) * lax.rsqrt(var + LN_EPS) * g + b


# ----------------------------- Pallas kernel --------------------------------
def make_kernel(n_seq):
    """Build the fused kernel for a block holding `n_seq` sequences."""
    rows = n_seq * S

    def to_heads(t):
        # (rows, D_MODEL) -> (NHEAD*n_seq, S, HEAD_DIM); batch index = h*n_seq + b
        parts = [t[:, h * HEAD_DIM:(h + 1) * HEAD_DIM].reshape(n_seq, S, HEAD_DIM)
                 for h in range(NHEAD)]
        return jnp.concatenate(parts, axis=0)

    def from_heads(t):
        # inverse: (NHEAD*n_seq, S, HEAD_DIM) -> (rows, D_MODEL) concat-of-heads
        parts = [t[h * n_seq:(h + 1) * n_seq].reshape(rows, HEAD_DIM)
                 for h in range(NHEAD)]
        return jnp.concatenate(parts, axis=-1)

    def kernel(
        x_ref,       # (rows, D_IN)
        proj_ref,    # (D_IN+3, D_MODEL)  rows [Wp(16) ; bp ; wo^T ; bo_bcast]
        wqkvo_ref,   # (L, 4, D_MODEL, D_MODEL)   [Wq, Wk, Wv, Wout] per layer
        f1_ref,      # (L, D_MODEL+1, D_FF)       rows [W1 ; b1]
        f2w_ref,     # (L, D_FF, D_MODEL)
        vecs_ref,    # (L, 9, D_MODEL)  rows [bq, bk, bv, b_attn, b_ff2, n1g, n1b, n2g, n2b]
        o_ref,       # (rows, 1)
    ):
        f32 = jnp.float32

        # input projection on the flattened (rows, D_IN) batch
        x = x_ref[...]
        wp = proj_ref[0:D_IN, :]
        bp = proj_ref[D_IN:D_IN + 1, :]
        h = jnp.dot(x, wp, preferred_element_type=f32) + bp       # (rows, 64)

        scale = 1.0 / (HEAD_DIM ** 0.5)
        sdims = (((2,), (2,)), ((0,), (0,)))   # q . k^T   (contract HEAD_DIM, batch heads*seqs)
        pdims = (((2,), (1,)), ((0,), (0,)))   # p . v     (contract S_k,      batch heads*seqs)

        for l in range(NUM_LAYERS):                                # static unroll (2 layers)
            wq, wk, wv, wo = (wqkvo_ref[l, 0], wqkvo_ref[l, 1],
                              wqkvo_ref[l, 2], wqkvo_ref[l, 3])    # (64, 64) each
            vec = vecs_ref[l]                                      # (9, 64)
            bq, bk, bv = vec[0:1, :], vec[1:2, :], vec[2:3, :]
            b_attn, b_ff2 = vec[3:4, :], vec[4:5, :]
            n1g, n1b, n2g, n2b = vec[5:6, :], vec[6:7, :], vec[7:8, :], vec[8:9, :]

            # ---- full-width q/k/v projections: (rows,64)@(64,64) ----
            q = jnp.dot(h, wq, preferred_element_type=f32) + bq
            k = jnp.dot(h, wk, preferred_element_type=f32) + bk
            v = jnp.dot(h, wv, preferred_element_type=f32) + bv

            # ---- single batched attention over (NHEAD*n_seq) blocks ----
            qh, kh, vh = to_heads(q), to_heads(k), to_heads(v)     # (NH*n_seq, S, HD)

            s = lax.dot_general(qh, kh, sdims, preferred_element_type=f32) * scale
            s = s - jnp.max(s, axis=-1, keepdims=True)
            p = jnp.exp(s)
            p = p * pl.reciprocal(jnp.sum(p, axis=-1, keepdims=True), approx=True)

            pv = lax.dot_general(p, vh, pdims, preferred_element_type=f32)  # (NH*n_seq, S, HD)

            # concat-of-heads @ Wout as ONE (rows,64)@(64,64) matmul
            attn = jnp.dot(from_heads(pv), wo, preferred_element_type=f32) + b_attn

            # residual + norm1 (post-norm, matches nn.TransformerEncoderLayer default)
            h = _layernorm(h + attn, n1g, n1b)

            # ---- feed-forward (relu) ----
            f1w = f1_ref[l, 0:D_MODEL, :]                          # (64, 256)
            f1b = f1_ref[l, D_MODEL:D_MODEL + 1, :]                # (1, 256)
            ff = jnp.maximum(jnp.dot(h, f1w, preferred_element_type=f32) + f1b, 0.0)
            ff = jnp.dot(ff, f2w_ref[l], preferred_element_type=f32) + b_ff2

            # residual + norm2
            h = _layernorm(h + ff, n2g, n2b)

        # output projection to scalar per position: VALU mul + lane reduce
        wo_row = proj_ref[D_IN + 1:D_IN + 2, :]                    # (1, 64)
        bo = proj_ref[D_IN + 2:D_IN + 3, 0:1]                      # (1, 1)
        o_ref[...] = jnp.sum(h * wo_row, axis=-1, keepdims=True) + bo

    return kernel


# ----------------------------- wrapper --------------------------------------
def _full_spec(arr):
    nd = arr.ndim
    return pl.BlockSpec(arr.shape, lambda i, _nd=nd: (0,) * _nd)


def _seqs_per_block():
    # v7x has 2 TensorCores per chip: one sequence per core via grid=(B,) parallel.
    # v5e/v6e: single TC -> keep the whole batch in one fused grid step.
    try:
        kind = jax.devices()[0].device_kind.lower()
    except Exception:
        kind = ""
    return 1 if "v7" in kind else B


def build_forward():
    n_seq = _seqs_per_block()
    grid_steps = B // n_seq
    rows = n_seq * S
    kernel = make_kernel(n_seq)
    semantics = ("parallel",) if grid_steps > 1 else ("arbitrary",)

    @jax.jit
    def fwd(x, packed):
        x_flat = x.reshape(B * S, D_IN)
        operands = [x_flat, packed["proj"], packed["wqkvo"], packed["f1"],
                    packed["f2w"], packed["vecs"]]
        in_specs = [pl.BlockSpec((rows, D_IN), lambda i: (i, 0))]
        in_specs += [_full_spec(a) for a in operands[1:]]
        out = pl.pallas_call(
            kernel,
            out_shape=jax.ShapeDtypeStruct((B * S, 1), jnp.float32),
            grid=(grid_steps,),
            in_specs=in_specs,
            out_specs=pl.BlockSpec((rows, 1), lambda i: (i, 0)),
            compiler_params=pltpu.CompilerParams(dimension_semantics=semantics),
        )(*operands)
        return out.reshape(B, S, 1)

    return fwd


# ----------------------------- param packing --------------------------------
def pack_params(p):
    """Repack the logical parameter arrays into 5 lane-dense kernel operands."""
    L = NUM_LAYERS
    proj = jnp.concatenate([
        p["wp_t"],                                    # (16, 64)
        p["bp"],                                      # (1, 64)
        p["wo_t"].T,                                  # (1, 64)
        jnp.broadcast_to(p["bo"], (1, D_MODEL)),      # (1, 64)
    ], axis=0)                                        # (19, 64)

    # in_proj weight (L, D, 3D) -> (L, 3, D, D); append Wout -> (L, 4, D, D)
    wqkv = p["inw_t"].reshape(L, D_MODEL, 3, D_MODEL).transpose(0, 2, 1, 3)
    wqkvo = jnp.concatenate([wqkv, p["outw_t"][:, None, :, :]], axis=1)   # (L, 4, D, D)

    f1 = jnp.concatenate([p["f1w_t"], p["f1b"]], axis=1)                  # (L, D+1, D_FF)

    vecs = jnp.concatenate([
        p["inb"].reshape(L, 3, D_MODEL),              # bq, bk, bv
        p["outb"], p["f2b"],
        p["n1g"], p["n1b"], p["n2g"], p["n2b"]], axis=1)                  # (L, 9, D)

    return dict(proj=proj, wqkvo=wqkvo, f1=f1, f2w=p["f2w_t"], vecs=vecs)


# ----------------------------- pure-JAX reference ----------------------------
def reference_forward(x, params):
    h = x @ params["wp_t"] + params["bp"]
    scale = 1.0 / (HEAD_DIM ** 0.5)
    for l in range(NUM_LAYERS):
        qkv = h @ params["inw_t"][l] + params["inb"][l]
        q, k, v = jnp.split(qkv, 3, axis=-1)
        heads = []
        for hd in range(NHEAD):
            lo, hi = hd * HEAD_DIM, (hd + 1) * HEAD_DIM
            qh, kh, vh = q[..., lo:hi], k[..., lo:hi], v[..., lo:hi]
            s = jnp.einsum("bqd,bkd->bqk", qh, kh) * scale
            p = jax.nn.softmax(s, axis=-1)
            heads.append(jnp.einsum("bqk,bkd->bqd", p, vh))
        attn = jnp.concatenate(heads, axis=-1) @ params["outw_t"][l] + params["outb"][l]
        h = _layernorm_ref(h + attn, params["n1g"][l], params["n1b"][l])
        ff = jnp.maximum(h @ params["f1w_t"][l] + params["f1b"][l], 0.0)
        ff = ff @ params["f2w_t"][l] + params["f2b"][l]
        h = _layernorm_ref(h + ff, params["n2g"][l], params["n2b"][l])
    return h @ params["wo_t"] + params["bo"]


# ----------------------------- param init -----------------------------------
def init_params(key):
    ks = jax.random.split(key, 16)
    std = 0.02

    def w(k, shape):
        return (std * jax.random.normal(k, shape)).astype(jnp.float32)

    L = NUM_LAYERS
    params = {
        # nn.Linear(input_dim, d_model): stored transposed (in, out)
        "wp_t": w(ks[0], (D_IN, D_MODEL)),
        "bp":   w(ks[1], (1, D_MODEL)),
        # per-layer MHA in_proj: (L, d, 3d) transposed, columns ordered [q|k|v]
        "inw_t": w(ks[2], (L, D_MODEL, 3 * D_MODEL)),
        "inb":   w(ks[3], (L, 1, 3 * D_MODEL)),
        "outw_t": w(ks[4], (L, D_MODEL, D_MODEL)),
        "outb":   w(ks[5], (L, 1, D_MODEL)),
        # layer norms
        "n1g": jnp.ones((L, 1, D_MODEL), jnp.float32),
        "n1b": jnp.zeros((L, 1, D_MODEL), jnp.float32),
        "n2g": jnp.ones((L, 1, D_MODEL), jnp.float32),
        "n2b": jnp.zeros((L, 1, D_MODEL), jnp.float32),
        # feed-forward
        "f1w_t": w(ks[6], (L, D_MODEL, D_FF)),
        "f1b":   w(ks[7], (L, 1, D_FF)),
        "f2w_t": w(ks[8], (L, D_FF, D_MODEL)),
        "f2b":   w(ks[9], (L, 1, D_MODEL)),
        # nn.Linear(d_model, 1)
        "wo_t": w(ks[10], (D_MODEL, 1)),
        "bo":   w(ks[11], (1, 1)),
    }
    return params


# ----------------------------- main ------------------------------------------
if __name__ == "__main__":
    key = jax.random.PRNGKey(0)
    kx, kp = jax.random.split(key)
    x = jax.random.normal(kx, (B, S, D_IN), dtype=jnp.float32)
    params = init_params(kp)
    packed = pack_params(params)          # pack weights once, outside the hot path

    transformer_forward = build_forward()
    out = transformer_forward(x, packed)
    out = jax.block_until_ready(out)
    assert out.shape == (B, S, 1), out.shape

    ref = reference_forward(x, params)
    max_err = float(jnp.max(jnp.abs(out - ref)))
    # tolerance covers the EUP approximate-reciprocal softmax denominator
    assert jnp.allclose(out, ref, atol=2e-3, rtol=2e-3), max_err

    print("KERNEL_OK")
</pallas_src>

<mosaic_0001>
module attributes {stable_mosaic.version = 11 : i64} {
  func.func @kernel(%arg0: i32, %arg1: memref<16x16xf32, #tpu.memory_space<vmem>>, %arg2: memref<19x64xf32, #tpu.memory_space<vmem>>, %arg3: memref<2x4x64x64xf32, #tpu.memory_space<vmem>>, %arg4: memref<2x65x256xf32, #tpu.memory_space<vmem>>, %arg5: memref<2x256x64xf32, #tpu.memory_space<vmem>>, %arg6: memref<2x9x64xf32, #tpu.memory_space<vmem>>, %arg7: memref<16x1xf32, #tpu.memory_space<vmem>>) attributes {dimension_semantics = [#tpu.dimension_semantics<arbitrary>], iteration_bounds = array<i64: 1>, scalar_prefetch = 0 : i64, scratch_operands = 0 : i64, tpu.core_type = #tpu.core_type<tc>, window_params = [{transform_indices = @transform_0, window_bounds = array<i64: 16, 16>}, {pipeline_mode = #tpu.pipeline_mode<synchronous>, transform_indices = @transform_1, window_bounds = array<i64: 19, 64>}, {pipeline_mode = #tpu.pipeline_mode<synchronous>, transform_indices = @transform_2, window_bounds = array<i64: 2, 4, 64, 64>}, {pipeline_mode = #tpu.pipeline_mode<synchronous>, transform_indices = @transform_3, window_bounds = array<i64: 2, 65, 256>}, {pipeline_mode = #tpu.pipeline_mode<synchronous>, transform_indices = @transform_4, window_bounds = array<i64: 2, 256, 64>}, {pipeline_mode = #tpu.pipeline_mode<synchronous>, transform_indices = @transform_5, window_bounds = array<i64: 2, 9, 64>}, {transform_indices = @transform_6, window_bounds = array<i64: 16, 1>}]} {
    %c0 = arith.constant 0 : index
    %c0_0 = arith.constant 0 : index
    %0 = vector.load %arg1[%c0, %c0_0] : memref<16x16xf32, #tpu.memory_space<vmem>>, vector<16x16xf32>
    %c0_1 = arith.constant 0 : index
    %c0_2 = arith.constant 0 : index
    %1 = vector.load %arg2[%c0_1, %c0_2] : memref<19x64xf32, #tpu.memory_space<vmem>>, vector<16x64xf32>
    %c16 = arith.constant 16 : index
    %c0_3 = arith.constant 0 : index
    %2 = vector.load %arg2[%c16, %c0_3] : memref<19x64xf32, #tpu.memory_space<vmem>>, vector<1x64xf32>
    %cst = arith.constant dense<0.000000e+00> : vector<16x64xf32>
    %3 = tpu.matmul %0, %1, %cst {dimension_numbers = #tpu.dot_dimension_numbers<[1], [0], [0], [1], [0, 0, 1, 1], [], []>} : vector<16x16xf32>, vector<16x64xf32>, vector<16x64xf32> -> vector<16x64xf32>
    %4 = vector.broadcast %2 : vector<1x64xf32> to vector<16x64xf32>
    %5 = arith.addf %3, %4 : vector<16x64xf32>
    %c0_4 = arith.constant 0 : index
    %c0_5 = arith.constant 0 : index
    %c0_6 = arith.constant 0 : index
    %c0_7 = arith.constant 0 : index
    %6 = vector.load %arg3[%c0_4, %c0_5, %c0_6, %c0_7] : memref<2x4x64x64xf32, #tpu.memory_space<vmem>>, vector<1x1x64x64xf32>
    %7 = vector.shape_cast %6 : vector<1x1x64x64xf32> to vector<64x64xf32>
    %c0_8 = arith.constant 0 : index
    %c1 = arith.constant 1 : index
    %c0_9 = arith.constant 0 : index
    %c0_10 = arith.constant 0 : index
    %8 = vector.load %arg3[%c0_8, %c1, %c0_9, %c0_10] : memref<2x4x64x64xf32, #tpu.memory_space<vmem>>, vector<1x1x64x64xf32>
    %9 = vector.shape_cast %8 : vector<1x1x64x64xf32> to vector<64x64xf32>
    %c0_11 = arith.constant 0 : index
    %c2 = arith.constant 2 : index
    %c0_12 = arith.constant 0 : index
    %c0_13 = arith.constant 0 : index
    %10 = vector.load %arg3[%c0_11, %c2, %c0_12, %c0_13] : memref<2x4x64x64xf32, #tpu.memory_space<vmem>>, vector<1x1x64x64xf32>
    %11 = vector.shape_cast %10 : vector<1x1x64x64xf32> to vector<64x64xf32>
    %c0_14 = arith.constant 0 : index
    %c3 = arith.constant 3 : index
    %c0_15 = arith.constant 0 : index
    %c0_16 = arith.constant 0 : index
    %12 = vector.load %arg3[%c0_14, %c3, %c0_15, %c0_16] : memref<2x4x64x64xf32, #tpu.memory_space<vmem>>, vector<1x1x64x64xf32>
    %13 = vector.shape_cast %12 : vector<1x1x64x64xf32> to vector<64x64xf32>
    %c0_17 = arith.constant 0 : index
    %c0_18 = arith.constant 0 : index
    %c0_19 = arith.constant 0 : index
    %14 = vector.load %arg6[%c0_17, %c0_18, %c0_19] : memref<2x9x64xf32, #tpu.memory_space<vmem>>, vector<1x9x64xf32>
    %15 = vector.shape_cast %14 : vector<1x9x64xf32> to vector<9x64xf32>
    %16 = vector.extract_strided_slice %15 {offsets = [0, 0], sizes = [1, 64], strides = [1, 1]} : vector<9x64xf32> to vector<1x64xf32>
    %17 = vector.extract_strided_slice %15 {offsets = [1, 0], sizes = [1, 64], strides = [1, 1]} : vector<9x64xf32> to vector<1x64xf32>
    %18 = vector.extract_strided_slice %15 {offsets = [2, 0], sizes = [1, 64], strides = [1, 1]} : vector<9x64xf32> to vector<1x64xf32>
    %19 = vector.extract_strided_slice %15 {offsets = [3, 0], sizes = [1, 64], strides = [1, 1]} : vector<9x64xf32> to vector<1x64xf32>
    %20 = vector.extract_strided_slice %15 {offsets = [4, 0], sizes = [1, 64], strides = [1, 1]} : vector<9x64xf32> to vector<1x64xf32>
    %21 = vector.extract_strided_slice %15 {offsets = [5, 0], sizes = [1, 64], strides = [1, 1]} : vector<9x64xf32> to vector<1x64xf32>
    %22 = vector.extract_strided_slice %15 {offsets = [6, 0], sizes = [1, 64], strides = [1, 1]} : vector<9x64xf32> to vector<1x64xf32>
    %23 = vector.extract_strided_slice %15 {offsets = [7, 0], sizes = [1, 64], strides = [1, 1]} : vector<9x64xf32> to vector<1x64xf32>
    %24 = vector.extract_strided_slice %15 {offsets = [8, 0], sizes = [1, 64], strides = [1, 1]} : vector<9x64xf32> to vector<1x64xf32>
    %cst_20 = arith.constant dense<0.000000e+00> : vector<16x64xf32>
    %25 = tpu.matmul %5, %7, %cst_20 {dimension_numbers = #tpu.dot_dimension_numbers<[1], [0], [0], [1], [0, 0, 1, 1], [], []>} : vector<16x64xf32>, vector<64x64xf32>, vector<16x64xf32> -> vector<16x64xf32>
    %26 = vector.broadcast %16 : vector<1x64xf32> to vector<16x64xf32>
    %27 = arith.addf %25, %26 : vector<16x64xf32>
    %cst_21 = arith.constant dense<0.000000e+00> : vector<16x64xf32>
    %28 = tpu.matmul %5, %9, %cst_21 {dimension_numbers = #tpu.dot_dimension_numbers<[1], [0], [0], [1], [0, 0, 1, 1], [], []>} : vector<16x64xf32>, vector<64x64xf32>, vector<16x64xf32> -> vector<16x64xf32>
    %29 = vector.broadcast %17 : vector<1x64xf32> to vector<16x64xf32>
    %30 = arith.addf %28, %29 : vector<16x64xf32>
    %cst_22 = arith.constant dense<0.000000e+00> : vector<16x64xf32>
    %31 = tpu.matmul %5, %11, %cst_22 {dimension_numbers = #tpu.dot_dimension_numbers<[1], [0], [0], [1], [0, 0, 1, 1], [], []>} : vector<16x64xf32>, vector<64x64xf32>, vector<16x64xf32> -> vector<16x64xf32>
    %32 = vector.broadcast %18 : vector<1x64xf32> to vector<16x64xf32>
    %33 = arith.addf %31, %32 : vector<16x64xf32>
    %34 = vector.extract_strided_slice %27 {offsets = [0, 0], sizes = [16, 16], strides = [1, 1]} : vector<16x64xf32> to vector<16x16xf32>
    %35 = vector.shape_cast %34 : vector<16x16xf32> to vector<2x8x16xf32>
    %36 = vector.extract_strided_slice %27 {offsets = [0, 16], sizes = [16, 16], strides = [1, 1]} : vector<16x64xf32> to vector<16x16xf32>
    %37 = vector.shape_cast %36 : vector<16x16xf32> to vector<2x8x16xf32>
    %38 = vector.extract_strided_slice %27 {offsets = [0, 32], sizes = [16, 16], strides = [1, 1]} : vector<16x64xf32> to vector<16x16xf32>
    %39 = vector.shape_cast %38 : vector<16x16xf32> to vector<2x8x16xf32>
    %40 = vector.extract_strided_slice %27 {offsets = [0, 48], sizes = [16, 16], strides = [1, 1]} : vector<16x64xf32> to vector<16x16xf32>
    %41 = vector.shape_cast %40 : vector<16x16xf32> to vector<2x8x16xf32>
    %42 = tpu.concatenate %35, %37, %39, %41 in 0 : vector<2x8x16xf32>, vector<2x8x16xf32>, vector<2x8x16xf32>, vector<2x8x16xf32> -> vector<8x8x16xf32>
    %43 = vector.extract_strided_slice %30 {offsets = [0, 0], sizes = [16, 16], strides = [1, 1]} : vector<16x64xf32> to vector<16x16xf32>
    %44 = vector.shape_cast %43 : vector<16x16xf32> to vector<2x8x16xf32>
    %45 = vector.extract_strided_slice %30 {offsets = [0, 16], sizes = [16, 16], strides = [1, 1]} : vector<16x64xf32> to vector<16x16xf32>
    %46 = vector.shape_cast %45 : vector<16x16xf32> to vector<2x8x16xf32>
    %47 = vector.extract_strided_slice %30 {offsets = [0, 32], sizes = [16, 16], strides = [1, 1]} : vector<16x64xf32> to vector<16x16xf32>
    %48 = vector.shape_cast %47 : vector<16x16xf32> to vector<2x8x16xf32>
    %49 = vector.extract_strided_slice %30 {offsets = [0, 48], sizes = [16, 16], strides = [1, 1]} : vector<16x64xf32> to vector<16x16xf32>
    %50 = vector.shape_cast %49 : vector<16x16xf32> to vector<2x8x16xf32>
    %51 = tpu.concatenate %44, %46, %48, %50 in 0 : vector<2x8x16xf32>, vector<2x8x16xf32>, vector<2x8x16xf32>, vector<2x8x16xf32> -> vector<8x8x16xf32>
    %52 = vector.extract_strided_slice %33 {offsets = [0, 0], sizes = [16, 16], strides = [1, 1]} : vector<16x64xf32> to vector<16x16xf32>
    %53 = vector.shape_cast %52 : vector<16x16xf32> to vector<2x8x16xf32>
    %54 = vector.extract_strided_slice %33 {offsets = [0, 16], sizes = [16, 16], strides = [1, 1]} : vector<16x64xf32> to vector<16x16xf32>
    %55 = vector.shape_cast %54 : vector<16x16xf32> to vector<2x8x16xf32>
    %56 = vector.extract_strided_slice %33 {offsets = [0, 32], sizes = [16, 16], strides = [1, 1]} : vector<16x64xf32> to vector<16x16xf32>
    %57 = vector.shape_cast %56 : vector<16x16xf32> to vector<2x8x16xf32>
    %58 = vector.extract_strided_slice %33 {offsets = [0, 48], sizes = [16, 16], strides = [1, 1]} : vector<16x64xf32> to vector<16x16xf32>
    %59 = vector.shape_cast %58 : vector<16x16xf32> to vector<2x8x16xf32>
    %60 = tpu.concatenate %53, %55, %57, %59 in 0 : vector<2x8x16xf32>, vector<2x8x16xf32>, vector<2x8x16xf32>, vector<2x8x16xf32> -> vector<8x8x16xf32>
    %cst_23 = arith.constant dense<0.000000e+00> : vector<8x8x8xf32>
    %61 = tpu.matmul %42, %51, %cst_23 {dimension_numbers = #tpu.dot_dimension_numbers<[2], [2], [1], [1], [0, 0, 0, 1, 1, 1], [0], [0]>} : vector<8x8x16xf32>, vector<8x8x16xf32>, vector<8x8x8xf32> -> vector<8x8x8xf32>
    %cst_24 = arith.constant 2.500000e-01 : f32
    %62 = vector.broadcast %cst_24 : f32 to vector<8x8x8xf32>
    %63 = arith.mulf %61, %62 : vector<8x8x8xf32>
    %cst_25 = arith.constant dense<0xFF800000> : vector<8x8xf32>
    %64 = vector.multi_reduction <maximumf>, %63, %cst_25 [2] : vector<8x8x8xf32> to vector<8x8xf32>
    %65 = vector.shape_cast %64 : vector<8x8xf32> to vector<8x8x1xf32>
    %66 = vector.broadcast %65 : vector<8x8x1xf32> to vector<8x8x8xf32>
    %67 = arith.subf %63, %66 : vector<8x8x8xf32>
    %68 = math.exp %67 : vector<8x8x8xf32>
    %cst_26 = arith.constant dense<0.000000e+00> : vector<8x8xf32>
    %69 = vector.multi_reduction <add>, %68, %cst_26 [2] : vector<8x8x8xf32> to vector<8x8xf32>
    %70 = vector.shape_cast %69 : vector<8x8xf32> to vector<8x8x1xf32>
    %71 = tpu.reciprocal %70 {approx = true} : vector<8x8x1xf32> -> vector<8x8x1xf32>
    %72 = vector.broadcast %71 : vector<8x8x1xf32> to vector<8x8x8xf32>
    %73 = arith.mulf %68, %72 : vector<8x8x8xf32>
    %cst_27 = arith.constant dense<0.000000e+00> : vector<8x8x16xf32>
    %74 = tpu.matmul %73, %60, %cst_27 {dimension_numbers = #tpu.dot_dimension_numbers<[2], [1], [1], [2], [0, 0, 0, 1, 1, 2], [0], [0]>} : vector<8x8x8xf32>, vector<8x8x16xf32>, vector<8x8x16xf32> -> vector<8x8x16xf32>
    %75 = vector.extract_strided_slice %74 {offsets = [0, 0, 0], sizes = [2, 8, 16], strides = [1, 1, 1]} : vector<8x8x16xf32> to vector<2x8x16xf32>
    %76 = vector.shape_cast %75 : vector<2x8x16xf32> to vector<16x16xf32>
    %77 = vector.extract_strided_slice %74 {offsets = [2, 0, 0], sizes = [2, 8, 16], strides = [1, 1, 1]} : vector<8x8x16xf32> to vector<2x8x16xf32>
    %78 = vector.shape_cast %77 : vector<2x8x16xf32> to vector<16x16xf32>
    %79 = vector.extract_strided_slice %74 {offsets = [4, 0, 0], sizes = [2, 8, 16], strides = [1, 1, 1]} : vector<8x8x16xf32> to vector<2x8x16xf32>
    %80 = vector.shape_cast %79 : vector<2x8x16xf32> to vector<16x16xf32>
    %81 = vector.extract_strided_slice %74 {offsets = [6, 0, 0], sizes = [2, 8, 16], strides = [1, 1, 1]} : vector<8x8x16xf32> to vector<2x8x16xf32>
    %82 = vector.shape_cast %81 : vector<2x8x16xf32> to vector<16x16xf32>
    %83 = tpu.concatenate %76, %78, %80, %82 in 1 : vector<16x16xf32>, vector<16x16xf32>, vector<16x16xf32>, vector<16x16xf32> -> vector<16x64xf32>
    %cst_28 = arith.constant dense<0.000000e+00> : vector<16x64xf32>
    %84 = tpu.matmul %83, %13, %cst_28 {dimension_numbers = #tpu.dot_dimension_numbers<[1], [0], [0], [1], [0, 0, 1, 1], [], []>} : vector<16x64xf32>, vector<64x64xf32>, vector<16x64xf32> -> vector<16x64xf32>
    %85 = vector.broadcast %19 : vector<1x64xf32> to vector<16x64xf32>
    %86 = arith.addf %84, %85 : vector<16x64xf32>
    %87 = arith.addf %5, %86 : vector<16x64xf32>
    %cst_29 = arith.constant dense<0.000000e+00> : vector<16xf32>
    %88 = vector.multi_reduction <add>, %87, %cst_29 [1] : vector<16x64xf32> to vector<16xf32>
    %89 = vector.shape_cast %88 : vector<16xf32> to vector<16x1xf32>
    %cst_30 = arith.constant 6.400000e+01 : f32
    %90 = vector.broadcast %cst_30 : f32 to vector<16x1xf32>
    %91 = arith.divf %89, %90 : vector<16x1xf32>
    %92 = arith.mulf %87, %87 : vector<16x64xf32>
    %cst_31 = arith.constant dense<0.000000e+00> : vector<16xf32>
    %93 = vector.multi_reduction <add>, %92, %cst_31 [1] : vector<16x64xf32> to vector<16xf32>
    %94 = vector.shape_cast %93 : vector<16xf32> to vector<16x1xf32>
    %cst_32 = arith.constant 6.400000e+01 : f32
    %95 = vector.broadcast %cst_32 : f32 to vector<16x1xf32>
    %96 = arith.divf %94, %95 : vector<16x1xf32>
    %97 = arith.mulf %91, %91 : vector<16x1xf32>
    %98 = arith.subf %96, %97 : vector<16x1xf32>
    %99 = vector.broadcast %91 : vector<16x1xf32> to vector<16x64xf32>
    %100 = arith.subf %87, %99 : vector<16x64xf32>
    %cst_33 = arith.constant 9.99999974E-6 : f32
    %101 = vector.broadcast %cst_33 : f32 to vector<16x1xf32>
    %102 = arith.addf %98, %101 : vector<16x1xf32>
    %103 = math.rsqrt %102 : vector<16x1xf32>
    %104 = vector.broadcast %103 : vector<16x1xf32> to vector<16x64xf32>
    %105 = arith.mulf %100, %104 : vector<16x64xf32>
    %106 = vector.broadcast %21 : vector<1x64xf32> to vector<16x64xf32>
    %107 = arith.mulf %105, %106 : vector<16x64xf32>
    %108 = vector.broadcast %22 : vector<1x64xf32> to vector<16x64xf32>
    %109 = arith.addf %107, %108 : vector<16x64xf32>
    %c0_34 = arith.constant 0 : index
    %c0_35 = arith.constant 0 : index
    %c0_36 = arith.constant 0 : index
    %110 = vector.load %arg4[%c0_34, %c0_35, %c0_36] : memref<2x65x256xf32, #tpu.memory_space<vmem>>, vector<1x64x256xf32>
    %111 = vector.shape_cast %110 : vector<1x64x256xf32> to vector<64x256xf32>
    %c0_37 = arith.constant 0 : index
    %c64 = arith.constant 64 : index
    %c0_38 = arith.constant 0 : index
    %112 = vector.load %arg4[%c0_37, %c64, %c0_38] : memref<2x65x256xf32, #tpu.memory_space<vmem>>, vector<1x1x256xf32>
    %113 = vector.shape_cast %112 : vector<1x1x256xf32> to vector<1x256xf32>
    %cst_39 = arith.constant dense<0.000000e+00> : vector<16x256xf32>
    %114 = tpu.matmul %109, %111, %cst_39 {dimension_numbers = #tpu.dot_dimension_numbers<[1], [0], [0], [1], [0, 0, 1, 1], [], []>} : vector<16x64xf32>, vector<64x256xf32>, vector<16x256xf32> -> vector<16x256xf32>
    %115 = vector.broadcast %113 : vector<1x256xf32> to vector<16x256xf32>
    %116 = arith.addf %114, %115 : vector<16x256xf32>
    %cst_40 = arith.constant 0.000000e+00 : f32
    %117 = vector.broadcast %cst_40 : f32 to vector<16x256xf32>
    %118 = arith.maximumf %116, %117 : vector<16x256xf32>
    %c0_41 = arith.constant 0 : index
    %c0_42 = arith.constant 0 : index
    %c0_43 = arith.constant 0 : index
    %119 = vector.load %arg5[%c0_41, %c0_42, %c0_43] : memref<2x256x64xf32, #tpu.memory_space<vmem>>, vector<1x256x64xf32>
    %120 = vector.shape_cast %119 : vector<1x256x64xf32> to vector<256x64xf32>
    %cst_44 = arith.constant dense<0.000000e+00> : vector<16x64xf32>
    %121 = tpu.matmul %118, %120, %cst_44 {dimension_numbers = #tpu.dot_dimension_numbers<[1], [0], [0], [1], [0, 0, 1, 1], [], []>} : vector<16x256xf32>, vector<256x64xf32>, vector<16x64xf32> -> vector<16x64xf32>
    %122 = vector.broadcast %20 : vector<1x64xf32> to vector<16x64xf32>
    %123 = arith.addf %121, %122 : vector<16x64xf32>
    %124 = arith.addf %109, %123 : vector<16x64xf32>
    %cst_45 = arith.constant dense<0.000000e+00> : vector<16xf32>
    %125 = vector.multi_reduction <add>, %124, %cst_45 [1] : vector<16x64xf32> to vector<16xf32>
    %126 = vector.shape_cast %125 : vector<16xf32> to vector<16x1xf32>
    %cst_46 = arith.constant 6.400000e+01 : f32
    %127 = vector.broadcast %cst_46 : f32 to vector<16x1xf32>
    %128 = arith.divf %126, %127 : vector<16x1xf32>
    %129 = arith.mulf %124, %124 : vector<16x64xf32>
    %cst_47 = arith.constant dense<0.000000e+00> : vector<16xf32>
    %130 = vector.multi_reduction <add>, %129, %cst_47 [1] : vector<16x64xf32> to vector<16xf32>
    %131 = vector.shape_cast %130 : vector<16xf32> to vector<16x1xf32>
    %cst_48 = arith.constant 6.400000e+01 : f32
    %132 = vector.broadcast %cst_48 : f32 to vector<16x1xf32>
    %133 = arith.divf %131, %132 : vector<16x1xf32>
    %134 = arith.mulf %128, %128 : vector<16x1xf32>
    %135 = arith.subf %133, %134 : vector<16x1xf32>
    %136 = vector.broadcast %128 : vector<16x1xf32> to vector<16x64xf32>
    %137 = arith.subf %124, %136 : vector<16x64xf32>
    %cst_49 = arith.constant 9.99999974E-6 : f32
    %138 = vector.broadcast %cst_49 : f32 to vector<16x1xf32>
    %139 = arith.addf %135, %138 : vector<16x1xf32>
    %140 = math.rsqrt %139 : vector<16x1xf32>
    %141 = vector.broadcast %140 : vector<16x1xf32> to vector<16x64xf32>
    %142 = arith.mulf %137, %141 : vector<16x64xf32>
    %143 = vector.broadcast %23 : vector<1x64xf32> to vector<16x64xf32>
    %144 = arith.mulf %142, %143 : vector<16x64xf32>
    %145 = vector.broadcast %24 : vector<1x64xf32> to vector<16x64xf32>
    %146 = arith.addf %144, %145 : vector<16x64xf32>
    %c1_50 = arith.constant 1 : index
    %c0_51 = arith.constant 0 : index
    %c0_52 = arith.constant 0 : index
    %c0_53 = arith.constant 0 : index
    %147 = vector.load %arg3[%c1_50, %c0_51, %c0_52, %c0_53] : memref<2x4x64x64xf32, #tpu.memory_space<vmem>>, vector<1x1x64x64xf32>
    %148 = vector.shape_cast %147 : vector<1x1x64x64xf32> to vector<64x64xf32>
    %c1_54 = arith.constant 1 : index
    %c1_55 = arith.constant 1 : index
    %c0_56 = arith.constant 0 : index
    %c0_57 = arith.constant 0 : index
    %149 = vector.load %arg3[%c1_54, %c1_55, %c0_56, %c0_57] : memref<2x4x64x64xf32, #tpu.memory_space<vmem>>, vector<1x1x64x64xf32>
    %150 = vector.shape_cast %149 : vector<1x1x64x64xf32> to vector<64x64xf32>
    %c1_58 = arith.constant 1 : index
    %c2_59 = arith.constant 2 : index
    %c0_60 = arith.constant 0 : index
    %c0_61 = arith.constant 0 : index
    %151 = vector.load %arg3[%c1_58, %c2_59, %c0_60, %c0_61] : memref<2x4x64x64xf32, #tpu.memory_space<vmem>>, vector<1x1x64x64xf32>
    %152 = vector.shape_cast %151 : vector<1x1x64x64xf32> to vector<64x64xf32>
    %c1_62 = arith.constant 1 : index
    %c3_63 = arith.constant 3 : index
    %c0_64 = arith.constant 0 : index
    %c0_65 = arith.constant 0 : index
    %153 = vector.load %arg3[%c1_62, %c3_63, %c0_64, %c0_65] : memref<2x4x64x64xf32, #tpu.memory_space<vmem>>, vector<1x1x64x64xf32>
    %154 = vector.shape_cast %153 : vector<1x1x64x64xf32> to vector<64x64xf32>
    %c1_66 = arith.constant 1 : index
    %c0_67 = arith.constant 0 : index
    %c0_68 = arith.constant 0 : index
    %155 = vector.load %arg6[%c1_66, %c0_67, %c0_68] : memref<2x9x64xf32, #tpu.memory_space<vmem>>, vector<1x9x64xf32>
    %156 = vector.shape_cast %155 : vector<1x9x64xf32> to vector<9x64xf32>
    %157 = vector.extract_strided_slice %156 {offsets = [0, 0], sizes = [1, 64], strides = [1, 1]} : vector<9x64xf32> to vector<1x64xf32>
    %158 = vector.extract_strided_slice %156 {offsets = [1, 0], sizes = [1, 64], strides = [1, 1]} : vector<9x64xf32> to vector<1x64xf32>
    %159 = vector.extract_strided_slice %156 {offsets = [2, 0], sizes = [1, 64], strides = [1, 1]} : vector<9x64xf32> to vector<1x64xf32>
    %160 = vector.extract_strided_slice %156 {offsets = [3, 0], sizes = [1, 64], strides = [1, 1]} : vector<9x64xf32> to vector<1x64xf32>
    %161 = vector.extract_strided_slice %156 {offsets = [4, 0], sizes = [1, 64], strides = [1, 1]} : vector<9x64xf32> to vector<1x64xf32>
    %162 = vector.extract_strided_slice %156 {offsets = [5, 0], sizes = [1, 64], strides = [1, 1]} : vector<9x64xf32> to vector<1x64xf32>
    %163 = vector.extract_strided_slice %156 {offsets = [6, 0], sizes = [1, 64], strides = [1, 1]} : vector<9x64xf32> to vector<1x64xf32>
    %164 = vector.extract_strided_slice %156 {offsets = [7, 0], sizes = [1, 64], strides = [1, 1]} : vector<9x64xf32> to vector<1x64xf32>
    %165 = vector.extract_strided_slice %156 {offsets = [8, 0], sizes = [1, 64], strides = [1, 1]} : vector<9x64xf32> to vector<1x64xf32>
    %cst_69 = arith.constant dense<0.000000e+00> : vector<16x64xf32>
    %166 = tpu.matmul %146, %148, %cst_69 {dimension_numbers = #tpu.dot_dimension_numbers<[1], [0], [0], [1], [0, 0, 1, 1], [], []>} : vector<16x64xf32>, vector<64x64xf32>, vector<16x64xf32> -> vector<16x64xf32>
    %167 = vector.broadcast %157 : vector<1x64xf32> to vector<16x64xf32>
    %168 = arith.addf %166, %167 : vector<16x64xf32>
    %cst_70 = arith.constant dense<0.000000e+00> : vector<16x64xf32>
    %169 = tpu.matmul %146, %150, %cst_70 {dimension_numbers = #tpu.dot_dimension_numbers<[1], [0], [0], [1], [0, 0, 1, 1], [], []>} : vector<16x64xf32>, vector<64x64xf32>, vector<16x64xf32> -> vector<16x64xf32>
    %170 = vector.broadcast %158 : vector<1x64xf32> to vector<16x64xf32>
    %171 = arith.addf %169, %170 : vector<16x64xf32>
    %cst_71 = arith.constant dense<0.000000e+00> : vector<16x64xf32>
    %172 = tpu.matmul %146, %152, %cst_71 {dimension_numbers = #tpu.dot_dimension_numbers<[1], [0], [0], [1], [0, 0, 1, 1], [], []>} : vector<16x64xf32>, vector<64x64xf32>, vector<16x64xf32> -> vector<16x64xf32>
    %173 = vector.broadcast %159 : vector<1x64xf32> to vector<16x64xf32>
    %174 = arith.addf %172, %173 : vector<16x64xf32>
    %175 = vector.extract_strided_slice %168 {offsets = [0, 0], sizes = [16, 16], strides = [1, 1]} : vector<16x64xf32> to vector<16x16xf32>
    %176 = vector.shape_cast %175 : vector<16x16xf32> to vector<2x8x16xf32>
    %177 = vector.extract_strided_slice %168 {offsets = [0, 16], sizes = [16, 16], strides = [1, 1]} : vector<16x64xf32> to vector<16x16xf32>
    %178 = vector.shape_cast %177 : vector<16x16xf32> to vector<2x8x16xf32>
    %179 = vector.extract_strided_slice %168 {offsets = [0, 32], sizes = [16, 16], strides = [1, 1]} : vector<16x64xf32> to vector<16x16xf32>
    %180 = vector.shape_cast %179 : vector<16x16xf32> to vector<2x8x16xf32>
    %181 = vector.extract_strided_slice %168 {offsets = [0, 48], sizes = [16, 16], strides = [1, 1]} : vector<16x64xf32> to vector<16x16xf32>
    %182 = vector.shape_cast %181 : vector<16x16xf32> to vector<2x8x16xf32>
    %183 = tpu.concatenate %176, %178, %180, %182 in 0 : vector<2x8x16xf32>, vector<2x8x16xf32>, vector<2x8x16xf32>, vector<2x8x16xf32> -> vector<8x8x16xf32>
    %184 = vector.extract_strided_slice %171 {offsets = [0, 0], sizes = [16, 16], strides = [1, 1]} : vector<16x64xf32> to vector<16x16xf32>
    %185 = vector.shape_cast %184 : vector<16x16xf32> to vector<2x8x16xf32>
    %186 = vector.extract_strided_slice %171 {offsets = [0, 16], sizes = [16, 16], strides = [1, 1]} : vector<16x64xf32> to vector<16x16xf32>
    %187 = vector.shape_cast %186 : vector<16x16xf32> to vector<2x8x16xf32>
    %188 = vector.extract_strided_slice %171 {offsets = [0, 32], sizes = [16, 16], strides = [1, 1]} : vector<16x64xf32> to vector<16x16xf32>
    %189 = vector.shape_cast %188 : vector<16x16xf32> to vector<2x8x16xf32>
    %190 = vector.extract_strided_slice %171 {offsets = [0, 48], sizes = [16, 16], strides = [1, 1]} : vector<16x64xf32> to vector<16x16xf32>
    %191 = vector.shape_cast %190 : vector<16x16xf32> to vector<2x8x16xf32>
    %192 = tpu.concatenate %185, %187, %189, %191 in 0 : vector<2x8x16xf32>, vector<2x8x16xf32>, vector<2x8x16xf32>, vector<2x8x16xf32> -> vector<8x8x16xf32>
    %193 = vector.extract_strided_slice %174 {offsets = [0, 0], sizes = [16, 16], strides = [1, 1]} : vector<16x64xf32> to vector<16x16xf32>
    %194 = vector.shape_cast %193 : vector<16x16xf32> to vector<2x8x16xf32>
    %195 = vector.extract_strided_slice %174 {offsets = [0, 16], sizes = [16, 16], strides = [1, 1]} : vector<16x64xf32> to vector<16x16xf32>
    %196 = vector.shape_cast %195 : vector<16x16xf32> to vector<2x8x16xf32>
    %197 = vector.extract_strided_slice %174 {offsets = [0, 32], sizes = [16, 16], strides = [1, 1]} : vector<16x64xf32> to vector<16x16xf32>
    %198 = vector.shape_cast %197 : vector<16x16xf32> to vector<2x8x16xf32>
    %199 = vector.extract_strided_slice %174 {offsets = [0, 48], sizes = [16, 16], strides = [1, 1]} : vector<16x64xf32> to vector<16x16xf32>
    %200 = vector.shape_cast %199 : vector<16x16xf32> to vector<2x8x16xf32>
    %201 = tpu.concatenate %194, %196, %198, %200 in 0 : vector<2x8x16xf32>, vector<2x8x16xf32>, vector<2x8x16xf32>, vector<2x8x16xf32> -> vector<8x8x16xf32>
    %cst_72 = arith.constant dense<0.000000e+00> : vector<8x8x8xf32>
    %202 = tpu.matmul %183, %192, %cst_72 {dimension_numbers = #tpu.dot_dimension_numbers<[2], [2], [1], [1], [0, 0, 0, 1, 1, 1], [0], [0]>} : vector<8x8x16xf32>, vector<8x8x16xf32>, vector<8x8x8xf32> -> vector<8x8x8xf32>
    %cst_73 = arith.constant 2.500000e-01 : f32
    %203 = vector.broadcast %cst_73 : f32 to vector<8x8x8xf32>
    %204 = arith.mulf %202, %203 : vector<8x8x8xf32>
    %cst_74 = arith.constant dense<0xFF800000> : vector<8x8xf32>
    %205 = vector.multi_reduction <maximumf>, %204, %cst_74 [2] : vector<8x8x8xf32> to vector<8x8xf32>
    %206 = vector.shape_cast %205 : vector<8x8xf32> to vector<8x8x1xf32>
    %207 = vector.broadcast %206 : vector<8x8x1xf32> to vector<8x8x8xf32>
    %208 = arith.subf %204, %207 : vector<8x8x8xf32>
    %209 = math.exp %208 : vector<8x8x8xf32>
    %cst_75 = arith.constant dense<0.000000e+00> : vector<8x8xf32>
    %210 = vector.multi_reduction <add>, %209, %cst_75 [2] : vector<8x8x8xf32> to vector<8x8xf32>
    %211 = vector.shape_cast %210 : vector<8x8xf32> to vector<8x8x1xf32>
    %212 = tpu.reciprocal %211 {approx = true} : vector<8x8x1xf32> -> vector<8x8x1xf32>
    %213 = vector.broadcast %212 : vector<8x8x1xf32> to vector<8x8x8xf32>
    %214 = arith.mulf %209, %213 : vector<8x8x8xf32>
    %cst_76 = arith.constant dense<0.000000e+00> : vector<8x8x16xf32>
    %215 = tpu.matmul %214, %201, %cst_76 {dimension_numbers = #tpu.dot_dimension_numbers<[2], [1], [1], [2], [0, 0, 0, 1, 1, 2], [0], [0]>} : vector<8x8x8xf32>, vector<8x8x16xf32>, vector<8x8x16xf32> -> vector<8x8x16xf32>
    %216 = vector.extract_strided_slice %215 {offsets = [0, 0, 0], sizes = [2, 8, 16], strides = [1, 1, 1]} : vector<8x8x16xf32> to vector<2x8x16xf32>
    %217 = vector.shape_cast %216 : vector<2x8x16xf32> to vector<16x16xf32>
    %218 = vector.extract_strided_slice %215 {offsets = [2, 0, 0], sizes = [2, 8, 16], strides = [1, 1, 1]} : vector<8x8x16xf32> to vector<2x8x16xf32>
    %219 = vector.shape_cast %218 : vector<2x8x16xf32> to vector<16x16xf32>
    %220 = vector.extract_strided_slice %215 {offsets = [4, 0, 0], sizes = [2, 8, 16], strides = [1, 1, 1]} : vector<8x8x16xf32> to vector<2x8x16xf32>
    %221 = vector.shape_cast %220 : vector<2x8x16xf32> to vector<16x16xf32>
    %222 = vector.extract_strided_slice %215 {offsets = [6, 0, 0], sizes = [2, 8, 16], strides = [1, 1, 1]} : vector<8x8x16xf32> to vector<2x8x16xf32>
    %223 = vector.shape_cast %222 : vector<2x8x16xf32> to vector<16x16xf32>
    %224 = tpu.concatenate %217, %219, %221, %223 in 1 : vector<16x16xf32>, vector<16x16xf32>, vector<16x16xf32>, vector<16x16xf32> -> vector<16x64xf32>
    %cst_77 = arith.constant dense<0.000000e+00> : vector<16x64xf32>
    %225 = tpu.matmul %224, %154, %cst_77 {dimension_numbers = #tpu.dot_dimension_numbers<[1], [0], [0], [1], [0, 0, 1, 1], [], []>} : vector<16x64xf32>, vector<64x64xf32>, vector<16x64xf32> -> vector<16x64xf32>
    %226 = vector.broadcast %160 : vector<1x64xf32> to vector<16x64xf32>
    %227 = arith.addf %225, %226 : vector<16x64xf32>
    %228 = arith.addf %146, %227 : vector<16x64xf32>
    %cst_78 = arith.constant dense<0.000000e+00> : vector<16xf32>
    %229 = vector.multi_reduction <add>, %228, %cst_78 [1] : vector<16x64xf32> to vector<16xf32>
    %230 = vector.shape_cast %229 : vector<16xf32> to vector<16x1xf32>
    %cst_79 = arith.constant 6.400000e+01 : f32
    %231 = vector.broadcast %cst_79 : f32 to vector<16x1xf32>
    %232 = arith.divf %230, %231 : vector<16x1xf32>
    %233 = arith.mulf %228, %228 : vector<16x64xf32>
    %cst_80 = arith.constant dense<0.000000e+00> : vector<16xf32>
    %234 = vector.multi_reduction <add>, %233, %cst_80 [1] : vector<16x64xf32> to vector<16xf32>
    %235 = vector.shape_cast %234 : vector<16xf32> to vector<16x1xf32>
    %cst_81 = arith.constant 6.400000e+01 : f32
    %236 = vector.broadcast %cst_81 : f32 to vector<16x1xf32>
    %237 = arith.divf %235, %236 : vector<16x1xf32>
    %238 = arith.mulf %232, %232 : vector<16x1xf32>
    %239 = arith.subf %237, %238 : vector<16x1xf32>
    %240 = vector.broadcast %232 : vector<16x1xf32> to vector<16x64xf32>
    %241 = arith.subf %228, %240 : vector<16x64xf32>
    %cst_82 = arith.constant 9.99999974E-6 : f32
    %242 = vector.broadcast %cst_82 : f32 to vector<16x1xf32>
    %243 = arith.addf %239, %242 : vector<16x1xf32>
    %244 = math.rsqrt %243 : vector<16x1xf32>
    %245 = vector.broadcast %244 : vector<16x1xf32> to vector<16x64xf32>
    %246 = arith.mulf %241, %245 : vector<16x64xf32>
    %247 = vector.broadcast %162 : vector<1x64xf32> to vector<16x64xf32>
    %248 = arith.mulf %246, %247 : vector<16x64xf32>
    %249 = vector.broadcast %163 : vector<1x64xf32> to vector<16x64xf32>
    %250 = arith.addf %248, %249 : vector<16x64xf32>
    %c1_83 = arith.constant 1 : index
    %c0_84 = arith.constant 0 : index
    %c0_85 = arith.constant 0 : index
    %251 = vector.load %arg4[%c1_83, %c0_84, %c0_85] : memref<2x65x256xf32, #tpu.memory_space<vmem>>, vector<1x64x256xf32>
    %252 = vector.shape_cast %251 : vector<1x64x256xf32> to vector<64x256xf32>
    %c1_86 = arith.constant 1 : index
    %c64_87 = arith.constant 64 : index
    %c0_88 = arith.constant 0 : index
    %253 = vector.load %arg4[%c1_86, %c64_87, %c0_88] : memref<2x65x256xf32, #tpu.memory_space<vmem>>, vector<1x1x256xf32>
    %254 = vector.shape_cast %253 : vector<1x1x256xf32> to vector<1x256xf32>
    %cst_89 = arith.constant dense<0.000000e+00> : vector<16x256xf32>
    %255 = tpu.matmul %250, %252, %cst_89 {dimension_numbers = #tpu.dot_dimension_numbers<[1], [0], [0], [1], [0, 0, 1, 1], [], []>} : vector<16x64xf32>, vector<64x256xf32>, vector<16x256xf32> -> vector<16x256xf32>
    %256 = vector.broadcast %254 : vector<1x256xf32> to vector<16x256xf32>
    %257 = arith.addf %255, %256 : vector<16x256xf32>
    %cst_90 = arith.constant 0.000000e+00 : f32
    %258 = vector.broadcast %cst_90 : f32 to vector<16x256xf32>
    %259 = arith.maximumf %257, %258 : vector<16x256xf32>
    %c1_91 = arith.constant 1 : index
    %c0_92 = arith.constant 0 : index
    %c0_93 = arith.constant 0 : index
    %260 = vector.load %arg5[%c1_91, %c0_92, %c0_93] : memref<2x256x64xf32, #tpu.memory_space<vmem>>, vector<1x256x64xf32>
    %261 = vector.shape_cast %260 : vector<1x256x64xf32> to vector<256x64xf32>
    %cst_94 = arith.constant dense<0.000000e+00> : vector<16x64xf32>
    %262 = tpu.matmul %259, %261, %cst_94 {dimension_numbers = #tpu.dot_dimension_numbers<[1], [0], [0], [1], [0, 0, 1, 1], [], []>} : vector<16x256xf32>, vector<256x64xf32>, vector<16x64xf32> -> vector<16x64xf32>
    %263 = vector.broadcast %161 : vector<1x64xf32> to vector<16x64xf32>
    %264 = arith.addf %262, %263 : vector<16x64xf32>
    %265 = arith.addf %250, %264 : vector<16x64xf32>
    %cst_95 = arith.constant dense<0.000000e+00> : vector<16xf32>
    %266 = vector.multi_reduction <add>, %265, %cst_95 [1] : vector<16x64xf32> to vector<16xf32>
    %267 = vector.shape_cast %266 : vector<16xf32> to vector<16x1xf32>
    %cst_96 = arith.constant 6.400000e+01 : f32
    %268 = vector.broadcast %cst_96 : f32 to vector<16x1xf32>
    %269 = arith.divf %267, %268 : vector<16x1xf32>
    %270 = arith.mulf %265, %265 : vector<16x64xf32>
    %cst_97 = arith.constant dense<0.000000e+00> : vector<16xf32>
    %271 = vector.multi_reduction <add>, %270, %cst_97 [1] : vector<16x64xf32> to vector<16xf32>
    %272 = vector.shape_cast %271 : vector<16xf32> to vector<16x1xf32>
    %cst_98 = arith.constant 6.400000e+01 : f32
    %273 = vector.broadcast %cst_98 : f32 to vector<16x1xf32>
    %274 = arith.divf %272, %273 : vector<16x1xf32>
    %275 = arith.mulf %269, %269 : vector<16x1xf32>
    %276 = arith.subf %274, %275 : vector<16x1xf32>
    %277 = vector.broadcast %269 : vector<16x1xf32> to vector<16x64xf32>
    %278 = arith.subf %265, %277 : vector<16x64xf32>
    %cst_99 = arith.constant 9.99999974E-6 : f32
    %279 = vector.broadcast %cst_99 : f32 to vector<16x1xf32>
    %280 = arith.addf %276, %279 : vector<16x1xf32>
    %281 = math.rsqrt %280 : vector<16x1xf32>
    %282 = vector.broadcast %281 : vector<16x1xf32> to vector<16x64xf32>
    %283 = arith.mulf %278, %282 : vector<16x64xf32>
    %284 = vector.broadcast %164 : vector<1x64xf32> to vector<16x64xf32>
    %285 = arith.mulf %283, %284 : vector<16x64xf32>
    %286 = vector.broadcast %165 : vector<1x64xf32> to vector<16x64xf32>
    %287 = arith.addf %285, %286 : vector<16x64xf32>
    %c17 = arith.constant 17 : index
    %c0_100 = arith.constant 0 : index
    %288 = vector.load %arg2[%c17, %c0_100] : memref<19x64xf32, #tpu.memory_space<vmem>>, vector<1x64xf32>
    %c18 = arith.constant 18 : index
    %c0_101 = arith.constant 0 : index
    %289 = vector.load %arg2[%c18, %c0_101] : memref<19x64xf32, #tpu.memory_space<vmem>>, vector<1x1xf32>
    %290 = vector.broadcast %288 : vector<1x64xf32> to vector<16x64xf32>
    %291 = arith.mulf %287, %290 : vector<16x64xf32>
    %cst_102 = arith.constant dense<0.000000e+00> : vector<16xf32>
    %292 = vector.multi_reduction <add>, %291, %cst_102 [1] : vector<16x64xf32> to vector<16xf32>
    %293 = vector.shape_cast %292 : vector<16xf32> to vector<16x1xf32>
    %294 = vector.broadcast %289 : vector<1x1xf32> to vector<16x1xf32>
    %295 = arith.addf %293, %294 : vector<16x1xf32>
    %c0_103 = arith.constant 0 : index
    %c0_104 = arith.constant 0 : index
    %296 = vector.load %arg7[%c0_103, %c0_104] : memref<16x1xf32, #tpu.memory_space<vmem>>, vector<16x1xf32>
    tpu.vector_store %arg7[%c0_103, %c0_104], %295 {strides = array<i32>} : memref<16x1xf32, #tpu.memory_space<vmem>>, vector<16x1xf32>,
    return
  }
  func.func @transform_0(%arg0: i32) -> (i32, i32) {
    %c0_i32 = arith.constant 0 : i32
    %c0_i32_0 = arith.constant 0 : i32
    return %arg0, %c0_i32 : i32, i32
  }
  func.func @transform_1(%arg0: i32) -> (i32, i32) {
    %c0_i32 = arith.constant 0 : i32
    %c0_i32_0 = arith.constant 0 : i32
    %c0_i32_1 = arith.constant 0 : i32
    return %c0_i32, %c0_i32_0 : i32, i32
  }
  func.func @transform_2(%arg0: i32) -> (i32, i32, i32, i32) {
    %c0_i32 = arith.constant 0 : i32
    %c0_i32_0 = arith.constant 0 : i32
    %c0_i32_1 = arith.constant 0 : i32
    %c0_i32_2 = arith.constant 0 : i32
    %c0_i32_3 = arith.constant 0 : i32
    return %c0_i32, %c0_i32_0, %c0_i32_1, %c0_i32_2 : i32, i32, i32, i32
  }
  func.func @transform_3(%arg0: i32) -> (i32, i32, i32) {
    %c0_i32 = arith.constant 0 : i32
    %c0_i32_0 = arith.constant 0 : i32
    %c0_i32_1 = arith.constant 0 : i32
    %c0_i32_2 = arith.constant 0 : i32
    return %c0_i32, %c0_i32_0, %c0_i32_1 : i32, i32, i32
  }
  func.func @transform_4(%arg0: i32) -> (i32, i32, i32) {
    %c0_i32 = arith.constant 0 : i32
    %c0_i32_0 = arith.constant 0 : i32
    %c0_i32_1 = arith.constant 0 : i32
    %c0_i32_2 = arith.constant 0 : i32
    return %c0_i32, %c0_i32_0, %c0_i32_1 : i32, i32, i32
  }
  func.func @transform_5(%arg0: i32) -> (i32, i32, i32) {
    %c0_i32 = arith.constant 0 : i32
    %c0_i32_0 = arith.constant 0 : i32
    %c0_i32_1 = arith.constant 0 : i32
    %c0_i32_2 = arith.constant 0 : i32
    return %c0_i32, %c0_i32_0, %c0_i32_1 : i32, i32, i32
  }
  func.func @transform_6(%arg0: i32) -> (i32, i32) {
    %c0_i32 = arith.constant 0 : i32
    %c0_i32_0 = arith.constant 0 : i32
    return %arg0, %c0_i32 : i32, i32
  }
}

</mosaic_0001>

<llo_original>
// kernel: fwd.1
$region0: #{fwd.1}
  #allocation0 [shape = 'u32[]', space=smem, size = 0x4, offset = 0x4, fixed_abs, tag = 'smem constant byte address 0x4 - core index']
  #allocation1 [shape = 'u32[144,128]{1,0:T(1,128)}', space=vmem, size = 0x12000, scoped, tag = 'internal scratch']
  %s0 = inlined_call_operand.vmem [shape: f32[16,16], index: 0, kind: input, shape index: {}]
  %s1 = inlined_call_operand.vmem [shape: f32[19,64], index: 1, kind: input, shape index: {}]
  %s2 = inlined_call_operand.vmem [shape: f32[2,4,64,64], index: 2, kind: input, shape index: {}]
  %s3 = inlined_call_operand.vmem [shape: f32[2,65,256], index: 3, kind: input, shape index: {}]
  %s4 = inlined_call_operand.vmem [shape: f32[2,256,64], index: 4, kind: input, shape index: {}]
  %s5 = inlined_call_operand.vmem [shape: f32[2,9,64], index: 5, kind: input, shape index: {}]
  %s6 = inlined_call_operand.vmem [shape: f32[16,1], index: 6, kind: output, shape index: {}]
  %s7 = sld [smem:[#allocation0]]
  $region34: #{fwd.1} parent=0
    _
  %s9 = ssub.s32 1, %s7
  %s10 = scalar_select 0, %s9, %s7
  // Predicated region
  $region2: #{fwd.1} parent=0 // pred_check
    _
  $region3: #{fwd.1} parent=0 // pred_check_branch
    %12 = sbr.rel (0) target = $region5
  $region4: #{fwd.1} parent=0 // pred_region
    _
  $region5: #{fwd.1} parent=0 // pred_fallthru
    _
  // Predicated region
  $region6: #{fwd.1} parent=0 // pred_check
    _
  $region7: #{fwd.1} parent=0 // pred_check_branch
    %14 = sbr.rel (0) target = $region9
  $region8: #{fwd.1} parent=0 // pred_region
    _
  $region9: #{fwd.1} parent=0 // pred_fallthru
    _
  // Predicated region
  $region10: #{fwd.1} parent=0 // pred_check
    _
  $region11: #{fwd.1} parent=0 // pred_check_branch
    %16 = sbr.rel (0) target = $region13
  $region12: #{fwd.1} parent=0 // pred_region
    _
  $region13: #{fwd.1} parent=0 // pred_fallthru
    _
  // Predicated region
  $region14: #{fwd.1} parent=0 // pred_check
    _
  $region15: #{fwd.1} parent=0 // pred_check_branch
    %18 = sbr.rel (0) target = $region17
  $region16: #{fwd.1} parent=0 // pred_region
    _
  $region17: #{fwd.1} parent=0 // pred_fallthru
    _
  // Predicated region
  $region18: #{fwd.1} parent=0 // pred_check
    _
  $region19: #{fwd.1} parent=0 // pred_check_branch
    %20 = sbr.rel (0) target = $region21
  $region20: #{fwd.1} parent=0 // pred_region
    _
  $region21: #{fwd.1} parent=0 // pred_fallthru
    _
  // Predicated region
  $region22: #{fwd.1} parent=0 // pred_check
    _
  $region23: #{fwd.1} parent=0 // pred_check_branch
    %22 = sbr.rel (0) target = $region25
  $region24: #{fwd.1} parent=0 // pred_region
    _
  $region25: #{fwd.1} parent=0 // pred_fallthru
    _
  %v23 = vld [vmem:[%s0] sm:$0xff]
  %v24 = vld [vmem:[%s0 + $0x8] sm:$0xff]
  %v25 = vld [vmem:[%s1] sm:$0xff]
  %v26 = vld [vmem:[%s1 + $0x8] sm:$0xff]
  %v27 = vld [vmem:[%s1 + $0x10] sm:$0x1]
  %v28 = vlaneseq
  %v29 = vshrl.u32 %v28, 7
  %v30 = vsub.s32 0, %v29
  %v31 = vrot.slane %v27, %v30
  %vm32 = vcmask 130048
  %v34 = vsel %vm32, %v23, 0
  %v37 = vsel %vm32, %v24, 0
  %39 = vmatprep.subr.mxu0 0.0
  %40 = vmatpush1.msra.mxu0 %v25
  %41 = vmatprep.subr.mxu0 0.0
  %42 = vmatpush1.msra.mxu0 %v26
  %43 = vmatprep.subr.mxu0 0.0
  %44 = vmatpush1.msra.mxu0 0.0
  %45 = vmatprep.subr.mxu0 0.0
  %46 = vmatpush1.msra.mxu0 0.0
  %47 = vmatprep.subr.mxu0 0.0
  %48 = vmatpush1.msra.mxu0 0.0
  %49 = vmatprep.subr.mxu0 0.0
  %50 = vmatpush1.msra.mxu0 0.0
  %51 = vmatprep.subr.mxu0 0.0
  %52 = vmatpush1.msra.mxu0 0.0
  %53 = vmatprep.subr.mxu0 0.0
  %54 = vmatpush1.msra.mxu0 0.0
  %55 = vmatprep.subr.mxu0 0.0
  %56 = vmatpush1.msra.mxu0 0.0
  %57 = vmatprep.subr.mxu0 0.0
  %58 = vmatpush1.msra.mxu0 0.0
  %59 = vmatprep.subr.mxu0 0.0
  %60 = vmatpush1.msra.mxu0 0.0
  %61 = vmatprep.subr.mxu0 0.0
  %62 = vmatpush1.msra.mxu0 0.0
  %63 = vmatprep.subr.mxu0 0.0
  %64 = vmatpush1.msra.mxu0 0.0
  %65 = vmatprep.subr.mxu0 0.0
  %66 = vmatpush1.msra.mxu0 0.0
  %67 = vmatprep.subr.mxu0 0.0
  %68 = vmatpush1.msra.mxu0 0.0
  %69 = vmatprep.subr.mxu0 0.0
  %70 = vmatpush1.msra.mxu0 0.0
  %71 = vmatprep.subr.mxu0 0.0
  %72 = vmatpush1.msra.mxu0 0.0
  %73 = vmatprep.subr.mxu0 0.0
  %74 = vmatpush1.msra.mxu0 0.0
  %75 = vmatprep.subr.mxu0 0.0
  %76 = vmatpush1.msra.mxu0 0.0
  %77 = vmatprep.subr.mxu0 0.0
  %78 = vmatpush1.msra.mxu0 0.0
  %79 = vmatprep.subr.mxu0 0.0
  %80 = vmatpush1.msra.mxu0 0.0
  %81 = vmatprep.subr.mxu0 0.0
  %82 = vmatpush1.msra.mxu0 0.0
  %83 = vmatprep.subr.mxu0 0.0
  %84 = vmatpush1.msra.mxu0 0.0
  %85 = vmatprep.subr.mxu0 0.0
  %86 = vmatpush1.msra.mxu0 0.0
  %87 = vmatprep.subr.mxu0 0.0
  %88 = vmatpush1.msra.mxu0 0.0
  %89 = vmatprep.subr.mxu0 0.0
  %90 = vmatpush1.msra.mxu0 0.0
  %91 = vmatprep.subr.mxu0 0.0
  %92 = vmatpush1.msra.mxu0 0.0
  %93 = vmatprep.subr.mxu0 0.0
  %94 = vmatpush1.msra.mxu0 0.0
  %95 = vmatprep.subr.mxu0 0.0
  %96 = vmatpush1.msra.mxu0 0.0
  %97 = vmatprep.subr.mxu0 0.0
  %98 = vmatpush1.msra.mxu0 0.0
  %99 = vmatprep.subr.mxu0 0.0
  %100 = vmatpush1.msra.mxu0 0.0
  %101 = vmatprep.subr.mxu0 0.0
  %102 = vmatpush1.msra.mxu0 0.0
  %103 = vmatprep.mubr.f32.mxu0 0.0
  %104 = vmatmul.mubr.f32.gmra.mrb[0].mxu0 %v34
  %v105 = vpop.f32.mrb[0].mxu0
  %v106 = vadd.f32 %v31, %v105
  %v107 = vpop.f32.mrb[0].mxu0
  %108 = vmatprep.mubr.f32.mxu0 0.0
  %109 = vmatmul.mubr.f32.gmra.mrb[0].mxu0 %v37
  %v110 = vpop.f32.mrb[0].mxu0
  %v111 = vadd.f32 %v31, %v110
  %v112 = vpop.f32.mrb[0].mxu0
  %113 = vdwg.mxu0
  %v114 = vld [vmem:[%s2] sm:$0xff]
  %v115 = vld [vmem:[%s2 + $0x8] sm:$0xff]
  %v116 = vld [vmem:[%s2 + $0x10] sm:$0xff]
  %v117 = vld [vmem:[%s2 + $0x18] sm:$0xff]
  %v118 = vld [vmem:[%s2 + $0x20] sm:$0xff]
  %v119 = vld [vmem:[%s2 + $0x28] sm:$0xff]
  %v120 = vld [vmem:[%s2 + $0x30] sm:$0xff]
  %v121 = vld [vmem:[%s2 + $0x38] sm:$0xff]
  %s122 = scalar_lea.vmem %s2, 64
  %v123 = vld [vmem:[%s122] sm:$0xff]
  %v124 = vld [vmem:[%s122 + $0x8] sm:$0xff]
  %v125 = vld [vmem:[%s122 + $0x10] sm:$0xff]
  %v126 = vld [vmem:[%s122 + $0x18] sm:$0xff]
  %v127 = vld [vmem:[%s122 + $0x20] sm:$0xff]
  %v128 = vld [vmem:[%s122 + $0x28] sm:$0xff]
  %v129 = vld [vmem:[%s122 + $0x30] sm:$0xff]
  %v130 = vld [vmem:[%s122 + $0x38] sm:$0xff]
  %s131 = scalar_lea.vmem %s2, 128
  %v132 = vld [vmem:[%s131] sm:$0xff]
  %v133 = vld [vmem:[%s131 + $0x8] sm:$0xff]
  %v134 = vld [vmem:[%s131 + $0x10] sm:$0xff]
  %v135 = vld [vmem:[%s131 + $0x18] sm:$0xff]
  %v136 = vld [vmem:[%s131 + $0x20] sm:$0xff]
  %v137 = vld [vmem:[%s131 + $0x28] sm:$0xff]
  %v138 = vld [vmem:[%s131 + $0x30] sm:$0xff]
  %v139 = vld [vmem:[%s131 + $0x38] sm:$0xff]
  %s140 = scalar_lea.vmem %s2, 192
  %v141 = vld [vmem:[%s140] sm:$0xff]
  %v142 = vld [vmem:[%s140 + $0x8] sm:$0xff]
  %v143 = vld [vmem:[%s140 + $0x10] sm:$0xff]
  %v144 = vld [vmem:[%s140 + $0x18] sm:$0xff]
  %v145 = vld [vmem:[%s140 + $0x20] sm:$0xff]
  %v146 = vld [vmem:[%s140 + $0x28] sm:$0xff]
  %v147 = vld [vmem:[%s140 + $0x30] sm:$0xff]
  %v148 = vld [vmem:[%s140 + $0x38] sm:$0xff]
  %v149 = vld [vmem:[%s5] sm:$0xff]
  %v150 = vld [vmem:[%s5 + $0x8] sm:$0x1]
  %v151 = vlaneseq
  %v152 = vshrl.u32 %v151, 7
  %v153 = vsub.s32 0, %v152
  %v154 = vrot.slane %v149, %v153
  %vm155 = vcmask 523264
  %v157 = vsel %vm155, %v106, 0
  %v160 = vsel %vm155, %v111, 0
  %162 = vmatprep.subr.mxu0 0.0
  %163 = vmatpush1.msra.mxu0 %v114
  %164 = vmatprep.subr.mxu0 0.0
  %165 = vmatpush1.msra.mxu0 %v115
  %166 = vmatprep.subr.mxu0 0.0
  %167 = vmatpush1.msra.mxu0 %v116
  %168 = vmatprep.subr.mxu0 0.0
  %169 = vmatpush1.msra.mxu0 %v117
  %170 = vmatprep.subr.mxu0 0.0
  %171 = vmatpush1.msra.mxu0 %v118
  %172 = vmatprep.subr.mxu0 0.0
  %173 = vmatpush1.msra.mxu0 %v119
  %174 = vmatprep.subr.mxu0 0.0
  %175 = vmatpush1.msra.mxu0 %v120
  %176 = vmatprep.subr.mxu0 0.0
  %177 = vmatpush1.msra.mxu0 %v121
  %178 = vmatprep.subr.mxu0 0.0
  %179 = vmatpush1.msra.mxu0 0.0
  %180 = vmatprep.subr.mxu0 0.0
  %181 = vmatpush1.msra.mxu0 0.0
  %182 = vmatprep.subr.mxu0 0.0
  %183 = vmatpush1.msra.mxu0 0.0
  %184 = vmatprep.subr.mxu0 0.0
  %185 = vmatpush1.msra.mxu0 0.0
  %186 = vmatprep.subr.mxu0 0.0
  %187 = vmatpush1.msra.mxu0 0.0
  %188 = vmatprep.subr.mxu0 0.0
  %189 = vmatpush1.msra.mxu0 0.0
  %190 = vmatprep.subr.mxu0 0.0
  %191 = vmatpush1.msra.mxu0 0.0
  %192 = vmatprep.subr.mxu0 0.0
  %193 = vmatpush1.msra.mxu0 0.0
  %194 = vmatprep.subr.mxu0 0.0
  %195 = vmatpush1.msra.mxu0 0.0
  %196 = vmatprep.subr.mxu0 0.0
  %197 = vmatpush1.msra.mxu0 0.0
  %198 = vmatprep.subr.mxu0 0.0
  %199 = vmatpush1.msra.mxu0 0.0
  %200 = vmatprep.subr.mxu0 0.0
  %201 = vmatpush1.msra.mxu0 0.0
  %202 = vmatprep.subr.mxu0 0.0
  %203 = vmatpush1.msra.mxu0 0.0
  %204 = vmatprep.subr.mxu0 0.0
  %205 = vmatpush1.msra.mxu0 0.0
  %206 = vmatprep.subr.mxu0 0.0
  %207 = vmatpush1.msra.mxu0 0.0
  %208 = vmatprep.subr.mxu0 0.0
  %209 = vmatpush1.msra.mxu0 0.0
  %210 = vmatprep.subr.mxu0 0.0
  %211 = vmatpush1.msra.mxu0 0.0
  %212 = vmatprep.subr.mxu0 0.0
  %213 = vmatpush1.msra.mxu0 0.0
  %214 = vmatprep.subr.mxu0 0.0
  %215 = vmatpush1.msra.mxu0 0.0
  %216 = vmatprep.subr.mxu0 0.0
  %217 = vmatpush1.msra.mxu0 0.0
  %218 = vmatprep.subr.mxu0 0.0
  %219 = vmatpush1.msra.mxu0 0.0
  %220 = vmatprep.subr.mxu0 0.0
  %221 = vmatpush1.msra.mxu0 0.0
  %222 = vmatprep.subr.mxu0 0.0
  %223 = vmatpush1.msra.mxu0 0.0
  %224 = vmatprep.subr.mxu0 0.0
  %225 = vmatpush1.msra.mxu0 0.0
  %226 = vmatprep.mubr.f32.mxu0 0.0
  %227 = vmatmul.mubr.f32.gmra.mrb[0].mxu0 %v157
  %v228 = vpop.f32.mrb[0].mxu0
  %v229 = vadd.f32 %v154, %v228
  %v230 = vpop.f32.mrb[0].mxu0
  %231 = vmatprep.mubr.f32.mxu0 0.0
  %232 = vmatmul.mubr.f32.gmra.mrb[0].mxu0 %v160
  %v233 = vpop.f32.mrb[0].mxu0
  %v234 = vadd.f32 %v154, %v233
  %v235 = vpop.f32.mrb[0].mxu0
  %236 = vdwg.mxu0
  %v237 = vlaneseq
  %v238 = vshrl.u32 %v237, 7
  %v239 = vsub.s32 1, %v238
  %v240 = vrot.slane %v149, %v239
  %241 = vmatprep.subr.mxu0 0.0
  %242 = vmatpush1.msra.mxu0 %v123
  %243 = vmatprep.subr.mxu0 0.0
  %244 = vmatpush1.msra.mxu0 %v124
  %245 = vmatprep.subr.mxu0 0.0
  %246 = vmatpush1.msra.mxu0 %v125
  %247 = vmatprep.subr.mxu0 0.0
  %248 = vmatpush1.msra.mxu0 %v126
  %249 = vmatprep.subr.mxu0 0.0
  %250 = vmatpush1.msra.mxu0 %v127
  %251 = vmatprep.subr.mxu0 0.0
  %252 = vmatpush1.msra.mxu0 %v128
  %253 = vmatprep.subr.mxu0 0.0
  %254 = vmatpush1.msra.mxu0 %v129
  %255 = vmatprep.subr.mxu0 0.0
  %256 = vmatpush1.msra.mxu0 %v130
  %257 = vmatprep.subr.mxu0 0.0
  %258 = vmatpush1.msra.mxu0 0.0
  %259 = vmatprep.subr.mxu0 0.0
  %260 = vmatpush1.msra.mxu0 0.0
  %261 = vmatprep.subr.mxu0 0.0
  %262 = vmatpush1.msra.mxu0 0.0
  %263 = vmatprep.subr.mxu0 0.0
  %264 = vmatpush1.msra.mxu0 0.0
  %265 = vmatprep.subr.mxu0 0.0
  %266 = vmatpush1.msra.mxu0 0.0
  %267 = vmatprep.subr.mxu0 0.0
  %268 = vmatpush1.msra.mxu0 0.0
  %269 = vmatprep.subr.mxu0 0.0
  %270 = vmatpush1.msra.mxu0 0.0
  %271 = vmatprep.subr.mxu0 0.0
  %272 = vmatpush1.msra.mxu0 0.0
  %273 = vmatprep.subr.mxu0 0.0
  %274 = vmatpush1.msra.mxu0 0.0
  %275 = vmatprep.subr.mxu0 0.0
  %276 = vmatpush1.msra.mxu0 0.0
  %277 = vmatprep.subr.mxu0 0.0
  %278 = vmatpush1.msra.mxu0 0.0
  %279 = vmatprep.subr.mxu0 0.0
  %280 = vmatpush1.msra.mxu0 0.0
  %281 = vmatprep.subr.mxu0 0.0
  %282 = vmatpush1.msra.mxu0 0.0
  %283 = vmatprep.subr.mxu0 0.0
  %284 = vmatpush1.msra.mxu0 0.0
  %285 = vmatprep.subr.mxu0 0.0
  %286 = vmatpush1.msra.mxu0 0.0
  %287 = vmatprep.subr.mxu0 0.0
  %288 = vmatpush1.msra.mxu0 0.0
  %289 = vmatprep.subr.mxu0 0.0
  %290 = vmatpush1.msra.mxu0 0.0
  %291 = vmatprep.subr.mxu0 0.0
  %292 = vmatpush1.msra.mxu0 0.0
  %293 = vmatprep.subr.mxu0 0.0
  %294 = vmatpush1.msra.mxu0 0.0
  %295 = vmatprep.subr.mxu0 0.0
  %296 = vmatpush1.msra.mxu0 0.0
  %297 = vmatprep.subr.mxu0 0.0
  %298 = vmatpush1.msra.mxu0 0.0
  %299 = vmatprep.subr.mxu0 0.0
  %300 = vmatpush1.msra.mxu0 0.0
  %301 = vmatprep.subr.mxu0 0.0
  %302 = vmatpush1.msra.mxu0 0.0
  %303 = vmatprep.subr.mxu0 0.0
  %304 = vmatpush1.msra.mxu0 0.0
  %305 = vmatprep.mubr.f32.mxu0 0.0
  %306 = vmatmul.mubr.f32.gmra.mrb[0].mxu0 %v157
  %v307 = vpop.f32.mrb[0].mxu0
  %v308 = vadd.f32 %v240, %v307
  %v309 = vpop.f32.mrb[0].mxu0
  %310 = vmatprep.mubr.f32.mxu0 0.0
  %311 = vmatmul.mubr.f32.gmra.mrb[0].mxu0 %v160
  %v312 = vpop.f32.mrb[0].mxu0
  %v313 = vadd.f32 %v240, %v312
  %v314 = vpop.f32.mrb[0].mxu0
  %315 = vdwg.mxu0
  %v316 = vlaneseq
  %v317 = vshrl.u32 %v316, 7
  %v318 = vsub.s32 2, %v317
  %v319 = vrot.slane %v149, %v318
  %320 = vmatprep.subr.mxu0 0.0
  %321 = vmatpush1.msra.mxu0 %v132
  %322 = vmatprep.subr.mxu0 0.0
  %323 = vmatpush1.msra.mxu0 %v133
  %324 = vmatprep.subr.mxu0 0.0
  %325 = vmatpush1.msra.mxu0 %v134
  %326 = vmatprep.subr.mxu0 0.0
  %327 = vmatpush1.msra.mxu0 %v135
  %328 = vmatprep.subr.mxu0 0.0
  %329 = vmatpush1.msra.mxu0 %v136
  %330 = vmatprep.subr.mxu0 0.0
  %331 = vmatpush1.msra.mxu0 %v137
  %332 = vmatprep.subr.mxu0 0.0
  %333 = vmatpush1.msra.mxu0 %v138
  %334 = vmatprep.subr.mxu0 0.0
  %335 = vmatpush1.msra.mxu0 %v139
  %336 = vmatprep.subr.mxu0 0.0
  %337 = vmatpush1.msra.mxu0 0.0
  %338 = vmatprep.subr.mxu0 0.0
  %339 = vmatpush1.msra.mxu0 0.0
  %340 = vmatprep.subr.mxu0 0.0
  %341 = vmatpush1.msra.mxu0 0.0
  %342 = vmatprep.subr.mxu0 0.0
  %343 = vmatpush1.msra.mxu0 0.0
  %344 = vmatprep.subr.mxu0 0.0
  %345 = vmatpush1.msra.mxu0 0.0
  %346 = vmatprep.subr.mxu0 0.0
  %347 = vmatpush1.msra.mxu0 0.0
  %348 = vmatprep.subr.mxu0 0.0
  %349 = vmatpush1.msra.mxu0 0.0
  %350 = vmatprep.subr.mxu0 0.0
  %351 = vmatpush1.msra.mxu0 0.0
  %352 = vmatprep.subr.mxu0 0.0
  %353 = vmatpush1.msra.mxu0 0.0
  %354 = vmatprep.subr.mxu0 0.0
  %355 = vmatpush1.msra.mxu0 0.0
  %356 = vmatprep.subr.mxu0 0.0
  %357 = vmatpush1.msra.mxu0 0.0
  %358 = vmatprep.subr.mxu0 0.0
  %359 = vmatpush1.msra.mxu0 0.0
  %360 = vmatprep.subr.mxu0 0.0
  %361 = vmatpush1.msra.mxu0 0.0
  %362 = vmatprep.subr.mxu0 0.0
  %363 = vmatpush1.msra.mxu0 0.0
  %364 = vmatprep.subr.mxu0 0.0
  %365 = vmatpush1.msra.mxu0 0.0
  %366 = vmatprep.subr.mxu0 0.0
  %367 = vmatpush1.msra.mxu0 0.0
  %368 = vmatprep.subr.mxu0 0.0
  %369 = vmatpush1.msra.mxu0 0.0
  %370 = vmatprep.subr.mxu0 0.0
  %371 = vmatpush1.msra.mxu0 0.0
  %372 = vmatprep.subr.mxu0 0.0
  %373 = vmatpush1.msra.mxu0 0.0
  %374 = vmatprep.subr.mxu0 0.0
  %375 = vmatpush1.msra.mxu0 0.0
  %376 = vmatprep.subr.mxu0 0.0
  %377 = vmatpush1.msra.mxu0 0.0
  %378 = vmatprep.subr.mxu0 0.0
  %379 = vmatpush1.msra.mxu0 0.0
  %380 = vmatprep.subr.mxu0 0.0
  %381 = vmatpush1.msra.mxu0 0.0
  %382 = vmatprep.subr.mxu0 0.0
  %383 = vmatpush1.msra.mxu0 0.0
  %384 = vmatprep.mubr.f32.mxu0 0.0
  %385 = vmatmul.mubr.f32.gmra.mrb[0].mxu0 %v157
  %v386 = vpop.f32.mrb[0].mxu0
  %v387 = vadd.f32 %v319, %v386
  %v388 = vpop.f32.mrb[0].mxu0
  %389 = vmatprep.mubr.f32.mxu0 0.0
  %390 = vmatmul.mubr.f32.gmra.mrb[0].mxu0 %v160
  %v391 = vpop.f32.mrb[0].mxu0
  %v392 = vadd.f32 %v319, %v391
  %v393 = vpop.f32.mrb[0].mxu0
  %394 = vdwg.mxu0
  %397 = vrot.lane.b32.xlu0 %v229, 112
  %v398 = vpop.permute.xlu0 %397
  %399 = vrot.lane.b32.xlu0 %v234, 112
  %v400 = vpop.permute.xlu0 %399
  %401 = vrot.lane.b32.xlu0 %v229, 96
  %v402 = vpop.permute.xlu0 %401
  %403 = vrot.lane.b32.xlu0 %v234, 96
  %v404 = vpop.permute.xlu0 %403
  %405 = vrot.lane.b32.xlu0 %v229, 80
  %v406 = vpop.permute.xlu0 %405
  %407 = vrot.lane.b32.xlu0 %v234, 80
  %v408 = vpop.permute.xlu0 %407
  %411 = vrot.lane.b32.xlu0 %v308, 112
  %v412 = vpop.permute.xlu0 %411
  %413 = vrot.lane.b32.xlu0 %v313, 112
  %v414 = vpop.permute.xlu0 %413
  %415 = vrot.lane.b32.xlu0 %v308, 96
  %v416 = vpop.permute.xlu0 %415
  %417 = vrot.lane.b32.xlu0 %v313, 96
  %v418 = vpop.permute.xlu0 %417
  %419 = vrot.lane.b32.xlu0 %v308, 80
  %v420 = vpop.permute.xlu0 %419
  %421 = vrot.lane.b32.xlu0 %v313, 80
  %v422 = vpop.permute.xlu0 %421
  %425 = vrot.lane.b32.xlu0 %v387, 112
  %v426 = vpop.permute.xlu0 %425
  %427 = vrot.lane.b32.xlu0 %v392, 112
  %v428 = vpop.permute.xlu0 %427
  %431 = vrot.lane.b32.xlu0 %v387, 96
  %v432 = vpop.permute.xlu0 %431
  %433 = vrot.lane.b32.xlu0 %v392, 96
  %v434 = vpop.permute.xlu0 %433
  %437 = vrot.lane.b32.xlu0 %v387, 80
  %v438 = vpop.permute.xlu0 %437
  %439 = vrot.lane.b32.xlu0 %v392, 80
  %v440 = vpop.permute.xlu0 %439
  %v443 = vsel %vm32, %v229, 0
  %v445 = vsel %vm32, %v308, 0
  %447 = vmatprep.subr.mxu0 0.0
  %448 = vmatpush1.xpose.msra.mxu0 %v445
  %449 = vmatprep.subr.mxu0 0.0
  %450 = vmatpush1.xpose.msra.mxu0 0.0
  %451 = vmatprep.subr.mxu0 0.0
  %452 = vmatpush1.xpose.msra.mxu0 0.0
  %453 = vmatprep.subr.mxu0 0.0
  %454 = vmatpush1.xpose.msra.mxu0 0.0
  %455 = vmatprep.subr.mxu0 0.0
  %456 = vmatpush1.xpose.msra.mxu0 0.0
  %457 = vmatprep.subr.mxu0 0.0
  %458 = vmatpush1.xpose.msra.mxu0 0.0
  %459 = vmatprep.subr.mxu0 0.0
  %460 = vmatpush1.xpose.msra.mxu0 0.0
  %461 = vmatprep.subr.mxu0 0.0
  %462 = vmatpush1.xpose.msra.mxu0 0.0
  %463 = vmatprep.subr.mxu0 0.0
  %464 = vmatpush1.xpose.msra.mxu0 0.0
  %465 = vmatprep.subr.mxu0 0.0
  %466 = vmatpush1.xpose.msra.mxu0 0.0
  %467 = vmatprep.subr.mxu0 0.0
  %468 = vmatpush1.xpose.msra.mxu0 0.0
  %469 = vmatprep.subr.mxu0 0.0
  %470 = vmatpush1.xpose.msra.mxu0 0.0
  %471 = vmatprep.subr.mxu0 0.0
  %472 = vmatpush1.xpose.msra.mxu0 0.0
  %473 = vmatprep.subr.mxu0 0.0
  %474 = vmatpush1.xpose.msra.mxu0 0.0
  %475 = vmatprep.subr.mxu0 0.0
  %476 = vmatpush1.xpose.msra.mxu0 0.0
  %477 = vmatprep.subr.mxu0 0.0
  %478 = vmatpush1.xpose.msra.mxu0 0.0
  %479 = vmatprep.subr.mxu0 0.0
  %480 = vmatpush1.xpose.msra.mxu0 0.0
  %481 = vmatprep.subr.mxu0 0.0
  %482 = vmatpush1.xpose.msra.mxu0 0.0
  %483 = vmatprep.subr.mxu0 0.0
  %484 = vmatpush1.xpose.msra.mxu0 0.0
  %485 = vmatprep.subr.mxu0 0.0
  %486 = vmatpush1.xpose.msra.mxu0 0.0
  %487 = vmatprep.subr.mxu0 0.0
  %488 = vmatpush1.xpose.msra.mxu0 0.0
  %489 = vmatprep.subr.mxu0 0.0
  %490 = vmatpush1.xpose.msra.mxu0 0.0
  %491 = vmatprep.subr.mxu0 0.0
  %492 = vmatpush1.xpose.msra.mxu0 0.0
  %493 = vmatprep.subr.mxu0 0.0
  %494 = vmatpush1.xpose.msra.mxu0 0.0
  %495 = vmatprep.subr.mxu0 0.0
  %496 = vmatpush1.xpose.msra.mxu0 0.0
  %497 = vmatprep.subr.mxu0 0.0
  %498 = vmatpush1.xpose.msra.mxu0 0.0
  %499 = vmatprep.subr.mxu0 0.0
  %500 = vmatpush1.xpose.msra.mxu0 0.0
  %501 = vmatprep.subr.mxu0 0.0
  %502 = vmatpush1.xpose.msra.mxu0 0.0
  %503 = vmatprep.subr.mxu0 0.0
  %504 = vmatpush1.xpose.msra.mxu0 0.0
  %505 = vmatprep.subr.mxu0 0.0
  %506 = vmatpush1.xpose.msra.mxu0 0.0
  %507 = vmatprep.subr.mxu0 0.0
  %508 = vmatpush1.xpose.msra.mxu0 0.0
  %509 = vmatprep.subr.mxu0 0.0
  %510 = vmatpush1.xpose.msra.mxu0 0.0
  %511 = vmatprep.mubr.f32.mxu0 0.0
  %512 = vmatmul.mubr.f32.gmra.mrb[0].mxu0 %v443
  %v513 = vpop.f32.mrb[0].mxu0
  %v514 = vadd.f32 0.0, %v513
  %v515 = vpop.f32.mrb[0].mxu0
  %516 = vdwg.mxu0
  %v517 = vsel %vm32, %v234, 0
  %v519 = vsel %vm32, %v313, 0
  %521 = vmatprep.subr.mxu0 0.0
  %522 = vmatpush1.xpose.msra.mxu0 %v519
  %523 = vmatprep.subr.mxu0 0.0
  %524 = vmatpush1.xpose.msra.mxu0 0.0
  %525 = vmatprep.subr.mxu0 0.0
  %526 = vmatpush1.xpose.msra.mxu0 0.0
  %527 = vmatprep.subr.mxu0 0.0
  %528 = vmatpush1.xpose.msra.mxu0 0.0
  %529 = vmatprep.subr.mxu0 0.0
  %530 = vmatpush1.xpose.msra.mxu0 0.0
  %531 = vmatprep.subr.mxu0 0.0
  %532 = vmatpush1.xpose.msra.mxu0 0.0
  %533 = vmatprep.subr.mxu0 0.0
  %534 = vmatpush1.xpose.msra.mxu0 0.0
  %535 = vmatprep.subr.mxu0 0.0
  %536 = vmatpush1.xpose.msra.mxu0 0.0
  %537 = vmatprep.subr.mxu0 0.0
  %538 = vmatpush1.xpose.msra.mxu0 0.0
  %539 = vmatprep.subr.mxu0 0.0
  %540 = vmatpush1.xpose.msra.mxu0 0.0
  %541 = vmatprep.subr.mxu0 0.0
  %542 = vmatpush1.xpose.msra.mxu0 0.0
  %543 = vmatprep.subr.mxu0 0.0
  %544 = vmatpush1.xpose.msra.mxu0 0.0
  %545 = vmatprep.subr.mxu0 0.0
  %546 = vmatpush1.xpose.msra.mxu0 0.0
  %547 = vmatprep.subr.mxu0 0.0
  %548 = vmatpush1.xpose.msra.mxu0 0.0
  %549 = vmatprep.subr.mxu0 0.0
  %550 = vmatpush1.xpose.msra.mxu0 0.0
  %551 = vmatprep.subr.mxu0 0.0
  %552 = vmatpush1.xpose.msra.mxu0 0.0
  %553 = vmatprep.subr.mxu0 0.0
  %554 = vmatpush1.xpose.msra.mxu0 0.0
  %555 = vmatprep.subr.mxu0 0.0
  %556 = vmatpush1.xpose.msra.mxu0 0.0
  %557 = vmatprep.subr.mxu0 0.0
  %558 = vmatpush1.xpose.msra.mxu0 0.0
  %559 = vmatprep.subr.mxu0 0.0
  %560 = vmatpush1.xpose.msra.mxu0 0.0
  %561 = vmatprep.subr.mxu0 0.0
  %562 = vmatpush1.xpose.msra.mxu0 0.0
  %563 = vmatprep.subr.mxu0 0.0
  %564 = vmatpush1.xpose.msra.mxu0 0.0
  %565 = vmatprep.subr.mxu0 0.0
  %566 = vmatpush1.xpose.msra.mxu0 0.0
  %567 = vmatprep.subr.mxu0 0.0
  %568 = vmatpush1.xpose.msra.mxu0 0.0
  %569 = vmatprep.subr.mxu0 0.0
  %570 = vmatpush1.xpose.msra.mxu0 0.0
  %571 = vmatprep.subr.mxu0 0.0
  %572 = vmatpush1.xpose.msra.mxu0 0.0
  %573 = vmatprep.subr.mxu0 0.0
  %574 = vmatpush1.xpose.msra.mxu0 0.0
  %575 = vmatprep.subr.mxu0 0.0
  %576 = vmatpush1.xpose.msra.mxu0 0.0
  %577 = vmatprep.subr.mxu0 0.0
  %578 = vmatpush1.xpose.msra.mxu0 0.0
  %579 = vmatprep.subr.mxu0 0.0
  %580 = vmatpush1.xpose.msra.mxu0 0.0
  %581 = vmatprep.subr.mxu0 0.0
  %582 = vmatpush1.xpose.msra.mxu0 0.0
  %583 = vmatprep.subr.mxu0 0.0
  %584 = vmatpush1.xpose.msra.mxu0 0.0
  %585 = vmatprep.mubr.f32.mxu0 0.0
  %586 = vmatmul.mubr.f32.gmra.mrb[0].mxu0 %v517
  %v587 = vpop.f32.mrb[0].mxu0
  %v588 = vadd.f32 0.0, %v587
  %v589 = vpop.f32.mrb[0].mxu0
  %590 = vdwg.mxu0
  %v591 = vsel %vm32, %v398, 0
  %v593 = vsel %vm32, %v412, 0
  %595 = vmatprep.subr.mxu0 0.0
  %596 = vmatpush1.xpose.msra.mxu0 %v593
  %597 = vmatprep.subr.mxu0 0.0
  %598 = vmatpush1.xpose.msra.mxu0 0.0
  %599 = vmatprep.subr.mxu0 0.0
  %600 = vmatpush1.xpose.msra.mxu0 0.0
  %601 = vmatprep.subr.mxu0 0.0
  %602 = vmatpush1.xpose.msra.mxu0 0.0
  %603 = vmatprep.subr.mxu0 0.0
  %604 = vmatpush1.xpose.msra.mxu0 0.0
  %605 = vmatprep.subr.mxu0 0.0
  %606 = vmatpush1.xpose.msra.mxu0 0.0
  %607 = vmatprep.subr.mxu0 0.0
  %608 = vmatpush1.xpose.msra.mxu0 0.0
  %609 = vmatprep.subr.mxu0 0.0
  %610 = vmatpush1.xpose.msra.mxu0 0.0
  %611 = vmatprep.subr.mxu0 0.0
  %612 = vmatpush1.xpose.msra.mxu0 0.0
  %613 = vmatprep.subr.mxu0 0.0
  %614 = vmatpush1.xpose.msra.mxu0 0.0
  %615 = vmatprep.subr.mxu0 0.0
  %616 = vmatpush1.xpose.msra.mxu0 0.0
  %617 = vmatprep.subr.mxu0 0.0
  %618 = vmatpush1.xpose.msra.mxu0 0.0
  %619 = vmatprep.subr.mxu0 0.0
  %620 = vmatpush1.xpose.msra.mxu0 0.0
  %621 = vmatprep.subr.mxu0 0.0
  %622 = vmatpush1.xpose.msra.mxu0 0.0
  %623 = vmatprep.subr.mxu0 0.0
  %624 = vmatpush1.xpose.msra.mxu0 0.0
  %625 = vmatprep.subr.mxu0 0.0
  %626 = vmatpush1.xpose.msra.mxu0 0.0
  %627 = vmatprep.subr.mxu0 0.0
  %628 = vmatpush1.xpose.msra.mxu0 0.0
  %629 = vmatprep.subr.mxu0 0.0
  %630 = vmatpush1.xpose.msra.mxu0 0.0
  %631 = vmatprep.subr.mxu0 0.0
  %632 = vmatpush1.xpose.msra.mxu0 0.0
  %633 = vmatprep.subr.mxu0 0.0
  %634 = vmatpush1.xpose.msra.mxu0 0.0
  %635 = vmatprep.subr.mxu0 0.0
  %636 = vmatpush1.xpose.msra.mxu0 0.0
  %637 = vmatprep.subr.mxu0 0.0
  %638 = vmatpush1.xpose.msra.mxu0 0.0
  %639 = vmatprep.subr.mxu0 0.0
  %640 = vmatpush1.xpose.msra.mxu0 0.0
  %641 = vmatprep.subr.mxu0 0.0
  %642 = vmatpush1.xpose.msra.mxu0 0.0
  %643 = vmatprep.subr.mxu0 0.0
  %644 = vmatpush1.xpose.msra.mxu0 0.0
  %645 = vmatprep.subr.mxu0 0.0
  %646 = vmatpush1.xpose.msra.mxu0 0.0
  %647 = vmatprep.subr.mxu0 0.0
  %648 = vmatpush1.xpose.msra.mxu0 0.0
  %649 = vmatprep.subr.mxu0 0.0
  %650 = vmatpush1.xpose.msra.mxu0 0.0
  %651 = vmatprep.subr.mxu0 0.0
  %652 = vmatpush1.xpose.msra.mxu0 0.0
  %653 = vmatprep.subr.mxu0 0.0
  %654 = vmatpush1.xpose.msra.mxu0 0.0
  %655 = vmatprep.subr.mxu0 0.0
  %656 = vmatpush1.xpose.msra.mxu0 0.0
  %657 = vmatprep.subr.mxu0 0.0
  %658 = vmatpush1.xpose.msra.mxu0 0.0
  %659 = vmatprep.mubr.f32.mxu0 0.0
  %660 = vmatmul.mubr.f32.gmra.mrb[0].mxu0 %v591
  %v661 = vpop.f32.mrb[0].mxu0
  %v662 = vadd.f32 0.0, %v661
  %v663 = vpop.f32.mrb[0].mxu0
  %664 = vdwg.mxu0
  %v665 = vsel %vm32, %v400, 0
  %v667 = vsel %vm32, %v414, 0
  %669 = vmatprep.subr.mxu0 0.0
  %670 = vmatpush1.xpose.msra.mxu0 %v667
  %671 = vmatprep.subr.mxu0 0.0
  %672 = vmatpush1.xpose.msra.mxu0 0.0
  %673 = vmatprep.subr.mxu0 0.0
  %674 = vmatpush1.xpose.msra.mxu0 0.0
  %675 = vmatprep.subr.mxu0 0.0
  %676 = vmatpush1.xpose.msra.mxu0 0.0
  %677 = vmatprep.subr.mxu0 0.0
  %678 = vmatpush1.xpose.msra.mxu0 0.0
  %679 = vmatprep.subr.mxu0 0.0
  %680 = vmatpush1.xpose.msra.mxu0 0.0
  %681 = vmatprep.subr.mxu0 0.0
  %682 = vmatpush1.xpose.msra.mxu0 0.0
  %683 = vmatprep.subr.mxu0 0.0
  %684 = vmatpush1.xpose.msra.mxu0 0.0
  %685 = vmatprep.subr.mxu0 0.0
  %686 = vmatpush1.xpose.msra.mxu0 0.0
  %687 = vmatprep.subr.mxu0 0.0
  %688 = vmatpush1.xpose.msra.mxu0 0.0
  %689 = vmatprep.subr.mxu0 0.0
  %690 = vmatpush1.xpose.msra.mxu0 0.0
  %691 = vmatprep.subr.mxu0 0.0
  %692 = vmatpush1.xpose.msra.mxu0 0.0
  %693 = vmatprep.subr.mxu0 0.0
  %694 = vmatpush1.xpose.msra.mxu0 0.0
  %695 = vmatprep.subr.mxu0 0.0
  %696 = vmatpush1.xpose.msra.mxu0 0.0
  %697 = vmatprep.subr.mxu0 0.0
  %698 = vmatpush1.xpose.msra.mxu0 0.0
  %699 = vmatprep.subr.mxu0 0.0
  %700 = vmatpush1.xpose.msra.mxu0 0.0
  %701 = vmatprep.subr.mxu0 0.0
  %702 = vmatpush1.xpose.msra.mxu0 0.0
  %703 = vmatprep.subr.mxu0 0.0
  %704 = vmatpush1.xpose.msra.mxu0 0.0
  %705 = vmatprep.subr.mxu0 0.0
  %706 = vmatpush1.xpose.msra.mxu0 0.0
  %707 = vmatprep.subr.mxu0 0.0
  %708 = vmatpush1.xpose.msra.mxu0 0.0
  %709 = vmatprep.subr.mxu0 0.0
  %710 = vmatpush1.xpose.msra.mxu0 0.0
  %711 = vmatprep.subr.mxu0 0.0
  %712 = vmatpush1.xpose.msra.mxu0 0.0
  %713 = vmatprep.subr.mxu0 0.0
  %714 = vmatpush1.xpose.msra.mxu0 0.0
  %715 = vmatprep.subr.mxu0 0.0
  %716 = vmatpush1.xpose.msra.mxu0 0.0
  %717 = vmatprep.subr.mxu0 0.0
  %718 = vmatpush1.xpose.msra.mxu0 0.0
  %719 = vmatprep.subr.mxu0 0.0
  %720 = vmatpush1.xpose.msra.mxu0 0.0
  %721 = vmatprep.subr.mxu0 0.0
  %722 = vmatpush1.xpose.msra.mxu0 0.0
  %723 = vmatprep.subr.mxu0 0.0
  %724 = vmatpush1.xpose.msra.mxu0 0.0
  %725 = vmatprep.subr.mxu0 0.0
  %726 = vmatpush1.xpose.msra.mxu0 0.0
  %727 = vmatprep.subr.mxu0 0.0
  %728 = vmatpush1.xpose.msra.mxu0 0.0
  %729 = vmatprep.subr.mxu0 0.0
  %730 = vmatpush1.xpose.msra.mxu0 0.0
  %731 = vmatprep.subr.mxu0 0.0
  %732 = vmatpush1.xpose.msra.mxu0 0.0
  %733 = vmatprep.mubr.f32.mxu0 0.0
  %734 = vmatmul.mubr.f32.gmra.mrb[0].mxu0 %v665
  %v735 = vpop.f32.mrb[0].mxu0
  %v736 = vadd.f32 0.0, %v735
  %v737 = vpop.f32.mrb[0].mxu0
  %738 = vdwg.mxu0
  %v739 = vsel %vm32, %v402, 0
  %v741 = vsel %vm32, %v416, 0
  %743 = vmatprep.subr.mxu0 0.0
  %744 = vmatpush1.xpose.msra.mxu0 %v741
  %745 = vmatprep.subr.mxu0 0.0
  %746 = vmatpush1.xpose.msra.mxu0 0.0
  %747 = vmatprep.subr.mxu0 0.0
  %748 = vmatpush1.xpose.msra.mxu0 0.0
  %749 = vmatprep.subr.mxu0 0.0
  %750 = vmatpush1.xpose.msra.mxu0 0.0
  %751 = vmatprep.subr.mxu0 0.0
  %752 = vmatpush1.xpose.msra.mxu0 0.0
  %753 = vmatprep.subr.mxu0 0.0
  %754 = vmatpush1.xpose.msra.mxu0 0.0
  %755 = vmatprep.subr.mxu0 0.0
  %756 = vmatpush1.xpose.msra.mxu0 0.0
  %757 = vmatprep.subr.mxu0 0.0
  %758 = vmatpush1.xpose.msra.mxu0 0.0
  %759 = vmatprep.subr.mxu0 0.0
  %760 = vmatpush1.xpose.msra.mxu0 0.0
  %761 = vmatprep.subr.mxu0 0.0
  %762 = vmatpush1.xpose.msra.mxu0 0.0
  %763 = vmatprep.subr.mxu0 0.0
  %764 = vmatpush1.xpose.msra.mxu0 0.0
  %765 = vmatprep.subr.mxu0 0.0
  %766 = vmatpush1.xpose.msra.mxu0 0.0
  %767 = vmatprep.subr.mxu0 0.0
  %768 = vmatpush1.xpose.msra.mxu0 0.0
  %769 = vmatprep.subr.mxu0 0.0
  %770 = vmatpush1.xpose.msra.mxu0 0.0
  %771 = vmatprep.subr.mxu0 0.0
  %772 = vmatpush1.xpose.msra.mxu0 0.0
  %773 = vmatprep.subr.mxu0 0.0
  %774 = vmatpush1.xpose.msra.mxu0 0.0
  %775 = vmatprep.subr.mxu0 0.0
  %776 = vmatpush1.xpose.msra.mxu0 0.0
  %777 = vmatprep.subr.mxu0 0.0
  %778 = vmatpush1.xpose.msra.mxu0 0.0
  %779 = vmatprep.subr.mxu0 0.0
  %780 = vmatpush1.xpose.msra.mxu0 0.0
  %781 = vmatprep.subr.mxu0 0.0
  %782 = vmatpush1.xpose.msra.mxu0 0.0
  %783 = vmatprep.subr.mxu0 0.0
  %784 = vmatpush1.xpose.msra.mxu0 0.0
  %785 = vmatprep.subr.mxu0 0.0
  %786 = vmatpush1.xpose.msra.mxu0 0.0
  %787 = vmatprep.subr.mxu0 0.0
  %788 = vmatpush1.xpose.msra.mxu0 0.0
  %789 = vmatprep.subr.mxu0 0.0
  %790 = vmatpush1.xpose.msra.mxu0 0.0
  %791 = vmatprep.subr.mxu0 0.0
  %792 = vmatpush1.xpose.msra.mxu0 0.0
  %793 = vmatprep.subr.mxu0 0.0
  %794 = vmatpush1.xpose.msra.mxu0 0.0
  %795 = vmatprep.subr.mxu0 0.0
  %796 = vmatpush1.xpose.msra.mxu0 0.0
  %797 = vmatprep.subr.mxu0 0.0
  %798 = vmatpush1.xpose.msra.mxu0 0.0
  %799 = vmatprep.subr.mxu0 0.0
  %800 = vmatpush1.xpose.msra.mxu0 0.0
  %801 = vmatprep.subr.mxu0 0.0
  %802 = vmatpush1.xpose.msra.mxu0 0.0
  %803 = vmatprep.subr.mxu0 0.0
  %804 = vmatpush1.xpose.msra.mxu0 0.0
  %805 = vmatprep.subr.mxu0 0.0
  %806 = vmatpush1.xpose.msra.mxu0 0.0
  %807 = vmatprep.mubr.f32.mxu0 0.0
  %808 = vmatmul.mubr.f32.gmra.mrb[0].mxu0 %v739
  %v809 = vpop.f32.mrb[0].mxu0
  %v810 = vadd.f32 0.0, %v809
  %v811 = vpop.f32.mrb[0].mxu0
  %812 = vdwg.mxu0
  %v813 = vsel %vm32, %v404, 0
  %v815 = vsel %vm32, %v418, 0
  %817 = vmatprep.subr.mxu0 0.0
  %818 = vmatpush1.xpose.msra.mxu0 %v815
  %819 = vmatprep.subr.mxu0 0.0
  %820 = vmatpush1.xpose.msra.mxu0 0.0
  %821 = vmatprep.subr.mxu0 0.0
  %822 = vmatpush1.xpose.msra.mxu0 0.0
  %823 = vmatprep.subr.mxu0 0.0
  %824 = vmatpush1.xpose.msra.mxu0 0.0
  %825 = vmatprep.subr.mxu0 0.0
  %826 = vmatpush1.xpose.msra.mxu0 0.0
  %827 = vmatprep.subr.mxu0 0.0
  %828 = vmatpush1.xpose.msra.mxu0 0.0
  %829 = vmatprep.subr.mxu0 0.0
  %830 = vmatpush1.xpose.msra.mxu0 0.0
  %831 = vmatprep.subr.mxu0 0.0
  %832 = vmatpush1.xpose.msra.mxu0 0.0
  %833 = vmatprep.subr.mxu0 0.0
  %834 = vmatpush1.xpose.msra.mxu0 0.0
  %835 = vmatprep.subr.mxu0 0.0
  %836 = vmatpush1.xpose.msra.mxu0 0.0
  %837 = vmatprep.subr.mxu0 0.0
  %838 = vmatpush1.xpose.msra.mxu0 0.0
  %839 = vmatprep.subr.mxu0 0.0
  %840 = vmatpush1.xpose.msra.mxu0 0.0
  %841 = vmatprep.subr.mxu0 0.0
  %842 = vmatpush1.xpose.msra.mxu0 0.0
  %843 = vmatprep.subr.mxu0 0.0
  %844 = vmatpush1.xpose.msra.mxu0 0.0
  %845 = vmatprep.subr.mxu0 0.0
  %846 = vmatpush1.xpose.msra.mxu0 0.0
  %847 = vmatprep.subr.mxu0 0.0
  %848 = vmatpush1.xpose.msra.mxu0 0.0
  %849 = vmatprep.subr.mxu0 0.0
  %850 = vmatpush1.xpose.msra.mxu0 0.0
  %851 = vmatprep.subr.mxu0 0.0
  %852 = vmatpush1.xpose.msra.mxu0 0.0
  %853 = vmatprep.subr.mxu0 0.0
  %854 = vmatpush1.xpose.msra.mxu0 0.0
  %855 = vmatprep.subr.mxu0 0.0
  %856 = vmatpush1.xpose.msra.mxu0 0.0
  %857 = vmatprep.subr.mxu0 0.0
  %858 = vmatpush1.xpose.msra.mxu0 0.0
  %859 = vmatprep.subr.mxu0 0.0
  %860 = vmatpush1.xpose.msra.mxu0 0.0
  %861 = vmatprep.subr.mxu0 0.0
  %862 = vmatpush1.xpose.msra.mxu0 0.0
  %863 = vmatprep.subr.mxu0 0.0
  %864 = vmatpush1.xpose.msra.mxu0 0.0
  %865 = vmatprep.subr.mxu0 0.0
  %866 = vmatpush1.xpose.msra.mxu0 0.0
  %867 = vmatprep.subr.mxu0 0.0
  %868 = vmatpush1.xpose.msra.mxu0 0.0
  %869 = vmatprep.subr.mxu0 0.0
  %870 = vmatpush1.xpose.msra.mxu0 0.0
  %871 = vmatprep.subr.mxu0 0.0
  %872 = vmatpush1.xpose.msra.mxu0 0.0
  %873 = vmatprep.subr.mxu0 0.0
  %874 = vmatpush1.xpose.msra.mxu0 0.0
  %875 = vmatprep.subr.mxu0 0.0
  %876 = vmatpush1.xpose.msra.mxu0 0.0
  %877 = vmatprep.subr.mxu0 0.0
  %878 = vmatpush1.xpose.msra.mxu0 0.0
  %879 = vmatprep.subr.mxu0 0.0
  %880 = vmatpush1.xpose.msra.mxu0 0.0
  %881 = vmatprep.mubr.f32.mxu0 0.0
  %882 = vmatmul.mubr.f32.gmra.mrb[0].mxu0 %v813
  %v883 = vpop.f32.mrb[0].mxu0
  %v884 = vadd.f32 0.0, %v883
  %v885 = vpop.f32.mrb[0].mxu0
  %886 = vdwg.mxu0
  %v887 = vsel %vm32, %v406, 0
  %v889 = vsel %vm32, %v420, 0
  %891 = vmatprep.subr.mxu0 0.0
  %892 = vmatpush1.xpose.msra.mxu0 %v889
  %893 = vmatprep.subr.mxu0 0.0
  %894 = vmatpush1.xpose.msra.mxu0 0.0
  %895 = vmatprep.subr.mxu0 0.0
  %896 = vmatpush1.xpose.msra.mxu0 0.0
  %897 = vmatprep.subr.mxu0 0.0
  %898 = vmatpush1.xpose.msra.mxu0 0.0
  %899 = vmatprep.subr.mxu0 0.0
  %900 = vmatpush1.xpose.msra.mxu0 0.0
  %901 = vmatprep.subr.mxu0 0.0
  %902 = vmatpush1.xpose.msra.mxu0 0.0
  %903 = vmatprep.subr.mxu0 0.0
  %904 = vmatpush1.xpose.msra.mxu0 0.0
  %905 = vmatprep.subr.mxu0 0.0
  %906 = vmatpush1.xpose.msra.mxu0 0.0
  %907 = vmatprep.subr.mxu0 0.0
  %908 = vmatpush1.xpose.msra.mxu0 0.0
  %909 = vmatprep.subr.mxu0 0.0
  %910 = vmatpush1.xpose.msra.mxu0 0.0
  %911 = vmatprep.subr.mxu0 0.0
  %912 = vmatpush1.xpose.msra.mxu0 0.0
  %913 = vmatprep.subr.mxu0 0.0
  %914 = vmatpush1.xpose.msra.mxu0 0.0
  %915 = vmatprep.subr.mxu0 0.0
  %916 = vmatpush1.xpose.msra.mxu0 0.0
  %917 = vmatprep.subr.mxu0 0.0
  %918 = vmatpush1.xpose.msra.mxu0 0.0
  %919 = vmatprep.subr.mxu0 0.0
  %920 = vmatpush1.xpose.msra.mxu0 0.0
  %921 = vmatprep.subr.mxu0 0.0
  %922 = vmatpush1.xpose.msra.mxu0 0.0
  %923 = vmatprep.subr.mxu0 0.0
  %924 = vmatpush1.xpose.msra.mxu0 0.0
  %925 = vmatprep.subr.mxu0 0.0
  %926 = vmatpush1.xpose.msra.mxu0 0.0
  %927 = vmatprep.subr.mxu0 0.0
  %928 = vmatpush1.xpose.msra.mxu0 0.0
  %929 = vmatprep.subr.mxu0 0.0
  %930 = vmatpush1.xpose.msra.mxu0 0.0
  %931 = vmatprep.subr.mxu0 0.0
  %932 = vmatpush1.xpose.msra.mxu0 0.0
  %933 = vmatprep.subr.mxu0 0.0
  %934 = vmatpush1.xpose.msra.mxu0 0.0
  %935 = vmatprep.subr.mxu0 0.0
  %936 = vmatpush1.xpose.msra.mxu0 0.0
  %937 = vmatprep.subr.mxu0 0.0
  %938 = vmatpush1.xpose.msra.mxu0 0.0
  %939 = vmatprep.subr.mxu0 0.0
  %940 = vmatpush1.xpose.msra.mxu0 0.0
  %941 = vmatprep.subr.mxu0 0.0
  %942 = vmatpush1.xpose.msra.mxu0 0.0
  %943 = vmatprep.subr.mxu0 0.0
  %944 = vmatpush1.xpose.msra.mxu0 0.0
  %945 = vmatprep.subr.mxu0 0.0
  %946 = vmatpush1.xpose.msra.mxu0 0.0
  %947 = vmatprep.subr.mxu0 0.0
  %948 = vmatpush1.xpose.msra.mxu0 0.0
  %949 = vmatprep.subr.mxu0 0.0
  %950 = vmatpush1.xpose.msra.mxu0 0.0
  %951 = vmatprep.subr.mxu0 0.0
  %952 = vmatpush1.xpose.msra.mxu0 0.0
  %953 = vmatprep.subr.mxu0 0.0
  %954 = vmatpush1.xpose.msra.mxu0 0.0
  %955 = vmatprep.mubr.f32.mxu0 0.0
  %956 = vmatmul.mubr.f32.gmra.mrb[0].mxu0 %v887
  %v957 = vpop.f32.mrb[0].mxu0
  %v958 = vadd.f32 0.0, %v957
  %v959 = vpop.f32.mrb[0].mxu0
  %960 = vdwg.mxu0
  %v961 = vsel %vm32, %v408, 0
  %v963 = vsel %vm32, %v422, 0
  %965 = vmatprep.subr.mxu0 0.0
  %966 = vmatpush1.xpose.msra.mxu0 %v963
  %967 = vmatprep.subr.mxu0 0.0
  %968 = vmatpush1.xpose.msra.mxu0 0.0
  %969 = vmatprep.subr.mxu0 0.0
  %970 = vmatpush1.xpose.msra.mxu0 0.0
  %971 = vmatprep.subr.mxu0 0.0
  %972 = vmatpush1.xpose.msra.mxu0 0.0
  %973 = vmatprep.subr.mxu0 0.0
  %974 = vmatpush1.xpose.msra.mxu0 0.0
  %975 = vmatprep.subr.mxu0 0.0
  %976 = vmatpush1.xpose.msra.mxu0 0.0
  %977 = vmatprep.subr.mxu0 0.0
  %978 = vmatpush1.xpose.msra.mxu0 0.0
  %979 = vmatprep.subr.mxu0 0.0
  %980 = vmatpush1.xpose.msra.mxu0 0.0
  %981 = vmatprep.subr.mxu0 0.0
  %982 = vmatpush1.xpose.msra.mxu0 0.0
  %983 = vmatprep.subr.mxu0 0.0
  %984 = vmatpush1.xpose.msra.mxu0 0.0
  %985 = vmatprep.subr.mxu0 0.0
  %986 = vmatpush1.xpose.msra.mxu0 0.0
  %987 = vmatprep.subr.mxu0 0.0
  %988 = vmatpush1.xpose.msra.mxu0 0.0
  %989 = vmatprep.subr.mxu0 0.0
  %990 = vmatpush1.xpose.msra.mxu0 0.0
  %991 = vmatprep.subr.mxu0 0.0
  %992 = vmatpush1.xpose.msra.mxu0 0.0
  %993 = vmatprep.subr.mxu0 0.0
  %994 = vmatpush1.xpose.msra.mxu0 0.0
  %995 = vmatprep.subr.mxu0 0.0
  %996 = vmatpush1.xpose.msra.mxu0 0.0
  %997 = vmatprep.subr.mxu0 0.0
  %998 = vmatpush1.xpose.msra.mxu0 0.0
  %999 = vmatprep.subr.mxu0 0.0
  %1000 = vmatpush1.xpose.msra.mxu0 0.0
  %1001 = vmatprep.subr.mxu0 0.0
  %1002 = vmatpush1.xpose.msra.mxu0 0.0
  %1003 = vmatprep.subr.mxu0 0.0
  %1004 = vmatpush1.xpose.msra.mxu0 0.0
  %1005 = vmatprep.subr.mxu0 0.0
  %1006 = vmatpush1.xpose.msra.mxu0 0.0
  %1007 = vmatprep.subr.mxu0 0.0
  %1008 = vmatpush1.xpose.msra.mxu0 0.0
  %1009 = vmatprep.subr.mxu0 0.0
  %1010 = vmatpush1.xpose.msra.mxu0 0.0
  %1011 = vmatprep.subr.mxu0 0.0
  %1012 = vmatpush1.xpose.msra.mxu0 0.0
  %1013 = vmatprep.subr.mxu0 0.0
  %1014 = vmatpush1.xpose.msra.mxu0 0.0
  %1015 = vmatprep.subr.mxu0 0.0
  %1016 = vmatpush1.xpose.msra.mxu0 0.0
  %1017 = vmatprep.subr.mxu0 0.0
  %1018 = vmatpush1.xpose.msra.mxu0 0.0
  %1019 = vmatprep.subr.mxu0 0.0
  %1020 = vmatpush1.xpose.msra.mxu0 0.0
  %1021 = vmatprep.subr.mxu0 0.0
  %1022 = vmatpush1.xpose.msra.mxu0 0.0
  %1023 = vmatprep.subr.mxu0 0.0
  %1024 = vmatpush1.xpose.msra.mxu0 0.0
  %1025 = vmatprep.subr.mxu0 0.0
  %1026 = vmatpush1.xpose.msra.mxu0 0.0
  %1027 = vmatprep.subr.mxu0 0.0
  %1028 = vmatpush1.xpose.msra.mxu0 0.0
  %1029 = vmatprep.mubr.f32.mxu0 0.0
  %1030 = vmatmul.mubr.f32.gmra.mrb[0].mxu0 %v961
  %v1031 = vpop.f32.mrb[0].mxu0
  %v1032 = vadd.f32 0.0, %v1031
  %v1033 = vpop.f32.mrb[0].mxu0
  %1034 = vdwg.mxu0
  %v1035 = vmul.f32 %v514, 0.25
  %v1036 = vmul.f32 %v588, 0.25
  %v1037 = vmul.f32 %v662, 0.25
  %v1038 = vmul.f32 %v736, 0.25
  %v1039 = vmul.f32 %v810, 0.25
  %v1040 = vmul.f32 %v884, 0.25
  %v1041 = vmul.f32 %v958, 0.25
  %v1042 = vmul.f32 %v1032, 0.25
  %vm1043 = vcmask 64512
  %v1044 = vsel %vm1043, %v1035, -inf
  %1045 = vmax.xlane.f32.xlu0 %v1044
  %v1046 = vpop.xlane.xlu0 %1045
  %v1047 = vsel %vm1043, %v1036, -inf
  %1048 = vmax.xlane.f32.xlu0 %v1047
  %v1049 = vpop.xlane.xlu0 %1048
  %v1050 = vsel %vm1043, %v1037, -inf
  %1051 = vmax.xlane.f32.xlu0 %v1050
  %v1052 = vpop.xlane.xlu0 %1051
  %v1053 = vsel %vm1043, %v1038, -inf
  %1054 = vmax.xlane.f32.xlu0 %v1053
  %v1055 = vpop.xlane.xlu0 %1054
  %v1056 = vsel %vm1043, %v1039, -inf
  %1057 = vmax.xlane.f32.xlu0 %v1056
  %v1058 = vpop.xlane.xlu0 %1057
  %v1059 = vsel %vm1043, %v1040, -inf
  %1060 = vmax.xlane.f32.xlu0 %v1059
  %v1061 = vpop.xlane.xlu0 %1060
  %v1062 = vsel %vm1043, %v1041, -inf
  %1063 = vmax.xlane.f32.xlu0 %v1062
  %v1064 = vpop.xlane.xlu0 %1063
  %v1065 = vsel %vm1043, %v1042, -inf
  %1066 = vmax.xlane.f32.xlu0 %v1065
  %v1067 = vpop.xlane.xlu0 %1066
  %v1068 = vsub.f32 %v1035, %v1046
  %v1069 = vsub.f32 %v1036, %v1049
  %v1070 = vsub.f32 %v1037, %v1052
  %v1071 = vsub.f32 %v1038, %v1055
  %v1072 = vsub.f32 %v1039, %v1058
  %v1073 = vsub.f32 %v1040, %v1061
  %v1074 = vsub.f32 %v1041, %v1064
  %v1075 = vsub.f32 %v1042, %v1067
  %v1076 = vmul.f32 %v1068, 1.442695
  %v1077 = vpow.pop %v1076
  %v1078 = vmul.f32 %v1069, 1.442695
  %v1079 = vpow.pop %v1078
  %v1080 = vmul.f32 %v1070, 1.442695
  %v1081 = vpow.pop %v1080
  %v1082 = vmul.f32 %v1071, 1.442695
  %v1083 = vpow.pop %v1082
  %v1084 = vmul.f32 %v1072, 1.442695
  %v1085 = vpow.pop %v1084
  %v1086 = vmul.f32 %v1073, 1.442695
  %v1087 = vpow.pop %v1086
  %v1088 = vmul.f32 %v1074, 1.442695
  %v1089 = vpow.pop %v1088
  %v1090 = vmul.f32 %v1075, 1.442695
  %v1091 = vpow.pop %v1090
  %v1092 = vsel %vm1043, %v1077, 0.0
  %1093 = vadd.xlane.f32.xlu0 %v1092
  %v1094 = vpop.xlane.xlu0 %1093
  %v1095 = vsel %vm1043, %v1079, 0.0
  %1096 = vadd.xlane.f32.xlu0 %v1095
  %v1097 = vpop.xlane.xlu0 %1096
  %v1098 = vsel %vm1043, %v1081, 0.0
  %1099 = vadd.xlane.f32.xlu0 %v1098
  %v1100 = vpop.xlane.xlu0 %1099
  %v1101 = vsel %vm1043, %v1083, 0.0
  %1102 = vadd.xlane.f32.xlu0 %v1101
  %v1103 = vpop.xlane.xlu0 %1102
  %v1104 = vsel %vm1043, %v1085, 0.0
  %1105 = vadd.xlane.f32.xlu0 %v1104
  %v1106 = vpop.xlane.xlu0 %1105
  %v1107 = vsel %vm1043, %v1087, 0.0
  %1108 = vadd.xlane.f32.xlu0 %v1107
  %v1109 = vpop.xlane.xlu0 %1108
  %v1110 = vsel %vm1043, %v1089, 0.0
  %1111 = vadd.xlane.f32.xlu0 %v1110
  %v1112 = vpop.xlane.xlu0 %1111
  %v1113 = vsel %vm1043, %v1091, 0.0
  %1114 = vadd.xlane.f32.xlu0 %v1113
  %v1115 = vpop.xlane.xlu0 %1114
  %v1116 = vrcp.pop %v1094
  %v1117 = vrcp.pop %v1097
  %v1118 = vrcp.pop %v1100
  %v1119 = vrcp.pop %v1103
  %v1120 = vrcp.pop %v1106
  %v1121 = vrcp.pop %v1109
  %v1122 = vrcp.pop %v1112
  %v1123 = vrcp.pop %v1115
  %v1124 = vmul.f32 %v1077, %v1116
  %v1125 = vmul.f32 %v1079, %v1117
  %v1126 = vmul.f32 %v1081, %v1118
  %v1127 = vmul.f32 %v1083, %v1119
  %v1128 = vmul.f32 %v1085, %v1120
  %v1129 = vmul.f32 %v1087, %v1121
  %v1130 = vmul.f32 %v1089, %v1122
  %v1131 = vmul.f32 %v1091, %v1123
  %v1133 = vsel %vm1043, %v1124, 0
  %1135 = vmatprep.subr.mxu0 0.0
  %1136 = vmatpush1.msra.mxu0 %v387
  %1137 = vmatprep.subr.mxu0 0.0
  %1138 = vmatpush1.msra.mxu0 0.0
  %1139 = vmatprep.subr.mxu0 0.0
  %1140 = vmatpush1.msra.mxu0 0.0
  %1141 = vmatprep.subr.mxu0 0.0
  %1142 = vmatpush1.msra.mxu0 0.0
  %1143 = vmatprep.subr.mxu0 0.0
  %1144 = vmatpush1.msra.mxu0 0.0
  %1145 = vmatprep.subr.mxu0 0.0
  %1146 = vmatpush1.msra.mxu0 0.0
  %1147 = vmatprep.subr.mxu0 0.0
  %1148 = vmatpush1.msra.mxu0 0.0
  %1149 = vmatprep.subr.mxu0 0.0
  %1150 = vmatpush1.msra.mxu0 0.0
  %1151 = vmatprep.subr.mxu0 0.0
  %1152 = vmatpush1.msra.mxu0 0.0
  %1153 = vmatprep.subr.mxu0 0.0
  %1154 = vmatpush1.msra.mxu0 0.0
  %1155 = vmatprep.subr.mxu0 0.0
  %1156 = vmatpush1.msra.mxu0 0.0
  %1157 = vmatprep.subr.mxu0 0.0
  %1158 = vmatpush1.msra.mxu0 0.0
  %1159 = vmatprep.subr.mxu0 0.0
  %1160 = vmatpush1.msra.mxu0 0.0
  %1161 = vmatprep.subr.mxu0 0.0
  %1162 = vmatpush1.msra.mxu0 0.0
  %1163 = vmatprep.subr.mxu0 0.0
  %1164 = vmatpush1.msra.mxu0 0.0
  %1165 = vmatprep.subr.mxu0 0.0
  %1166 = vmatpush1.msra.mxu0 0.0
  %1167 = vmatprep.subr.mxu0 0.0
  %1168 = vmatpush1.msra.mxu0 0.0
  %1169 = vmatprep.subr.mxu0 0.0
  %1170 = vmatpush1.msra.mxu0 0.0
  %1171 = vmatprep.subr.mxu0 0.0
  %1172 = vmatpush1.msra.mxu0 0.0
  %1173 = vmatprep.subr.mxu0 0.0
  %1174 = vmatpush1.msra.mxu0 0.0
  %1175 = vmatprep.subr.mxu0 0.0
  %1176 = vmatpush1.msra.mxu0 0.0
  %1177 = vmatprep.subr.mxu0 0.0
  %1178 = vmatpush1.msra.mxu0 0.0
  %1179 = vmatprep.subr.mxu0 0.0
  %1180 = vmatpush1.msra.mxu0 0.0
  %1181 = vmatprep.subr.mxu0 0.0
  %1182 = vmatpush1.msra.mxu0 0.0
  %1183 = vmatprep.subr.mxu0 0.0
  %1184 = vmatpush1.msra.mxu0 0.0
  %1185 = vmatprep.subr.mxu0 0.0
  %1186 = vmatpush1.msra.mxu0 0.0
  %1187 = vmatprep.subr.mxu0 0.0
  %1188 = vmatpush1.msra.mxu0 0.0
  %1189 = vmatprep.subr.mxu0 0.0
  %1190 = vmatpush1.msra.mxu0 0.0
  %1191 = vmatprep.subr.mxu0 0.0
  %1192 = vmatpush1.msra.mxu0 0.0
  %1193 = vmatprep.subr.mxu0 0.0
  %1194 = vmatpush1.msra.mxu0 0.0
  %1195 = vmatprep.subr.mxu0 0.0
  %1196 = vmatpush1.msra.mxu0 0.0
  %1197 = vmatprep.subr.mxu0 0.0
  %1198 = vmatpush1.msra.mxu0 0.0
  %1199 = vmatprep.mubr.f32.mxu0 0.0
  %1200 = vmatmul.mubr.f32.gmra.mrb[0].mxu0 %v1133
  %v1201 = vpop.f32.mrb[0].mxu0
  %v1202 = vadd.f32 0.0, %v1201
  %v1203 = vpop.f32.mrb[0].mxu0
  %1204 = vdwg.mxu0
  %v1206 = vsel %vm1043, %v1125, 0
  %1208 = vmatprep.subr.mxu0 0.0
  %1209 = vmatpush1.msra.mxu0 %v392
  %1210 = vmatprep.subr.mxu0 0.0
  %1211 = vmatpush1.msra.mxu0 0.0
  %1212 = vmatprep.subr.mxu0 0.0
  %1213 = vmatpush1.msra.mxu0 0.0
  %1214 = vmatprep.subr.mxu0 0.0
  %1215 = vmatpush1.msra.mxu0 0.0
  %1216 = vmatprep.subr.mxu0 0.0
  %1217 = vmatpush1.msra.mxu0 0.0
  %1218 = vmatprep.subr.mxu0 0.0
  %1219 = vmatpush1.msra.mxu0 0.0
  %1220 = vmatprep.subr.mxu0 0.0
  %1221 = vmatpush1.msra.mxu0 0.0
  %1222 = vmatprep.subr.mxu0 0.0
  %1223 = vmatpush1.msra.mxu0 0.0
  %1224 = vmatprep.subr.mxu0 0.0
  %1225 = vmatpush1.msra.mxu0 0.0
  %1226 = vmatprep.subr.mxu0 0.0
  %1227 = vmatpush1.msra.mxu0 0.0
  %1228 = vmatprep.subr.mxu0 0.0
  %1229 = vmatpush1.msra.mxu0 0.0
  %1230 = vmatprep.subr.mxu0 0.0
  %1231 = vmatpush1.msra.mxu0 0.0
  %1232 = vmatprep.subr.mxu0 0.0
  %1233 = vmatpush1.msra.mxu0 0.0
  %1234 = vmatprep.subr.mxu0 0.0
  %1235 = vmatpush1.msra.mxu0 0.0
  %1236 = vmatprep.subr.mxu0 0.0
  %1237 = vmatpush1.msra.mxu0 0.0
  %1238 = vmatprep.subr.mxu0 0.0
  %1239 = vmatpush1.msra.mxu0 0.0
  %1240 = vmatprep.subr.mxu0 0.0
  %1241 = vmatpush1.msra.mxu0 0.0
  %1242 = vmatprep.subr.mxu0 0.0
  %1243 = vmatpush1.msra.mxu0 0.0
  %1244 = vmatprep.subr.mxu0 0.0
  %1245 = vmatpush1.msra.mxu0 0.0
  %1246 = vmatprep.subr.mxu0 0.0
  %1247 = vmatpush1.msra.mxu0 0.0
  %1248 = vmatprep.subr.mxu0 0.0
  %1249 = vmatpush1.msra.mxu0 0.0
  %1250 = vmatprep.subr.mxu0 0.0
  %1251 = vmatpush1.msra.mxu0 0.0
  %1252 = vmatprep.subr.mxu0 0.0
  %1253 = vmatpush1.msra.mxu0 0.0
  %1254 = vmatprep.subr.mxu0 0.0
  %1255 = vmatpush1.msra.mxu0 0.0
  %1256 = vmatprep.subr.mxu0 0.0
  %1257 = vmatpush1.msra.mxu0 0.0
  %1258 = vmatprep.subr.mxu0 0.0
  %1259 = vmatpush1.msra.mxu0 0.0
  %1260 = vmatprep.subr.mxu0 0.0
  %1261 = vmatpush1.msra.mxu0 0.0
  %1262 = vmatprep.subr.mxu0 0.0
  %1263 = vmatpush1.msra.mxu0 0.0
  %1264 = vmatprep.subr.mxu0 0.0
  %1265 = vmatpush1.msra.mxu0 0.0
  %1266 = vmatprep.subr.mxu0 0.0
  %1267 = vmatpush1.msra.mxu0 0.0
  %1268 = vmatprep.subr.mxu0 0.0
  %1269 = vmatpush1.msra.mxu0 0.0
  %1270 = vmatprep.subr.mxu0 0.0
  %1271 = vmatpush1.msra.mxu0 0.0
  %1272 = vmatprep.mubr.f32.mxu0 0.0
  %1273 = vmatmul.mubr.f32.gmra.mrb[0].mxu0 %v1206
  %v1274 = vpop.f32.mrb[0].mxu0
  %v1275 = vadd.f32 0.0, %v1274
  %v1276 = vpop.f32.mrb[0].mxu0
  %1277 = vdwg.mxu0
  %v1279 = vsel %vm1043, %v1126, 0
  %1281 = vmatprep.subr.mxu0 0.0
  %1282 = vmatpush1.msra.mxu0 %v426
  %1283 = vmatprep.subr.mxu0 0.0
  %1284 = vmatpush1.msra.mxu0 0.0
  %1285 = vmatprep.subr.mxu0 0.0
  %1286 = vmatpush1.msra.mxu0 0.0
  %1287 = vmatprep.subr.mxu0 0.0
  %1288 = vmatpush1.msra.mxu0 0.0
  %1289 = vmatprep.subr.mxu0 0.0
  %1290 = vmatpush1.msra.mxu0 0.0
  %1291 = vmatprep.subr.mxu0 0.0
  %1292 = vmatpush1.msra.mxu0 0.0
  %1293 = vmatprep.subr.mxu0 0.0
  %1294 = vmatpush1.msra.mxu0 0.0
  %1295 = vmatprep.subr.mxu0 0.0
  %1296 = vmatpush1.msra.mxu0 0.0
  %1297 = vmatprep.subr.mxu0 0.0
  %1298 = vmatpush1.msra.mxu0 0.0
  %1299 = vmatprep.subr.mxu0 0.0
  %1300 = vmatpush1.msra.mxu0 0.0
  %1301 = vmatprep.subr.mxu0 0.0
  %1302 = vmatpush1.msra.mxu0 0.0
  %1303 = vmatprep.subr.mxu0 0.0
  %1304 = vmatpush1.msra.mxu0 0.0
  %1305 = vmatprep.subr.mxu0 0.0
  %1306 = vmatpush1.msra.mxu0 0.0
  %1307 = vmatprep.subr.mxu0 0.0
  %1308 = vmatpush1.msra.mxu0 0.0
  %1309 = vmatprep.subr.mxu0 0.0
  %1310 = vmatpush1.msra.mxu0 0.0
  %1311 = vmatprep.subr.mxu0 0.0
  %1312 = vmatpush1.msra.mxu0 0.0
  %1313 = vmatprep.subr.mxu0 0.0
  %1314 = vmatpush1.msra.mxu0 0.0
  %1315 = vmatprep.subr.mxu0 0.0
  %1316 = vmatpush1.msra.mxu0 0.0
  %1317 = vmatprep.subr.mxu0 0.0
  %1318 = vmatpush1.msra.mxu0 0.0
  %1319 = vmatprep.subr.mxu0 0.0
  %1320 = vmatpush1.msra.mxu0 0.0
  %1321 = vmatprep.subr.mxu0 0.0
  %1322 = vmatpush1.msra.mxu0 0.0
  %1323 = vmatprep.subr.mxu0 0.0
  %1324 = vmatpush1.msra.mxu0 0.0
  %1325 = vmatprep.subr.mxu0 0.0
  %1326 = vmatpush1.msra.mxu0 0.0
  %1327 = vmatprep.subr.mxu0 0.0
  %1328 = vmatpush1.msra.mxu0 0.0
  %1329 = vmatprep.subr.mxu0 0.0
  %1330 = vmatpush1.msra.mxu0 0.0
  %1331 = vmatprep.subr.mxu0 0.0
  %1332 = vmatpush1.msra.mxu0 0.0
  %1333 = vmatprep.subr.mxu0 0.0
  %1334 = vmatpush1.msra.mxu0 0.0
  %1335 = vmatprep.subr.mxu0 0.0
  %1336 = vmatpush1.msra.mxu0 0.0
  %1337 = vmatprep.subr.mxu0 0.0
  %1338 = vmatpush1.msra.mxu0 0.0
  %1339 = vmatprep.subr.mxu0 0.0
  %1340 = vmatpush1.msra.mxu0 0.0
  %1341 = vmatprep.subr.mxu0 0.0
  %1342 = vmatpush1.msra.mxu0 0.0
  %1343 = vmatprep.subr.mxu0 0.0
  %1344 = vmatpush1.msra.mxu0 0.0
  %1345 = vmatprep.mubr.f32.mxu0 0.0
  %1346 = vmatmul.mubr.f32.gmra.mrb[0].mxu0 %v1279
  %v1347 = vpop.f32.mrb[0].mxu0
  %v1348 = vadd.f32 0.0, %v1347
  %v1349 = vpop.f32.mrb[0].mxu0
  %1350 = vdwg.mxu0
  %v1352 = vsel %vm1043, %v1127, 0
  %1354 = vmatprep.subr.mxu0 0.0
  %1355 = vmatpush1.msra.mxu0 %v428
  %1356 = vmatprep.subr.mxu0 0.0
  %1357 = vmatpush1.msra.mxu0 0.0
  %1358 = vmatprep.subr.mxu0 0.0
  %1359 = vmatpush1.msra.mxu0 0.0
  %1360 = vmatprep.subr.mxu0 0.0
  %1361 = vmatpush1.msra.mxu0 0.0
  %1362 = vmatprep.subr.mxu0 0.0
  %1363 = vmatpush1.msra.mxu0 0.0
  %1364 = vmatprep.subr.mxu0 0.0
  %1365 = vmatpush1.msra.mxu0 0.0
  %1366 = vmatprep.subr.mxu0 0.0
  %1367 = vmatpush1.msra.mxu0 0.0
  %1368 = vmatprep.subr.mxu0 0.0
  %1369 = vmatpush1.msra.mxu0 0.0
  %1370 = vmatprep.subr.mxu0 0.0
  %1371 = vmatpush1.msra.mxu0 0.0
  %1372 = vmatprep.subr.mxu0 0.0
  %1373 = vmatpush1.msra.mxu0 0.0
  %1374 = vmatprep.subr.mxu0 0.0
  %1375 = vmatpush1.msra.mxu0 0.0
  %1376 = vmatprep.subr.mxu0 0.0
  %1377 = vmatpush1.msra.mxu0 0.0
  %1378 = vmatprep.subr.mxu0 0.0
  %1379 = vmatpush1.msra.mxu0 0.0
  %1380 = vmatprep.subr.mxu0 0.0
  %1381 = vmatpush1.msra.mxu0 0.0
  %1382 = vmatprep.subr.mxu0 0.0
  %1383 = vmatpush1.msra.mxu0 0.0
  %1384 = vmatprep.subr.mxu0 0.0
  %1385 = vmatpush1.msra.mxu0 0.0
  %1386 = vmatprep.subr.mxu0 0.0
  %1387 = vmatpush1.msra.mxu0 0.0
  %1388 = vmatprep.subr.mxu0 0.0
  %1389 = vmatpush1.msra.mxu0 0.0
  %1390 = vmatprep.subr.mxu0 0.0
  %1391 = vmatpush1.msra.mxu0 0.0
  %1392 = vmatprep.subr.mxu0 0.0
  %1393 = vmatpush1.msra.mxu0 0.0
  %1394 = vmatprep.subr.mxu0 0.0
  %1395 = vmatpush1.msra.mxu0 0.0
  %1396 = vmatprep.subr.mxu0 0.0
  %1397 = vmatpush1.msra.mxu0 0.0
  %1398 = vmatprep.subr.mxu0 0.0
  %1399 = vmatpush1.msra.mxu0 0.0
  %1400 = vmatprep.subr.mxu0 0.0
  %1401 = vmatpush1.msra.mxu0 0.0
  %1402 = vmatprep.subr.mxu0 0.0
  %1403 = vmatpush1.msra.mxu0 0.0
  %1404 = vmatprep.subr.mxu0 0.0
  %1405 = vmatpush1.msra.mxu0 0.0
  %1406 = vmatprep.subr.mxu0 0.0
  %1407 = vmatpush1.msra.mxu0 0.0
  %1408 = vmatprep.subr.mxu0 0.0
  %1409 = vmatpush1.msra.mxu0 0.0
  %1410 = vmatprep.subr.mxu0 0.0
  %1411 = vmatpush1.msra.mxu0 0.0
  %1412 = vmatprep.subr.mxu0 0.0
  %1413 = vmatpush1.msra.mxu0 0.0
  %1414 = vmatprep.subr.mxu0 0.0
  %1415 = vmatpush1.msra.mxu0 0.0
  %1416 = vmatprep.subr.mxu0 0.0
  %1417 = vmatpush1.msra.mxu0 0.0
  %1418 = vmatprep.mubr.f32.mxu0 0.0
  %1419 = vmatmul.mubr.f32.gmra.mrb[0].mxu0 %v1352
  %v1420 = vpop.f32.mrb[0].mxu0
  %v1421 = vadd.f32 0.0, %v1420
  %v1422 = vpop.f32.mrb[0].mxu0
  %1423 = vdwg.mxu0
  %v1425 = vsel %vm1043, %v1128, 0
  %1427 = vmatprep.subr.mxu0 0.0
  %1428 = vmatpush1.msra.mxu0 %v432
  %1429 = vmatprep.subr.mxu0 0.0
  %1430 = vmatpush1.msra.mxu0 0.0
  %1431 = vmatprep.subr.mxu0 0.0
  %1432 = vmatpush1.msra.mxu0 0.0
  %1433 = vmatprep.subr.mxu0 0.0
  %1434 = vmatpush1.msra.mxu0 0.0
  %1435 = vmatprep.subr.mxu0 0.0
  %1436 = vmatpush1.msra.mxu0 0.0
  %1437 = vmatprep.subr.mxu0 0.0
  %1438 = vmatpush1.msra.mxu0 0.0
  %1439 = vmatprep.subr.mxu0 0.0
  %1440 = vmatpush1.msra.mxu0 0.0
  %1441 = vmatprep.subr.mxu0 0.0
  %1442 = vmatpush1.msra.mxu0 0.0
  %1443 = vmatprep.subr.mxu0 0.0
  %1444 = vmatpush1.msra.mxu0 0.0
  %1445 = vmatprep.subr.mxu0 0.0
  %1446 = vmatpush1.msra.mxu0 0.0
  %1447 = vmatprep.subr.mxu0 0.0
  %1448 = vmatpush1.msra.mxu0 0.0
  %1449 = vmatprep.subr.mxu0 0.0
  %1450 = vmatpush1.msra.mxu0 0.0
  %1451 = vmatprep.subr.mxu0 0.0
  %1452 = vmatpush1.msra.mxu0 0.0
  %1453 = vmatprep.subr.mxu0 0.0
  %1454 = vmatpush1.msra.mxu0 0.0
  %1455 = vmatprep.subr.mxu0 0.0
  %1456 = vmatpush1.msra.mxu0 0.0
  %1457 = vmatprep.subr.mxu0 0.0
  %1458 = vmatpush1.msra.mxu0 0.0
  %1459 = vmatprep.subr.mxu0 0.0
  %1460 = vmatpush1.msra.mxu0 0.0
  %1461 = vmatprep.subr.mxu0 0.0
  %1462 = vmatpush1.msra.mxu0 0.0
  %1463 = vmatprep.subr.mxu0 0.0
  %1464 = vmatpush1.msra.mxu0 0.0
  %1465 = vmatprep.subr.mxu0 0.0
  %1466 = vmatpush1.msra.mxu0 0.0
  %1467 = vmatprep.subr.mxu0 0.0
  %1468 = vmatpush1.msra.mxu0 0.0
  %1469 = vmatprep.subr.mxu0 0.0
  %1470 = vmatpush1.msra.mxu0 0.0
  %1471 = vmatprep.subr.mxu0 0.0
  %1472 = vmatpush1.msra.mxu0 0.0
  %1473 = vmatprep.subr.mxu0 0.0
  %1474 = vmatpush1.msra.mxu0 0.0
  %1475 = vmatprep.subr.mxu0 0.0
  %1476 = vmatpush1.msra.mxu0 0.0
  %1477 = vmatprep.subr.mxu0 0.0
  %1478 = vmatpush1.msra.mxu0 0.0
  %1479 = vmatprep.subr.mxu0 0.0
  %1480 = vmatpush1.msra.mxu0 0.0
  %1481 = vmatprep.subr.mxu0 0.0
  %1482 = vmatpush1.msra.mxu0 0.0
  %1483 = vmatprep.subr.mxu0 0.0
  %1484 = vmatpush1.msra.mxu0 0.0
  %1485 = vmatprep.subr.mxu0 0.0
  %1486 = vmatpush1.msra.mxu0 0.0
  %1487 = vmatprep.subr.mxu0 0.0
  %1488 = vmatpush1.msra.mxu0 0.0
  %1489 = vmatprep.subr.mxu0 0.0
  %1490 = vmatpush1.msra.mxu0 0.0
  %1491 = vmatprep.mubr.f32.mxu0 0.0
  %1492 = vmatmul.mubr.f32.gmra.mrb[0].mxu0 %v1425
  %v1493 = vpop.f32.mrb[0].mxu0
  %v1494 = vadd.f32 0.0, %v1493
  %v1495 = vpop.f32.mrb[0].mxu0
  %1496 = vdwg.mxu0
  %v1498 = vsel %vm1043, %v1129, 0
  %1500 = vmatprep.subr.mxu0 0.0
  %1501 = vmatpush1.msra.mxu0 %v434
  %1502 = vmatprep.subr.mxu0 0.0
  %1503 = vmatpush1.msra.mxu0 0.0
  %1504 = vmatprep.subr.mxu0 0.0
  %1505 = vmatpush1.msra.mxu0 0.0
  %1506 = vmatprep.subr.mxu0 0.0
  %1507 = vmatpush1.msra.mxu0 0.0
  %1508 = vmatprep.subr.mxu0 0.0
  %1509 = vmatpush1.msra.mxu0 0.0
  %1510 = vmatprep.subr.mxu0 0.0
  %1511 = vmatpush1.msra.mxu0 0.0
  %1512 = vmatprep.subr.mxu0 0.0
  %1513 = vmatpush1.msra.mxu0 0.0
  %1514 = vmatprep.subr.mxu0 0.0
  %1515 = vmatpush1.msra.mxu0 0.0
  %1516 = vmatprep.subr.mxu0 0.0
  %1517 = vmatpush1.msra.mxu0 0.0
  %1518 = vmatprep.subr.mxu0 0.0
  %1519 = vmatpush1.msra.mxu0 0.0
  %1520 = vmatprep.subr.mxu0 0.0
  %1521 = vmatpush1.msra.mxu0 0.0
  %1522 = vmatprep.subr.mxu0 0.0
  %1523 = vmatpush1.msra.mxu0 0.0
  %1524 = vmatprep.subr.mxu0 0.0
  %1525 = vmatpush1.msra.mxu0 0.0
  %1526 = vmatprep.subr.mxu0 0.0
  %1527 = vmatpush1.msra.mxu0 0.0
  %1528 = vmatprep.subr.mxu0 0.0
  %1529 = vmatpush1.msra.mxu0 0.0
  %1530 = vmatprep.subr.mxu0 0.0
  %1531 = vmatpush1.msra.mxu0 0.0
  %1532 = vmatprep.subr.mxu0 0.0
  %1533 = vmatpush1.msra.mxu0 0.0
  %1534 = vmatprep.subr.mxu0 0.0
  %1535 = vmatpush1.msra.mxu0 0.0
  %1536 = vmatprep.subr.mxu0 0.0
  %1537 = vmatpush1.msra.mxu0 0.0
  %1538 = vmatprep.subr.mxu0 0.0
  %1539 = vmatpush1.msra.mxu0 0.0
  %1540 = vmatprep.subr.mxu0 0.0
  %1541 = vmatpush1.msra.mxu0 0.0
  %1542 = vmatprep.subr.mxu0 0.0
  %1543 = vmatpush1.msra.mxu0 0.0
  %1544 = vmatprep.subr.mxu0 0.0
  %1545 = vmatpush1.msra.mxu0 0.0
  %1546 = vmatprep.subr.mxu0 0.0
  %1547 = vmatpush1.msra.mxu0 0.0
  %1548 = vmatprep.subr.mxu0 0.0
  %1549 = vmatpush1.msra.mxu0 0.0
  %1550 = vmatprep.subr.mxu0 0.0
  %1551 = vmatpush1.msra.mxu0 0.0
  %1552 = vmatprep.subr.mxu0 0.0
  %1553 = vmatpush1.msra.mxu0 0.0
  %1554 = vmatprep.subr.mxu0 0.0
  %1555 = vmatpush1.msra.mxu0 0.0
  %1556 = vmatprep.subr.mxu0 0.0
  %1557 = vmatpush1.msra.mxu0 0.0
  %1558 = vmatprep.subr.mxu0 0.0
  %1559 = vmatpush1.msra.mxu0 0.0
  %1560 = vmatprep.subr.mxu0 0.0
  %1561 = vmatpush1.msra.mxu0 0.0
  %1562 = vmatprep.subr.mxu0 0.0
  %1563 = vmatpush1.msra.mxu0 0.0
  %1564 = vmatprep.mubr.f32.mxu0 0.0
  %1565 = vmatmul.mubr.f32.gmra.mrb[0].mxu0 %v1498
  %v1566 = vpop.f32.mrb[0].mxu0
  %v1567 = vadd.f32 0.0, %v1566
  %v1568 = vpop.f32.mrb[0].mxu0
  %1569 = vdwg.mxu0
  %v1571 = vsel %vm1043, %v1130, 0
  %1573 = vmatprep.subr.mxu0 0.0
  %1574 = vmatpush1.msra.mxu0 %v438
  %1575 = vmatprep.subr.mxu0 0.0
  %1576 = vmatpush1.msra.mxu0 0.0
  %1577 = vmatprep.subr.mxu0 0.0
  %1578 = vmatpush1.msra.mxu0 0.0
  %1579 = vmatprep.subr.mxu0 0.0
  %1580 = vmatpush1.msra.mxu0 0.0
  %1581 = vmatprep.subr.mxu0 0.0
  %1582 = vmatpush1.msra.mxu0 0.0
  %1583 = vmatprep.subr.mxu0 0.0
  %1584 = vmatpush1.msra.mxu0 0.0
  %1585 = vmatprep.subr.mxu0 0.0
  %1586 = vmatpush1.msra.mxu0 0.0
  %1587 = vmatprep.subr.mxu0 0.0
  %1588 = vmatpush1.msra.mxu0 0.0
  %1589 = vmatprep.subr.mxu0 0.0
  %1590 = vmatpush1.msra.mxu0 0.0
  %1591 = vmatprep.subr.mxu0 0.0
  %1592 = vmatpush1.msra.mxu0 0.0
  %1593 = vmatprep.subr.mxu0 0.0
  %1594 = vmatpush1.msra.mxu0 0.0
  %1595 = vmatprep.subr.mxu0 0.0
  %1596 = vmatpush1.msra.mxu0 0.0
  %1597 = vmatprep.subr.mxu0 0.0
  %1598 = vmatpush1.msra.mxu0 0.0
  %1599 = vmatprep.subr.mxu0 0.0
  %1600 = vmatpush1.msra.mxu0 0.0
  %1601 = vmatprep.subr.mxu0 0.0
  %1602 = vmatpush1.msra.mxu0 0.0
  %1603 = vmatprep.subr.mxu0 0.0
  %1604 = vmatpush1.msra.mxu0 0.0
  %1605 = vmatprep.subr.mxu0 0.0
  %1606 = vmatpush1.msra.mxu0 0.0
  %1607 = vmatprep.subr.mxu0 0.0
  %1608 = vmatpush1.msra.mxu0 0.0
  %1609 = vmatprep.subr.mxu0 0.0
  %1610 = vmatpush1.msra.mxu0 0.0
  %1611 = vmatprep.subr.mxu0 0.0
  %1612 = vmatpush1.msra.mxu0 0.0
  %1613 = vmatprep.subr.mxu0 0.0
  %1614 = vmatpush1.msra.mxu0 0.0
  %1615 = vmatprep.subr.mxu0 0.0
  %1616 = vmatpush1.msra.mxu0 0.0
  %1617 = vmatprep.subr.mxu0 0.0
  %1618 = vmatpush1.msra.mxu0 0.0
  %1619 = vmatprep.subr.mxu0 0.0
  %1620 = vmatpush1.msra.mxu0 0.0
  %1621 = vmatprep.subr.mxu0 0.0
  %1622 = vmatpush1.msra.mxu0 0.0
  %1623 = vmatprep.subr.mxu0 0.0
  %1624 = vmatpush1.msra.mxu0 0.0
  %1625 = vmatprep.subr.mxu0 0.0
  %1626 = vmatpush1.msra.mxu0 0.0
  %1627 = vmatprep.subr.mxu0 0.0
  %1628 = vmatpush1.msra.mxu0 0.0
  %1629 = vmatprep.subr.mxu0 0.0
  %1630 = vmatpush1.msra.mxu0 0.0
  %1631 = vmatprep.subr.mxu0 0.0
  %1632 = vmatpush1.msra.mxu0 0.0
  %1633 = vmatprep.subr.mxu0 0.0
  %1634 = vmatpush1.msra.mxu0 0.0
  %1635 = vmatprep.subr.mxu0 0.0
  %1636 = vmatpush1.msra.mxu0 0.0
  %1637 = vmatprep.mubr.f32.mxu0 0.0
  %1638 = vmatmul.mubr.f32.gmra.mrb[0].mxu0 %v1571
  %v1639 = vpop.f32.mrb[0].mxu0
  %v1640 = vadd.f32 0.0, %v1639
  %v1641 = vpop.f32.mrb[0].mxu0
  %1642 = vdwg.mxu0
  %v1644 = vsel %vm1043, %v1131, 0
  %1646 = vmatprep.subr.mxu0 0.0
  %1647 = vmatpush1.msra.mxu0 %v440
  %1648 = vmatprep.subr.mxu0 0.0
  %1649 = vmatpush1.msra.mxu0 0.0
  %1650 = vmatprep.subr.mxu0 0.0
  %1651 = vmatpush1.msra.mxu0 0.0
  %1652 = vmatprep.subr.mxu0 0.0
  %1653 = vmatpush1.msra.mxu0 0.0
  %1654 = vmatprep.subr.mxu0 0.0
  %1655 = vmatpush1.msra.mxu0 0.0
  %1656 = vmatprep.subr.mxu0 0.0
  %1657 = vmatpush1.msra.mxu0 0.0
  %1658 = vmatprep.subr.mxu0 0.0
  %1659 = vmatpush1.msra.mxu0 0.0
  %1660 = vmatprep.subr.mxu0 0.0
  %1661 = vmatpush1.msra.mxu0 0.0
  %1662 = vmatprep.subr.mxu0 0.0
  %1663 = vmatpush1.msra.mxu0 0.0
  %1664 = vmatprep.subr.mxu0 0.0
  %1665 = vmatpush1.msra.mxu0 0.0
  %1666 = vmatprep.subr.mxu0 0.0
  %1667 = vmatpush1.msra.mxu0 0.0
  %1668 = vmatprep.subr.mxu0 0.0
  %1669 = vmatpush1.msra.mxu0 0.0
  %1670 = vmatprep.subr.mxu0 0.0
  %1671 = vmatpush1.msra.mxu0 0.0
  %1672 = vmatprep.subr.mxu0 0.0
  %1673 = vmatpush1.msra.mxu0 0.0
  %1674 = vmatprep.subr.mxu0 0.0
  %1675 = vmatpush1.msra.mxu0 0.0
  %1676 = vmatprep.subr.mxu0 0.0
  %1677 = vmatpush1.msra.mxu0 0.0
  %1678 = vmatprep.subr.mxu0 0.0
  %1679 = vmatpush1.msra.mxu0 0.0
  %1680 = vmatprep.subr.mxu0 0.0
  %1681 = vmatpush1.msra.mxu0 0.0
  %1682 = vmatprep.subr.mxu0 0.0
  %1683 = vmatpush1.msra.mxu0 0.0
  %1684 = vmatprep.subr.mxu0 0.0
  %1685 = vmatpush1.msra.mxu0 0.0
  %1686 = vmatprep.subr.mxu0 0.0
  %1687 = vmatpush1.msra.mxu0 0.0
  %1688 = vmatprep.subr.mxu0 0.0
  %1689 = vmatpush1.msra.mxu0 0.0
  %1690 = vmatprep.subr.mxu0 0.0
  %1691 = vmatpush1.msra.mxu0 0.0
  %1692 = vmatprep.subr.mxu0 0.0
  %1693 = vmatpush1.msra.mxu0 0.0
  %1694 = vmatprep.subr.mxu0 0.0
  %1695 = vmatpush1.msra.mxu0 0.0
  %1696 = vmatprep.subr.mxu0 0.0
  %1697 = vmatpush1.msra.mxu0 0.0
  %1698 = vmatprep.subr.mxu0 0.0
  %1699 = vmatpush1.msra.mxu0 0.0
  %1700 = vmatprep.subr.mxu0 0.0
  %1701 = vmatpush1.msra.mxu0 0.0
  %1702 = vmatprep.subr.mxu0 0.0
  %1703 = vmatpush1.msra.mxu0 0.0
  %1704 = vmatprep.subr.mxu0 0.0
  %1705 = vmatpush1.msra.mxu0 0.0
  %1706 = vmatprep.subr.mxu0 0.0
  %1707 = vmatpush1.msra.mxu0 0.0
  %1708 = vmatprep.subr.mxu0 0.0
  %1709 = vmatpush1.msra.mxu0 0.0
  %1710 = vmatprep.mubr.f32.mxu0 0.0
  %1711 = vmatmul.mubr.f32.gmra.mrb[0].mxu0 %v1644
  %v1712 = vpop.f32.mrb[0].mxu0
  %v1713 = vadd.f32 0.0, %v1712
  %v1714 = vpop.f32.mrb[0].mxu0
  %1715 = vdwg.mxu0
  %1718 = vrot.lane.b32.xlu0 %v1348, 16
  %v1719 = vpop.permute.xlu0 %1718
  %1720 = vrot.lane.b32.xlu0 %v1421, 16
  %v1721 = vpop.permute.xlu0 %1720
  %1726 = vrot.lane.b32.xlu0 %v1494, 32
  %v1727 = vpop.permute.xlu0 %1726
  %1728 = vrot.lane.b32.xlu0 %v1567, 32
  %v1729 = vpop.permute.xlu0 %1728
  %1734 = vrot.lane.b32.xlu0 %v1640, 48
  %v1735 = vpop.permute.xlu0 %1734
  %1736 = vrot.lane.b32.xlu0 %v1713, 48
  %v1737 = vpop.permute.xlu0 %1736
  %v1740 = vsel %vm32, %v1202, %v1719
  %v1741 = vsel %vm32, %v1275, %v1721
  %vm1742 = vcmask 261120
  %v1743 = vsel %vm1742, %v1740, %v1727
  %v1744 = vsel %vm1742, %v1741, %v1729
  %vm1745 = vcmask 392192
  %v1746 = vsel %vm1745, %v1743, %v1735
  %v1747 = vsel %vm1745, %v1744, %v1737
  %v1748 = vlaneseq
  %v1749 = vshrl.u32 %v1748, 7
  %v1750 = vsub.s32 3, %v1749
  %v1751 = vrot.slane %v149, %v1750
  %v1753 = vsel %vm155, %v1746, 0
  %v1756 = vsel %vm155, %v1747, 0
  %1758 = vmatprep.subr.mxu0 0.0
  %1759 = vmatpush1.msra.mxu0 %v141
  %1760 = vmatprep.subr.mxu0 0.0
  %1761 = vmatpush1.msra.mxu0 %v142
  %1762 = vmatprep.subr.mxu0 0.0
  %1763 = vmatpush1.msra.mxu0 %v143
  %1764 = vmatprep.subr.mxu0 0.0
  %1765 = vmatpush1.msra.mxu0 %v144
  %1766 = vmatprep.subr.mxu0 0.0
  %1767 = vmatpush1.msra.mxu0 %v145
  %1768 = vmatprep.subr.mxu0 0.0
  %1769 = vmatpush1.msra.mxu0 %v146
  %1770 = vmatprep.subr.mxu0 0.0
  %1771 = vmatpush1.msra.mxu0 %v147
  %1772 = vmatprep.subr.mxu0 0.0
  %1773 = vmatpush1.msra.mxu0 %v148
  %1774 = vmatprep.subr.mxu0 0.0
  %1775 = vmatpush1.msra.mxu0 0.0
  %1776 = vmatprep.subr.mxu0 0.0
  %1777 = vmatpush1.msra.mxu0 0.0
  %1778 = vmatprep.subr.mxu0 0.0
  %1779 = vmatpush1.msra.mxu0 0.0
  %1780 = vmatprep.subr.mxu0 0.0
  %1781 = vmatpush1.msra.mxu0 0.0
  %1782 = vmatprep.subr.mxu0 0.0
  %1783 = vmatpush1.msra.mxu0 0.0
  %1784 = vmatprep.subr.mxu0 0.0
  %1785 = vmatpush1.msra.mxu0 0.0
  %1786 = vmatprep.subr.mxu0 0.0
  %1787 = vmatpush1.msra.mxu0 0.0
  %1788 = vmatprep.subr.mxu0 0.0
  %1789 = vmatpush1.msra.mxu0 0.0
  %1790 = vmatprep.subr.mxu0 0.0
  %1791 = vmatpush1.msra.mxu0 0.0
  %1792 = vmatprep.subr.mxu0 0.0
  %1793 = vmatpush1.msra.mxu0 0.0
  %1794 = vmatprep.subr.mxu0 0.0
  %1795 = vmatpush1.msra.mxu0 0.0
  %1796 = vmatprep.subr.mxu0 0.0
  %1797 = vmatpush1.msra.mxu0 0.0
  %1798 = vmatprep.subr.mxu0 0.0
  %1799 = vmatpush1.msra.mxu0 0.0
  %1800 = vmatprep.subr.mxu0 0.0
  %1801 = vmatpush1.msra.mxu0 0.0
  %1802 = vmatprep.subr.mxu0 0.0
  %1803 = vmatpush1.msra.mxu0 0.0
  %1804 = vmatprep.subr.mxu0 0.0
  %1805 = vmatpush1.msra.mxu0 0.0
  %1806 = vmatprep.subr.mxu0 0.0
  %1807 = vmatpush1.msra.mxu0 0.0
  %1808 = vmatprep.subr.mxu0 0.0
  %1809 = vmatpush1.msra.mxu0 0.0
  %1810 = vmatprep.subr.mxu0 0.0
  %1811 = vmatpush1.msra.mxu0 0.0
  %1812 = vmatprep.subr.mxu0 0.0
  %1813 = vmatpush1.msra.mxu0 0.0
  %1814 = vmatprep.subr.mxu0 0.0
  %1815 = vmatpush1.msra.mxu0 0.0
  %1816 = vmatprep.subr.mxu0 0.0
  %1817 = vmatpush1.msra.mxu0 0.0
  %1818 = vmatprep.subr.mxu0 0.0
  %1819 = vmatpush1.msra.mxu0 0.0
  %1820 = vmatprep.subr.mxu0 0.0
  %1821 = vmatpush1.msra.mxu0 0.0
  %1822 = vmatprep.mubr.f32.mxu0 0.0
  %1823 = vmatmul.mubr.f32.gmra.mrb[0].mxu0 %v1753
  %v1824 = vpop.f32.mrb[0].mxu0
  %v1825 = vadd.f32 %v1751, %v1824
  %v1826 = vpop.f32.mrb[0].mxu0
  %1827 = vmatprep.mubr.f32.mxu0 0.0
  %1828 = vmatmul.mubr.f32.gmra.mrb[0].mxu0 %v1756
  %v1829 = vpop.f32.mrb[0].mxu0
  %v1830 = vadd.f32 %v1751, %v1829
  %v1831 = vpop.f32.mrb[0].mxu0
  %1832 = vdwg.mxu0
  %v1833 = vadd.f32 %v106, %v1825
  %v1834 = vadd.f32 %v111, %v1830
  %v1835 = vsel %vm155, %v1833, 0.0
  %1836 = vadd.xlane.f32.xlu0 %v1835
  %v1837 = vpop.xlane.xlu0 %1836
  %v1838 = vsel %vm155, %v1834, 0.0
  %1839 = vadd.xlane.f32.xlu0 %v1838
  %v1840 = vpop.xlane.xlu0 %1839
  %v1841 = vrcp.pop 64.0
  %v1842 = vmul.f32 %v1837, %v1841
  %v1843 = vmul.f32 %v1840, %v1841
  %v1844 = vmul.f32 %v1833, %v1833
  %v1845 = vmul.f32 %v1834, %v1834
  %v1846 = vsel %vm155, %v1844, 0.0
  %1847 = vadd.xlane.f32.xlu0 %v1846
  %v1848 = vpop.xlane.xlu0 %1847
  %v1849 = vsel %vm155, %v1845, 0.0
  %1850 = vadd.xlane.f32.xlu0 %v1849
  %v1851 = vpop.xlane.xlu0 %1850
  %v1852 = vmul.f32 %v1848, %v1841
  %v1853 = vmul.f32 %v1851, %v1841
  %v1854 = vmul.f32 %v1842, %v1842
  %v1855 = vmul.f32 %v1843, %v1843
  %v1856 = vsub.f32 %v1852, %v1854
  %v1857 = vsub.f32 %v1853, %v1855
  %v1858 = vsub.f32 %v1833, %v1842
  %v1859 = vsub.f32 %v1834, %v1843
  %v1860 = vadd.f32 %v1856, 1e-05
  %v1861 = vadd.f32 %v1857, 1e-05
  %v1862 = vrsqrt.pop %v1860
  %v1863 = vrsqrt.pop %v1861
  %v1864 = vmul.f32 %v1858, %v1862
  %v1865 = vmul.f32 %v1859, %v1863
  %v1866 = vlaneseq
  %v1867 = vshrl.u32 %v1866, 7
  %v1868 = vsub.s32 5, %v1867
  %v1869 = vrot.slane %v149, %v1868
  %v1870 = vmul.f32 %v1864, %v1869
  %v1871 = vmul.f32 %v1865, %v1869
  %v1872 = vlaneseq
  %v1873 = vshrl.u32 %v1872, 7
  %v1874 = vsub.s32 6, %v1873
  %v1875 = vrot.slane %v149, %v1874
  %v1876 = vadd.f32 %v1870, %v1875
  %v1877 = vadd.f32 %v1871, %v1875
  %v1878 = vld [vmem:[%s3] sm:$0xff]
  %v1879 = vld [vmem:[%s3 + $0x8] sm:$0xff]
  %v1880 = vld [vmem:[%s3 + $0x10] sm:$0xff]
  %v1881 = vld [vmem:[%s3 + $0x18] sm:$0xff]
  %v1882 = vld [vmem:[%s3 + $0x20] sm:$0xff]
  %v1883 = vld [vmem:[%s3 + $0x28] sm:$0xff]
  %v1884 = vld [vmem:[%s3 + $0x30] sm:$0xff]
  %v1885 = vld [vmem:[%s3 + $0x38] sm:$0xff]
  %v1886 = vld [vmem:[%s3 + $0x40] sm:$0xff]
  %v1887 = vld [vmem:[%s3 + $0x48] sm:$0xff]
  %v1888 = vld [vmem:[%s3 + $0x50] sm:$0xff]
  %v1889 = vld [vmem:[%s3 + $0x58] sm:$0xff]
  %v1890 = vld [vmem:[%s3 + $0x60] sm:$0xff]
  %v1891 = vld [vmem:[%s3 + $0x68] sm:$0xff]
  %v1892 = vld [vmem:[%s3 + $0x70] sm:$0xff]
  %v1893 = vld [vmem:[%s3 + $0x78] sm:$0xff]
  %s1894 = scalar_lea.vmem %s3, 128
  %v1895 = vld [vmem:[%s1894] ss:$8 sm:$0x3]
  %v1897 = vlaneseq
  %v1898 = vshrl.u32 %v1897, 7
  %v1899 = vsub.s32 0, %v1898
  %v1900 = vrot.slane %v1895, %v1899
  %v1901 = vlaneseq
  %v1902 = vshrl.u32 %v1901, 7
  %v1903 = vsub.s32 1, %v1902
  %v1904 = vrot.slane %v1895, %v1903
  %v1908 = vsel %vm155, %v1876, 0
  %v1911 = vsel %vm155, %v1877, 0
  %1913 = vmatprep.subr.mxu0 %v1879
  %1914 = vmatpush1.msra.mxu0 %v1878
  %1915 = vmatprep.subr.mxu0 %v1881
  %1916 = vmatpush1.msra.mxu0 %v1880
  %1917 = vmatprep.subr.mxu0 %v1883
  %1918 = vmatpush1.msra.mxu0 %v1882
  %1919 = vmatprep.subr.mxu0 %v1885
  %1920 = vmatpush1.msra.mxu0 %v1884
  %1921 = vmatprep.subr.mxu0 %v1887
  %1922 = vmatpush1.msra.mxu0 %v1886
  %1923 = vmatprep.subr.mxu0 %v1889
  %1924 = vmatpush1.msra.mxu0 %v1888
  %1925 = vmatprep.subr.mxu0 %v1891
  %1926 = vmatpush1.msra.mxu0 %v1890
  %1927 = vmatprep.subr.mxu0 %v1893
  %1928 = vmatpush1.msra.mxu0 %v1892
  %1929 = vmatprep.subr.mxu0 0.0
  %1930 = vmatpush1.msra.mxu0 0.0
  %1931 = vmatprep.subr.mxu0 0.0
  %1932 = vmatpush1.msra.mxu0 0.0
  %1933 = vmatprep.subr.mxu0 0.0
  %1934 = vmatpush1.msra.mxu0 0.0
  %1935 = vmatprep.subr.mxu0 0.0
  %1936 = vmatpush1.msra.mxu0 0.0
  %1937 = vmatprep.subr.mxu0 0.0
  %1938 = vmatpush1.msra.mxu0 0.0
  %1939 = vmatprep.subr.mxu0 0.0
  %1940 = vmatpush1.msra.mxu0 0.0
  %1941 = vmatprep.subr.mxu0 0.0
  %1942 = vmatpush1.msra.mxu0 0.0
  %1943 = vmatprep.subr.mxu0 0.0
  %1944 = vmatpush1.msra.mxu0 0.0
  %1945 = vmatprep.subr.mxu0 0.0
  %1946 = vmatpush1.msra.mxu0 0.0
  %1947 = vmatprep.subr.mxu0 0.0
  %1948 = vmatpush1.msra.mxu0 0.0
  %1949 = vmatprep.subr.mxu0 0.0
  %1950 = vmatpush1.msra.mxu0 0.0
  %1951 = vmatprep.subr.mxu0 0.0
  %1952 = vmatpush1.msra.mxu0 0.0
  %1953 = vmatprep.subr.mxu0 0.0
  %1954 = vmatpush1.msra.mxu0 0.0
  %1955 = vmatprep.subr.mxu0 0.0
  %1956 = vmatpush1.msra.mxu0 0.0
  %1957 = vmatprep.subr.mxu0 0.0
  %1958 = vmatpush1.msra.mxu0 0.0
  %1959 = vmatprep.subr.mxu0 0.0
  %1960 = vmatpush1.msra.mxu0 0.0
  %1961 = vmatprep.subr.mxu0 0.0
  %1962 = vmatpush1.msra.mxu0 0.0
  %1963 = vmatprep.subr.mxu0 0.0
  %1964 = vmatpush1.msra.mxu0 0.0
  %1965 = vmatprep.subr.mxu0 0.0
  %1966 = vmatpush1.msra.mxu0 0.0
  %1967 = vmatprep.subr.mxu0 0.0
  %1968 = vmatpush1.msra.mxu0 0.0
  %1969 = vmatprep.subr.mxu0 0.0
  %1970 = vmatpush1.msra.mxu0 0.0
  %1971 = vmatprep.subr.mxu0 0.0
  %1972 = vmatpush1.msra.mxu0 0.0
  %1973 = vmatprep.subr.mxu0 0.0
  %1974 = vmatpush1.msra.mxu0 0.0
  %1975 = vmatprep.subr.mxu0 0.0
  %1976 = vmatpush1.msra.mxu0 0.0
  %1977 = vmatprep.mubr.f32.mxu0 0.0
  %1978 = vmatmul.mubr.f32.gmra.mrb[0].mxu0 %v1908
  %v1979 = vpop.f32.mrb[0].mxu0
  %v1980 = vadd.f32 %v1900, %v1979
  %v1981 = vpop.f32.mrb[0].mxu0
  %v1982 = vadd.f32 %v1904, %v1981
  %1983 = vmatprep.mubr.f32.mxu0 0.0
  %1984 = vmatmul.mubr.f32.gmra.mrb[0].mxu0 %v1911
  %v1985 = vpop.f32.mrb[0].mxu0
  %v1986 = vadd.f32 %v1900, %v1985
  %v1987 = vpop.f32.mrb[0].mxu0
  %v1988 = vadd.f32 %v1904, %v1987
  %1989 = vdwg.mxu0
  %v1990 = vmax.f32 %v1980, 0.0
  %v1991 = vmax.f32 %v1982, 0.0
  %v1992 = vmax.f32 %v1986, 0.0
  %v1993 = vmax.f32 %v1988, 0.0
  %v1994 = vld [vmem:[%s4] sm:$0xff]
  %v1995 = vld [vmem:[%s4 + $0x8] sm:$0xff]
  %v1996 = vld [vmem:[%s4 + $0x10] sm:$0xff]
  %v1997 = vld [vmem:[%s4 + $0x18] sm:$0xff]
  %v1998 = vld [vmem:[%s4 + $0x20] sm:$0xff]
  %v1999 = vld [vmem:[%s4 + $0x28] sm:$0xff]
  %v2000 = vld [vmem:[%s4 + $0x30] sm:$0xff]
  %v2001 = vld [vmem:[%s4 + $0x38] sm:$0xff]
  %v2002 = vld [vmem:[%s4 + $0x40] sm:$0xff]
  %v2003 = vld [vmem:[%s4 + $0x48] sm:$0xff]
  %v2004 = vld [vmem:[%s4 + $0x50] sm:$0xff]
  %v2005 = vld [vmem:[%s4 + $0x58] sm:$0xff]
  %v2006 = vld [vmem:[%s4 + $0x60] sm:$0xff]
  %v2007 = vld [vmem:[%s4 + $0x68] sm:$0xff]
  %v2008 = vld [vmem:[%s4 + $0x70] sm:$0xff]
  %v2009 = vld [vmem:[%s4 + $0x78] sm:$0xff]
  %v2010 = vld [vmem:[%s4 + $0x80] sm:$0xff]
  %v2011 = vld [vmem:[%s4 + $0x88] sm:$0xff]
  %v2012 = vld [vmem:[%s4 + $0x90] sm:$0xff]
  %v2013 = vld [vmem:[%s4 + $0x98] sm:$0xff]
  %v2014 = vld [vmem:[%s4 + $0xa0] sm:$0xff]
  %v2015 = vld [vmem:[%s4 + $0xa8] sm:$0xff]
  %v2016 = vld [vmem:[%s4 + $0xb0] sm:$0xff]
  %v2017 = vld [vmem:[%s4 + $0xb8] sm:$0xff]
  %v2018 = vld [vmem:[%s4 + $0xc0] sm:$0xff]
  %v2019 = vld [vmem:[%s4 + $0xc8] sm:$0xff]
  %v2020 = vld [vmem:[%s4 + $0xd0] sm:$0xff]
  %v2021 = vld [vmem:[%s4 + $0xd8] sm:$0xff]
  %v2022 = vld [vmem:[%s4 + $0xe0] sm:$0xff]
  %v2023 = vld [vmem:[%s4 + $0xe8] sm:$0xff]
  %v2024 = vld [vmem:[%s4 + $0xf0] sm:$0xff]
  %v2025 = vld [vmem:[%s4 + $0xf8] sm:$0xff]
  %v2026 = vlaneseq
  %v2027 = vshrl.u32 %v2026, 7
  %v2028 = vsub.s32 4, %v2027
  %v2029 = vrot.slane %v149, %v2028
  %2030 = vmatprep.subr.mxu0 0.0
  %2031 = vmatpush1.msra.mxu0 %v1994
  %2032 = vmatprep.subr.mxu0 0.0
  %2033 = vmatpush1.msra.mxu0 %v1995
  %2034 = vmatprep.subr.mxu0 0.0
  %2035 = vmatpush1.msra.mxu0 %v1996
  %2036 = vmatprep.subr.mxu0 0.0
  %2037 = vmatpush1.msra.mxu0 %v1997
  %2038 = vmatprep.subr.mxu0 0.0
  %2039 = vmatpush1.msra.mxu0 %v1998
  %2040 = vmatprep.subr.mxu0 0.0
  %2041 = vmatpush1.msra.mxu0 %v1999
  %2042 = vmatprep.subr.mxu0 0.0
  %2043 = vmatpush1.msra.mxu0 %v2000
  %2044 = vmatprep.subr.mxu0 0.0
  %2045 = vmatpush1.msra.mxu0 %v2001
  %2046 = vmatprep.subr.mxu0 0.0
  %2047 = vmatpush1.msra.mxu0 %v2002
  %2048 = vmatprep.subr.mxu0 0.0
  %2049 = vmatpush1.msra.mxu0 %v2003
  %2050 = vmatprep.subr.mxu0 0.0
  %2051 = vmatpush1.msra.mxu0 %v2004
  %2052 = vmatprep.subr.mxu0 0.0
  %2053 = vmatpush1.msra.mxu0 %v2005
  %2054 = vmatprep.subr.mxu0 0.0
  %2055 = vmatpush1.msra.mxu0 %v2006
  %2056 = vmatprep.subr.mxu0 0.0
  %2057 = vmatpush1.msra.mxu0 %v2007
  %2058 = vmatprep.subr.mxu0 0.0
  %2059 = vmatpush1.msra.mxu0 %v2008
  %2060 = vmatprep.subr.mxu0 0.0
  %2061 = vmatpush1.msra.mxu0 %v2009
  %2062 = vmatprep.subr.mxu0 0.0
  %2063 = vmatpush1.msra.mxu0 %v2010
  %2064 = vmatprep.subr.mxu0 0.0
  %2065 = vmatpush1.msra.mxu0 %v2011
  %2066 = vmatprep.subr.mxu0 0.0
  %2067 = vmatpush1.msra.mxu0 %v2012
  %2068 = vmatprep.subr.mxu0 0.0
  %2069 = vmatpush1.msra.mxu0 %v2013
  %2070 = vmatprep.subr.mxu0 0.0
  %2071 = vmatpush1.msra.mxu0 %v2014
  %2072 = vmatprep.subr.mxu0 0.0
  %2073 = vmatpush1.msra.mxu0 %v2015
  %2074 = vmatprep.subr.mxu0 0.0
  %2075 = vmatpush1.msra.mxu0 %v2016
  %2076 = vmatprep.subr.mxu0 0.0
  %2077 = vmatpush1.msra.mxu0 %v2017
  %2078 = vmatprep.subr.mxu0 0.0
  %2079 = vmatpush1.msra.mxu0 %v2018
  %2080 = vmatprep.subr.mxu0 0.0
  %2081 = vmatpush1.msra.mxu0 %v2019
  %2082 = vmatprep.subr.mxu0 0.0
  %2083 = vmatpush1.msra.mxu0 %v2020
  %2084 = vmatprep.subr.mxu0 0.0
  %2085 = vmatpush1.msra.mxu0 %v2021
  %2086 = vmatprep.subr.mxu0 0.0
  %2087 = vmatpush1.msra.mxu0 %v2022
  %2088 = vmatprep.subr.mxu0 0.0
  %2089 = vmatpush1.msra.mxu0 %v2023
  %2090 = vmatprep.subr.mxu0 0.0
  %2091 = vmatpush1.msra.mxu0 %v2024
  %2092 = vmatprep.subr.mxu0 0.0
  %2093 = vmatpush1.msra.mxu0 %v2025
  %2094 = vmatprep.mubr.f32.mxu0 %v1991
  %2095 = vmatmul.mubr.f32.gmra.mrb[0].mxu0 %v1990
  %v2096 = vpop.f32.mrb[0].mxu0
  %v2097 = vadd.f32 %v2029, %v2096
  %v2098 = vpop.f32.mrb[0].mxu0
  %2099 = vmatprep.mubr.f32.mxu0 %v1993
  %2100 = vmatmul.mubr.f32.gmra.mrb[0].mxu0 %v1992
  %v2101 = vpop.f32.mrb[0].mxu0
  %v2102 = vadd.f32 %v2029, %v2101
  %v2103 = vpop.f32.mrb[0].mxu0
  %2104 = vdwg.mxu0
  %v2105 = vadd.f32 %v1876, %v2097
  %v2106 = vadd.f32 %v1877, %v2102
  %v2107 = vsel %vm155, %v2105, 0.0
  %2108 = vadd.xlane.f32.xlu0 %v2107
  %v2109 = vpop.xlane.xlu0 %2108
  %v2110 = vsel %vm155, %v2106, 0.0
  %2111 = vadd.xlane.f32.xlu0 %v2110
  %v2112 = vpop.xlane.xlu0 %2111
  %v2113 = vmul.f32 %v2109, %v1841
  %v2114 = vmul.f32 %v2112, %v1841
  %v2115 = vmul.f32 %v2105, %v2105
  %v2116 = vmul.f32 %v2106, %v2106
  %v2117 = vsel %vm155, %v2115, 0.0
  %2118 = vadd.xlane.f32.xlu0 %v2117
  %v2119 = vpop.xlane.xlu0 %2118
  %v2120 = vsel %vm155, %v2116, 0.0
  %2121 = vadd.xlane.f32.xlu0 %v2120
  %v2122 = vpop.xlane.xlu0 %2121
  %v2123 = vmul.f32 %v2119, %v1841
  %v2124 = vmul.f32 %v2122, %v1841
  %v2125 = vmul.f32 %v2113, %v2113
  %v2126 = vmul.f32 %v2114, %v2114
  %v2127 = vsub.f32 %v2123, %v2125
  %v2128 = vsub.f32 %v2124, %v2126
  %v2129 = vsub.f32 %v2105, %v2113
  %v2130 = vsub.f32 %v2106, %v2114
  %v2131 = vadd.f32 %v2127, 1e-05
  %v2132 = vadd.f32 %v2128, 1e-05
  %v2133 = vrsqrt.pop %v2131
  %v2134 = vrsqrt.pop %v2132
  %v2135 = vmul.f32 %v2129, %v2133
  %v2136 = vmul.f32 %v2130, %v2134
  %v2137 = vlaneseq
  %v2138 = vshrl.u32 %v2137, 7
  %v2139 = vsub.s32 7, %v2138
  %v2140 = vrot.slane %v149, %v2139
  %v2141 = vmul.f32 %v2135, %v2140
  %v2142 = vmul.f32 %v2136, %v2140
  %v2143 = vlaneseq
  %v2144 = vshrl.u32 %v2143, 7
  %v2145 = vsub.s32 0, %v2144
  %v2146 = vrot.slane %v150, %v2145
  %v2147 = vadd.f32 %v2141, %v2146
  %v2148 = vadd.f32 %v2142, %v2146
  %s2149 = scalar_lea.vmem %s2, 256
  %v2150 = vld [vmem:[%s2149] sm:$0xff]
  %v2151 = vld [vmem:[%s2149 + $0x8] sm:$0xff]
  %v2152 = vld [vmem:[%s2149 + $0x10] sm:$0xff]
  %v2153 = vld [vmem:[%s2149 + $0x18] sm:$0xff]
  %v2154 = vld [vmem:[%s2149 + $0x20] sm:$0xff]
  %v2155 = vld [vmem:[%s2149 + $0x28] sm:$0xff]
  %v2156 = vld [vmem:[%s2149 + $0x30] sm:$0xff]
  %v2157 = vld [vmem:[%s2149 + $0x38] sm:$0xff]
  %s2158 = scalar_lea.vmem %s2, 320
  %v2159 = vld [vmem:[%s2158] sm:$0xff]
  %v2160 = vld [vmem:[%s2158 + $0x8] sm:$0xff]
  %v2161 = vld [vmem:[%s2158 + $0x10] sm:$0xff]
  %v2162 = vld [vmem:[%s2158 + $0x18] sm:$0xff]
  %v2163 = vld [vmem:[%s2158 + $0x20] sm:$0xff]
  %v2164 = vld [vmem:[%s2158 + $0x28] sm:$0xff]
  %v2165 = vld [vmem:[%s2158 + $0x30] sm:$0xff]
  %v2166 = vld [vmem:[%s2158 + $0x38] sm:$0xff]
  %s2167 = scalar_lea.vmem %s2, 384
  %v2168 = vld [vmem:[%s2167] sm:$0xff]
  %v2169 = vld [vmem:[%s2167 + $0x8] sm:$0xff]
  %v2170 = vld [vmem:[%s2167 + $0x10] sm:$0xff]
  %v2171 = vld [vmem:[%s2167 + $0x18] sm:$0xff]
  %v2172 = vld [vmem:[%s2167 + $0x20] sm:$0xff]
  %v2173 = vld [vmem:[%s2167 + $0x28] sm:$0xff]
  %v2174 = vld [vmem:[%s2167 + $0x30] sm:$0xff]
  %v2175 = vld [vmem:[%s2167 + $0x38] sm:$0xff]
  %s2176 = scalar_lea.vmem %s2, 448
  %v2177 = vld [vmem:[%s2176] sm:$0xff]
  %v2178 = vld [vmem:[%s2176 + $0x8] sm:$0xff]
  %v2179 = vld [vmem:[%s2176 + $0x10] sm:$0xff]
  %v2180 = vld [vmem:[%s2176 + $0x18] sm:$0xff]
  %v2181 = vld [vmem:[%s2176 + $0x20] sm:$0xff]
  %v2182 = vld [vmem:[%s2176 + $0x28] sm:$0xff]
  %v2183 = vld [vmem:[%s2176 + $0x30] sm:$0xff]
  %v2184 = vld [vmem:[%s2176 + $0x38] sm:$0xff]
  %s2185 = scalar_lea.vmem %s5, 16
  %v2186 = vld [vmem:[%s2185] sm:$0xff]
  %v2187 = vld [vmem:[%s2185 + $0x8] sm:$0x1]
  %v2188 = vlaneseq
  %v2189 = vshrl.u32 %v2188, 7
  %v2190 = vsub.s32 0, %v2189
  %v2191 = vrot.slane %v2186, %v2190
  %v2193 = vsel %vm155, %v2147, 0
  %v2196 = vsel %vm155, %v2148, 0
  %2198 = vmatprep.subr.mxu0 0.0
  %2199 = vmatpush1.msra.mxu0 %v2150
  %2200 = vmatprep.subr.mxu0 0.0
  %2201 = vmatpush1.msra.mxu0 %v2151
  %2202 = vmatprep.subr.mxu0 0.0
  %2203 = vmatpush1.msra.mxu0 %v2152
  %2204 = vmatprep.subr.mxu0 0.0
  %2205 = vmatpush1.msra.mxu0 %v2153
  %2206 = vmatprep.subr.mxu0 0.0
  %2207 = vmatpush1.msra.mxu0 %v2154
  %2208 = vmatprep.subr.mxu0 0.0
  %2209 = vmatpush1.msra.mxu0 %v2155
  %2210 = vmatprep.subr.mxu0 0.0
  %2211 = vmatpush1.msra.mxu0 %v2156
  %2212 = vmatprep.subr.mxu0 0.0
  %2213 = vmatpush1.msra.mxu0 %v2157
  %2214 = vmatprep.subr.mxu0 0.0
  %2215 = vmatpush1.msra.mxu0 0.0
  %2216 = vmatprep.subr.mxu0 0.0
  %2217 = vmatpush1.msra.mxu0 0.0
  %2218 = vmatprep.subr.mxu0 0.0
  %2219 = vmatpush1.msra.mxu0 0.0
  %2220 = vmatprep.subr.mxu0 0.0
  %2221 = vmatpush1.msra.mxu0 0.0
  %2222 = vmatprep.subr.mxu0 0.0
  %2223 = vmatpush1.msra.mxu0 0.0
  %2224 = vmatprep.subr.mxu0 0.0
  %2225 = vmatpush1.msra.mxu0 0.0
  %2226 = vmatprep.subr.mxu0 0.0
  %2227 = vmatpush1.msra.mxu0 0.0
  %2228 = vmatprep.subr.mxu0 0.0
  %2229 = vmatpush1.msra.mxu0 0.0
  %2230 = vmatprep.subr.mxu0 0.0
  %2231 = vmatpush1.msra.mxu0 0.0
  %2232 = vmatprep.subr.mxu0 0.0
  %2233 = vmatpush1.msra.mxu0 0.0
  %2234 = vmatprep.subr.mxu0 0.0
  %2235 = vmatpush1.msra.mxu0 0.0
  %2236 = vmatprep.subr.mxu0 0.0
  %2237 = vmatpush1.msra.mxu0 0.0
  %2238 = vmatprep.subr.mxu0 0.0
  %2239 = vmatpush1.msra.mxu0 0.0
  %2240 = vmatprep.subr.mxu0 0.0
  %2241 = vmatpush1.msra.mxu0 0.0
  %2242 = vmatprep.subr.mxu0 0.0
  %2243 = vmatpush1.msra.mxu0 0.0
  %2244 = vmatprep.subr.mxu0 0.0
  %2245 = vmatpush1.msra.mxu0 0.0
  %2246 = vmatprep.subr.mxu0 0.0
  %2247 = vmatpush1.msra.mxu0 0.0
  %2248 = vmatprep.subr.mxu0 0.0
  %2249 = vmatpush1.msra.mxu0 0.0
  %2250 = vmatprep.subr.mxu0 0.0
  %2251 = vmatpush1.msra.mxu0 0.0
  %2252 = vmatprep.subr.mxu0 0.0
  %2253 = vmatpush1.msra.mxu0 0.0
  %2254 = vmatprep.subr.mxu0 0.0
  %2255 = vmatpush1.msra.mxu0 0.0
  %2256 = vmatprep.subr.mxu0 0.0
  %2257 = vmatpush1.msra.mxu0 0.0
  %2258 = vmatprep.subr.mxu0 0.0
  %2259 = vmatpush1.msra.mxu0 0.0
  %2260 = vmatprep.subr.mxu0 0.0
  %2261 = vmatpush1.msra.mxu0 0.0
  %2262 = vmatprep.mubr.f32.mxu0 0.0
  %2263 = vmatmul.mubr.f32.gmra.mrb[0].mxu0 %v2193
  %v2264 = vpop.f32.mrb[0].mxu0
  %v2265 = vadd.f32 %v2191, %v2264
  %v2266 = vpop.f32.mrb[0].mxu0
  %2267 = vmatprep.mubr.f32.mxu0 0.0
  %2268 = vmatmul.mubr.f32.gmra.mrb[0].mxu0 %v2196
  %v2269 = vpop.f32.mrb[0].mxu0
  %v2270 = vadd.f32 %v2191, %v2269
  %v2271 = vpop.f32.mrb[0].mxu0
  %2272 = vdwg.mxu0
  %v2273 = vlaneseq
  %v2274 = vshrl.u32 %v2273, 7
  %v2275 = vsub.s32 1, %v2274
  %v2276 = vrot.slane %v2186, %v2275
  %2277 = vmatprep.subr.mxu0 0.0
  %2278 = vmatpush1.msra.mxu0 %v2159
  %2279 = vmatprep.subr.mxu0 0.0
  %2280 = vmatpush1.msra.mxu0 %v2160
  %2281 = vmatprep.subr.mxu0 0.0
  %2282 = vmatpush1.msra.mxu0 %v2161
  %2283 = vmatprep.subr.mxu0 0.0
  %2284 = vmatpush1.msra.mxu0 %v2162
  %2285 = vmatprep.subr.mxu0 0.0
  %2286 = vmatpush1.msra.mxu0 %v2163
  %2287 = vmatprep.subr.mxu0 0.0
  %2288 = vmatpush1.msra.mxu0 %v2164
  %2289 = vmatprep.subr.mxu0 0.0
  %2290 = vmatpush1.msra.mxu0 %v2165
  %2291 = vmatprep.subr.mxu0 0.0
  %2292 = vmatpush1.msra.mxu0 %v2166
  %2293 = vmatprep.subr.mxu0 0.0
  %2294 = vmatpush1.msra.mxu0 0.0
  %2295 = vmatprep.subr.mxu0 0.0
  %2296 = vmatpush1.msra.mxu0 0.0
  %2297 = vmatprep.subr.mxu0 0.0
  %2298 = vmatpush1.msra.mxu0 0.0
  %2299 = vmatprep.subr.mxu0 0.0
  %2300 = vmatpush1.msra.mxu0 0.0
  %2301 = vmatprep.subr.mxu0 0.0
  %2302 = vmatpush1.msra.mxu0 0.0
  %2303 = vmatprep.subr.mxu0 0.0
  %2304 = vmatpush1.msra.mxu0 0.0
  %2305 = vmatprep.subr.mxu0 0.0
  %2306 = vmatpush1.msra.mxu0 0.0
  %2307 = vmatprep.subr.mxu0 0.0
  %2308 = vmatpush1.msra.mxu0 0.0
  %2309 = vmatprep.subr.mxu0 0.0
  %2310 = vmatpush1.msra.mxu0 0.0
  %2311 = vmatprep.subr.mxu0 0.0
  %2312 = vmatpush1.msra.mxu0 0.0
  %2313 = vmatprep.subr.mxu0 0.0
  %2314 = vmatpush1.msra.mxu0 0.0
  %2315 = vmatprep.subr.mxu0 0.0
  %2316 = vmatpush1.msra.mxu0 0.0
  %2317 = vmatprep.subr.mxu0 0.0
  %2318 = vmatpush1.msra.mxu0 0.0
  %2319 = vmatprep.subr.mxu0 0.0
  %2320 = vmatpush1.msra.mxu0 0.0
  %2321 = vmatprep.subr.mxu0 0.0
  %2322 = vmatpush1.msra.mxu0 0.0
  %2323 = vmatprep.subr.mxu0 0.0
  %2324 = vmatpush1.msra.mxu0 0.0
  %2325 = vmatprep.subr.mxu0 0.0
  %2326 = vmatpush1.msra.mxu0 0.0
  %2327 = vmatprep.subr.mxu0 0.0
  %2328 = vmatpush1.msra.mxu0 0.0
  %2329 = vmatprep.subr.mxu0 0.0
  %2330 = vmatpush1.msra.mxu0 0.0
  %2331 = vmatprep.subr.mxu0 0.0
  %2332 = vmatpush1.msra.mxu0 0.0
  %2333 = vmatprep.subr.mxu0 0.0
  %2334 = vmatpush1.msra.mxu0 0.0
  %2335 = vmatprep.subr.mxu0 0.0
  %2336 = vmatpush1.msra.mxu0 0.0
  %2337 = vmatprep.subr.mxu0 0.0
  %2338 = vmatpush1.msra.mxu0 0.0
  %2339 = vmatprep.subr.mxu0 0.0
  %2340 = vmatpush1.msra.mxu0 0.0
  %2341 = vmatprep.mubr.f32.mxu0 0.0
  %2342 = vmatmul.mubr.f32.gmra.mrb[0].mxu0 %v2193
  %v2343 = vpop.f32.mrb[0].mxu0
  %v2344 = vadd.f32 %v2276, %v2343
  %v2345 = vpop.f32.mrb[0].mxu0
  %2346 = vmatprep.mubr.f32.mxu0 0.0
  %2347 = vmatmul.mubr.f32.gmra.mrb[0].mxu0 %v2196
  %v2348 = vpop.f32.mrb[0].mxu0
  %v2349 = vadd.f32 %v2276, %v2348
  %v2350 = vpop.f32.mrb[0].mxu0
  %2351 = vdwg.mxu0
  %v2352 = vlaneseq
  %v2353 = vshrl.u32 %v2352, 7
  %v2354 = vsub.s32 2, %v2353
  %v2355 = vrot.slane %v2186, %v2354
  %2356 = vmatprep.subr.mxu0 0.0
  %2357 = vmatpush1.msra.mxu0 %v2168
  %2358 = vmatprep.subr.mxu0 0.0
  %2359 = vmatpush1.msra.mxu0 %v2169
  %2360 = vmatprep.subr.mxu0 0.0
  %2361 = vmatpush1.msra.mxu0 %v2170
  %2362 = vmatprep.subr.mxu0 0.0
  %2363 = vmatpush1.msra.mxu0 %v2171
  %2364 = vmatprep.subr.mxu0 0.0
  %2365 = vmatpush1.msra.mxu0 %v2172
  %2366 = vmatprep.subr.mxu0 0.0
  %2367 = vmatpush1.msra.mxu0 %v2173
  %2368 = vmatprep.subr.mxu0 0.0
  %2369 = vmatpush1.msra.mxu0 %v2174
  %2370 = vmatprep.subr.mxu0 0.0
  %2371 = vmatpush1.msra.mxu0 %v2175
  %2372 = vmatprep.subr.mxu0 0.0
  %2373 = vmatpush1.msra.mxu0 0.0
  %2374 = vmatprep.subr.mxu0 0.0
  %2375 = vmatpush1.msra.mxu0 0.0
  %2376 = vmatprep.subr.mxu0 0.0
  %2377 = vmatpush1.msra.mxu0 0.0
  %2378 = vmatprep.subr.mxu0 0.0
  %2379 = vmatpush1.msra.mxu0 0.0
  %2380 = vmatprep.subr.mxu0 0.0
  %2381 = vmatpush1.msra.mxu0 0.0
  %2382 = vmatprep.subr.mxu0 0.0
  %2383 = vmatpush1.msra.mxu0 0.0
  %2384 = vmatprep.subr.mxu0 0.0
  %2385 = vmatpush1.msra.mxu0 0.0
  %2386 = vmatprep.subr.mxu0 0.0
  %2387 = vmatpush1.msra.mxu0 0.0
  %2388 = vmatprep.subr.mxu0 0.0
  %2389 = vmatpush1.msra.mxu0 0.0
  %2390 = vmatprep.subr.mxu0 0.0
  %2391 = vmatpush1.msra.mxu0 0.0
  %2392 = vmatprep.subr.mxu0 0.0
  %2393 = vmatpush1.msra.mxu0 0.0
  %2394 = vmatprep.subr.mxu0 0.0
  %2395 = vmatpush1.msra.mxu0 0.0
  %2396 = vmatprep.subr.mxu0 0.0
  %2397 = vmatpush1.msra.mxu0 0.0
  %2398 = vmatprep.subr.mxu0 0.0
  %2399 = vmatpush1.msra.mxu0 0.0
  %2400 = vmatprep.subr.mxu0 0.0
  %2401 = vmatpush1.msra.mxu0 0.0
  %2402 = vmatprep.subr.mxu0 0.0
  %2403 = vmatpush1.msra.mxu0 0.0
  %2404 = vmatprep.subr.mxu0 0.0
  %2405 = vmatpush1.msra.mxu0 0.0
  %2406 = vmatprep.subr.mxu0 0.0
  %2407 = vmatpush1.msra.mxu0 0.0
  %2408 = vmatprep.subr.mxu0 0.0
  %2409 = vmatpush1.msra.mxu0 0.0
  %2410 = vmatprep.subr.mxu0 0.0
  %2411 = vmatpush1.msra.mxu0 0.0
  %2412 = vmatprep.subr.mxu0 0.0
  %2413 = vmatpush1.msra.mxu0 0.0
  %2414 = vmatprep.subr.mxu0 0.0
  %2415 = vmatpush1.msra.mxu0 0.0
  %2416 = vmatprep.subr.mxu0 0.0
  %2417 = vmatpush1.msra.mxu0 0.0
  %2418 = vmatprep.subr.mxu0 0.0
  %2419 = vmatpush1.msra.mxu0 0.0
  %2420 = vmatprep.mubr.f32.mxu0 0.0
  %2421 = vmatmul.mubr.f32.gmra.mrb[0].mxu0 %v2193
  %v2422 = vpop.f32.mrb[0].mxu0
  %v2423 = vadd.f32 %v2355, %v2422
  %v2424 = vpop.f32.mrb[0].mxu0
  %2425 = vmatprep.mubr.f32.mxu0 0.0
  %2426 = vmatmul.mubr.f32.gmra.mrb[0].mxu0 %v2196
  %v2427 = vpop.f32.mrb[0].mxu0
  %v2428 = vadd.f32 %v2355, %v2427
  %v2429 = vpop.f32.mrb[0].mxu0
  %2430 = vdwg.mxu0
  %2433 = vrot.lane.b32.xlu0 %v2265, 112
  %v2434 = vpop.permute.xlu0 %2433
  %2435 = vrot.lane.b32.xlu0 %v2270, 112
  %v2436 = vpop.permute.xlu0 %2435
  %2437 = vrot.lane.b32.xlu0 %v2265, 96
  %v2438 = vpop.permute.xlu0 %2437
  %2439 = vrot.lane.b32.xlu0 %v2270, 96
  %v2440 = vpop.permute.xlu0 %2439
  %2441 = vrot.lane.b32.xlu0 %v2265, 80
  %v2442 = vpop.permute.xlu0 %2441
  %2443 = vrot.lane.b32.xlu0 %v2270, 80
  %v2444 = vpop.permute.xlu0 %2443
  %2447 = vrot.lane.b32.xlu0 %v2344, 112
  %v2448 = vpop.permute.xlu0 %2447
  %2449 = vrot.lane.b32.xlu0 %v2349, 112
  %v2450 = vpop.permute.xlu0 %2449
  %2451 = vrot.lane.b32.xlu0 %v2344, 96
  %v2452 = vpop.permute.xlu0 %2451
  %2453 = vrot.lane.b32.xlu0 %v2349, 96
  %v2454 = vpop.permute.xlu0 %2453
  %2455 = vrot.lane.b32.xlu0 %v2344, 80
  %v2456 = vpop.permute.xlu0 %2455
  %2457 = vrot.lane.b32.xlu0 %v2349, 80
  %v2458 = vpop.permute.xlu0 %2457
  %2461 = vrot.lane.b32.xlu0 %v2423, 112
  %v2462 = vpop.permute.xlu0 %2461
  %2463 = vrot.lane.b32.xlu0 %v2428, 112
  %v2464 = vpop.permute.xlu0 %2463
  %2467 = vrot.lane.b32.xlu0 %v2423, 96
  %v2468 = vpop.permute.xlu0 %2467
  %2469 = vrot.lane.b32.xlu0 %v2428, 96
  %v2470 = vpop.permute.xlu0 %2469
  %2473 = vrot.lane.b32.xlu0 %v2423, 80
  %v2474 = vpop.permute.xlu0 %2473
  %2475 = vrot.lane.b32.xlu0 %v2428, 80
  %v2476 = vpop.permute.xlu0 %2475
  %v2479 = vsel %vm32, %v2265, 0
  %v2481 = vsel %vm32, %v2344, 0
  %2483 = vmatprep.subr.mxu0 0.0
  %2484 = vmatpush1.xpose.msra.mxu0 %v2481
  %2485 = vmatprep.subr.mxu0 0.0
  %2486 = vmatpush1.xpose.msra.mxu0 0.0
  %2487 = vmatprep.subr.mxu0 0.0
  %2488 = vmatpush1.xpose.msra.mxu0 0.0
  %2489 = vmatprep.subr.mxu0 0.0
  %2490 = vmatpush1.xpose.msra.mxu0 0.0
  %2491 = vmatprep.subr.mxu0 0.0
  %2492 = vmatpush1.xpose.msra.mxu0 0.0
  %2493 = vmatprep.subr.mxu0 0.0
  %2494 = vmatpush1.xpose.msra.mxu0 0.0
  %2495 = vmatprep.subr.mxu0 0.0
  %2496 = vmatpush1.xpose.msra.mxu0 0.0
  %2497 = vmatprep.subr.mxu0 0.0
  %2498 = vmatpush1.xpose.msra.mxu0 0.0
  %2499 = vmatprep.subr.mxu0 0.0
  %2500 = vmatpush1.xpose.msra.mxu0 0.0
  %2501 = vmatprep.subr.mxu0 0.0
  %2502 = vmatpush1.xpose.msra.mxu0 0.0
  %2503 = vmatprep.subr.mxu0 0.0
  %2504 = vmatpush1.xpose.msra.mxu0 0.0
  %2505 = vmatprep.subr.mxu0 0.0
  %2506 = vmatpush1.xpose.msra.mxu0 0.0
  %2507 = vmatprep.subr.mxu0 0.0
  %2508 = vmatpush1.xpose.msra.mxu0 0.0
  %2509 = vmatprep.subr.mxu0 0.0
  %2510 = vmatpush1.xpose.msra.mxu0 0.0
  %2511 = vmatprep.subr.mxu0 0.0
  %2512 = vmatpush1.xpose.msra.mxu0 0.0
  %2513 = vmatprep.subr.mxu0 0.0
  %2514 = vmatpush1.xpose.msra.mxu0 0.0
  %2515 = vmatprep.subr.mxu0 0.0
  %2516 = vmatpush1.xpose.msra.mxu0 0.0
  %2517 = vmatprep.subr.mxu0 0.0
  %2518 = vmatpush1.xpose.msra.mxu0 0.0
  %2519 = vmatprep.subr.mxu0 0.0
  %2520 = vmatpush1.xpose.msra.mxu0 0.0
  %2521 = vmatprep.subr.mxu0 0.0
  %2522 = vmatpush1.xpose.msra.mxu0 0.0
  %2523 = vmatprep.subr.mxu0 0.0
  %2524 = vmatpush1.xpose.msra.mxu0 0.0
  %2525 = vmatprep.subr.mxu0 0.0
  %2526 = vmatpush1.xpose.msra.mxu0 0.0
  %2527 = vmatprep.subr.mxu0 0.0
  %2528 = vmatpush1.xpose.msra.mxu0 0.0
  %2529 = vmatprep.subr.mxu0 0.0
  %2530 = vmatpush1.xpose.msra.mxu0 0.0
  %2531 = vmatprep.subr.mxu0 0.0
  %2532 = vmatpush1.xpose.msra.mxu0 0.0
  %2533 = vmatprep.subr.mxu0 0.0
  %2534 = vmatpush1.xpose.msra.mxu0 0.0
  %2535 = vmatprep.subr.mxu0 0.0
  %2536 = vmatpush1.xpose.msra.mxu0 0.0
  %2537 = vmatprep.subr.mxu0 0.0
  %2538 = vmatpush1.xpose.msra.mxu0 0.0
  %2539 = vmatprep.subr.mxu0 0.0
  %2540 = vmatpush1.xpose.msra.mxu0 0.0
  %2541 = vmatprep.subr.mxu0 0.0
  %2542 = vmatpush1.xpose.msra.mxu0 0.0
  %2543 = vmatprep.subr.mxu0 0.0
  %2544 = vmatpush1.xpose.msra.mxu0 0.0
  %2545 = vmatprep.subr.mxu0 0.0
  %2546 = vmatpush1.xpose.msra.mxu0 0.0
  %2547 = vmatprep.mubr.f32.mxu0 0.0
  %2548 = vmatmul.mubr.f32.gmra.mrb[0].mxu0 %v2479
  %v2549 = vpop.f32.mrb[0].mxu0
  %v2550 = vadd.f32 0.0, %v2549
  %v2551 = vpop.f32.mrb[0].mxu0
  %2552 = vdwg.mxu0
  %v2553 = vsel %vm32, %v2270, 0
  %v2555 = vsel %vm32, %v2349, 0
  %2557 = vmatprep.subr.mxu0 0.0
  %2558 = vmatpush1.xpose.msra.mxu0 %v2555
  %2559 = vmatprep.subr.mxu0 0.0
  %2560 = vmatpush1.xpose.msra.mxu0 0.0
  %2561 = vmatprep.subr.mxu0 0.0
  %2562 = vmatpush1.xpose.msra.mxu0 0.0
  %2563 = vmatprep.subr.mxu0 0.0
  %2564 = vmatpush1.xpose.msra.mxu0 0.0
  %2565 = vmatprep.subr.mxu0 0.0
  %2566 = vmatpush1.xpose.msra.mxu0 0.0
  %2567 = vmatprep.subr.mxu0 0.0
  %2568 = vmatpush1.xpose.msra.mxu0 0.0
  %2569 = vmatprep.subr.mxu0 0.0
  %2570 = vmatpush1.xpose.msra.mxu0 0.0
  %2571 = vmatprep.subr.mxu0 0.0
  %2572 = vmatpush1.xpose.msra.mxu0 0.0
  %2573 = vmatprep.subr.mxu0 0.0
  %2574 = vmatpush1.xpose.msra.mxu0 0.0
  %2575 = vmatprep.subr.mxu0 0.0
  %2576 = vmatpush1.xpose.msra.mxu0 0.0
  %2577 = vmatprep.subr.mxu0 0.0
  %2578 = vmatpush1.xpose.msra.mxu0 0.0
  %2579 = vmatprep.subr.mxu0 0.0
  %2580 = vmatpush1.xpose.msra.mxu0 0.0
  %2581 = vmatprep.subr.mxu0 0.0
  %2582 = vmatpush1.xpose.msra.mxu0 0.0
  %2583 = vmatprep.subr.mxu0 0.0
  %2584 = vmatpush1.xpose.msra.mxu0 0.0
  %2585 = vmatprep.subr.mxu0 0.0
  %2586 = vmatpush1.xpose.msra.mxu0 0.0
  %2587 = vmatprep.subr.mxu0 0.0
  %2588 = vmatpush1.xpose.msra.mxu0 0.0
  %2589 = vmatprep.subr.mxu0 0.0
  %2590 = vmatpush1.xpose.msra.mxu0 0.0
  %2591 = vmatprep.subr.mxu0 0.0
  %2592 = vmatpush1.xpose.msra.mxu0 0.0
  %2593 = vmatprep.subr.mxu0 0.0
  %2594 = vmatpush1.xpose.msra.mxu0 0.0
  %2595 = vmatprep.subr.mxu0 0.0
  %2596 = vmatpush1.xpose.msra.mxu0 0.0
  %2597 = vmatprep.subr.mxu0 0.0
  %2598 = vmatpush1.xpose.msra.mxu0 0.0
  %2599 = vmatprep.subr.mxu0 0.0
  %2600 = vmatpush1.xpose.msra.mxu0 0.0
  %2601 = vmatprep.subr.mxu0 0.0
  %2602 = vmatpush1.xpose.msra.mxu0 0.0
  %2603 = vmatprep.subr.mxu0 0.0
  %2604 = vmatpush1.xpose.msra.mxu0 0.0
  %2605 = vmatprep.subr.mxu0 0.0
  %2606 = vmatpush1.xpose.msra.mxu0 0.0
  %2607 = vmatprep.subr.mxu0 0.0
  %2608 = vmatpush1.xpose.msra.mxu0 0.0
  %2609 = vmatprep.subr.mxu0 0.0
  %2610 = vmatpush1.xpose.msra.mxu0 0.0
  %2611 = vmatprep.subr.mxu0 0.0
  %2612 = vmatpush1.xpose.msra.mxu0 0.0
  %2613 = vmatprep.subr.mxu0 0.0
  %2614 = vmatpush1.xpose.msra.mxu0 0.0
  %2615 = vmatprep.subr.mxu0 0.0
  %2616 = vmatpush1.xpose.msra.mxu0 0.0
  %2617 = vmatprep.subr.mxu0 0.0
  %2618 = vmatpush1.xpose.msra.mxu0 0.0
  %2619 = vmatprep.subr.mxu0 0.0
  %2620 = vmatpush1.xpose.msra.mxu0 0.0
  %2621 = vmatprep.mubr.f32.mxu0 0.0
  %2622 = vmatmul.mubr.f32.gmra.mrb[0].mxu0 %v2553
  %v2623 = vpop.f32.mrb[0].mxu0
  %v2624 = vadd.f32 0.0, %v2623
  %v2625 = vpop.f32.mrb[0].mxu0
  %2626 = vdwg.mxu0
  %v2627 = vsel %vm32, %v2434, 0
  %v2629 = vsel %vm32, %v2448, 0
  %2631 = vmatprep.subr.mxu0 0.0
  %2632 = vmatpush1.xpose.msra.mxu0 %v2629
  %2633 = vmatprep.subr.mxu0 0.0
  %2634 = vmatpush1.xpose.msra.mxu0 0.0
  %2635 = vmatprep.subr.mxu0 0.0
  %2636 = vmatpush1.xpose.msra.mxu0 0.0
  %2637 = vmatprep.subr.mxu0 0.0
  %2638 = vmatpush1.xpose.msra.mxu0 0.0
  %2639 = vmatprep.subr.mxu0 0.0
  %2640 = vmatpush1.xpose.msra.mxu0 0.0
  %2641 = vmatprep.subr.mxu0 0.0
  %2642 = vmatpush1.xpose.msra.mxu0 0.0
  %2643 = vmatprep.subr.mxu0 0.0
  %2644 = vmatpush1.xpose.msra.mxu0 0.0
  %2645 = vmatprep.subr.mxu0 0.0
  %2646 = vmatpush1.xpose.msra.mxu0 0.0
  %2647 = vmatprep.subr.mxu0 0.0
  %2648 = vmatpush1.xpose.msra.mxu0 0.0
  %2649 = vmatprep.subr.mxu0 0.0
  %2650 = vmatpush1.xpose.msra.mxu0 0.0
  %2651 = vmatprep.subr.mxu0 0.0
  %2652 = vmatpush1.xpose.msra.mxu0 0.0
  %2653 = vmatprep.subr.mxu0 0.0
  %2654 = vmatpush1.xpose.msra.mxu0 0.0
  %2655 = vmatprep.subr.mxu0 0.0
  %2656 = vmatpush1.xpose.msra.mxu0 0.0
  %2657 = vmatprep.subr.mxu0 0.0
  %2658 = vmatpush1.xpose.msra.mxu0 0.0
  %2659 = vmatprep.subr.mxu0 0.0
  %2660 = vmatpush1.xpose.msra.mxu0 0.0
  %2661 = vmatprep.subr.mxu0 0.0
  %2662 = vmatpush1.xpose.msra.mxu0 0.0
  %2663 = vmatprep.subr.mxu0 0.0
  %2664 = vmatpush1.xpose.msra.mxu0 0.0
  %2665 = vmatprep.subr.mxu0 0.0
  %2666 = vmatpush1.xpose.msra.mxu0 0.0
  %2667 = vmatprep.subr.mxu0 0.0
  %2668 = vmatpush1.xpose.msra.mxu0 0.0
  %2669 = vmatprep.subr.mxu0 0.0
  %2670 = vmatpush1.xpose.msra.mxu0 0.0
  %2671 = vmatprep.subr.mxu0 0.0
  %2672 = vmatpush1.xpose.msra.mxu0 0.0
  %2673 = vmatprep.subr.mxu0 0.0
  %2674 = vmatpush1.xpose.msra.mxu0 0.0
  %2675 = vmatprep.subr.mxu0 0.0
  %2676 = vmatpush1.xpose.msra.mxu0 0.0
  %2677 = vmatprep.subr.mxu0 0.0
  %2678 = vmatpush1.xpose.msra.mxu0 0.0
  %2679 = vmatprep.subr.mxu0 0.0
  %2680 = vmatpush1.xpose.msra.mxu0 0.0
  %2681 = vmatprep.subr.mxu0 0.0
  %2682 = vmatpush1.xpose.msra.mxu0 0.0
  %2683 = vmatprep.subr.mxu0 0.0
  %2684 = vmatpush1.xpose.msra.mxu0 0.0
  %2685 = vmatprep.subr.mxu0 0.0
  %2686 = vmatpush1.xpose.msra.mxu0 0.0
  %2687 = vmatprep.subr.mxu0 0.0
  %2688 = vmatpush1.xpose.msra.mxu0 0.0
  %2689 = vmatprep.subr.mxu0 0.0
  %2690 = vmatpush1.xpose.msra.mxu0 0.0
  %2691 = vmatprep.subr.mxu0 0.0
  %2692 = vmatpush1.xpose.msra.mxu0 0.0
  %2693 = vmatprep.subr.mxu0 0.0
  %2694 = vmatpush1.xpose.msra.mxu0 0.0
  %2695 = vmatprep.mubr.f32.mxu0 0.0
  %2696 = vmatmul.mubr.f32.gmra.mrb[0].mxu0 %v2627
  %v2697 = vpop.f32.mrb[0].mxu0
  %v2698 = vadd.f32 0.0, %v2697
  %v2699 = vpop.f32.mrb[0].mxu0
  %2700 = vdwg.mxu0
  %v2701 = vsel %vm32, %v2436, 0
  %v2703 = vsel %vm32, %v2450, 0
  %2705 = vmatprep.subr.mxu0 0.0
  %2706 = vmatpush1.xpose.msra.mxu0 %v2703
  %2707 = vmatprep.subr.mxu0 0.0
  %2708 = vmatpush1.xpose.msra.mxu0 0.0
  %2709 = vmatprep.subr.mxu0 0.0
  %2710 = vmatpush1.xpose.msra.mxu0 0.0
  %2711 = vmatprep.subr.mxu0 0.0
  %2712 = vmatpush1.xpose.msra.mxu0 0.0
  %2713 = vmatprep.subr.mxu0 0.0
  %2714 = vmatpush1.xpose.msra.mxu0 0.0
  %2715 = vmatprep.subr.mxu0 0.0
  %2716 = vmatpush1.xpose.msra.mxu0 0.0
  %2717 = vmatprep.subr.mxu0 0.0
  %2718 = vmatpush1.xpose.msra.mxu0 0.0
  %2719 = vmatprep.subr.mxu0 0.0
  %2720 = vmatpush1.xpose.msra.mxu0 0.0
  %2721 = vmatprep.subr.mxu0 0.0
  %2722 = vmatpush1.xpose.msra.mxu0 0.0
  %2723 = vmatprep.subr.mxu0 0.0
  %2724 = vmatpush1.xpose.msra.mxu0 0.0
  %2725 = vmatprep.subr.mxu0 0.0
  %2726 = vmatpush1.xpose.msra.mxu0 0.0
  %2727 = vmatprep.subr.mxu0 0.0
  %2728 = vmatpush1.xpose.msra.mxu0 0.0
  %2729 = vmatprep.subr.mxu0 0.0
  %2730 = vmatpush1.xpose.msra.mxu0 0.0
  %2731 = vmatprep.subr.mxu0 0.0
  %2732 = vmatpush1.xpose.msra.mxu0 0.0
  %2733 = vmatprep.subr.mxu0 0.0
  %2734 = vmatpush1.xpose.msra.mxu0 0.0
  %2735 = vmatprep.subr.mxu0 0.0
  %2736 = vmatpush1.xpose.msra.mxu0 0.0
  %2737 = vmatprep.subr.mxu0 0.0
  %2738 = vmatpush1.xpose.msra.mxu0 0.0
  %2739 = vmatprep.subr.mxu0 0.0
  %2740 = vmatpush1.xpose.msra.mxu0 0.0
  %2741 = vmatprep.subr.mxu0 0.0
  %2742 = vmatpush1.xpose.msra.mxu0 0.0
  %2743 = vmatprep.subr.mxu0 0.0
  %2744 = vmatpush1.xpose.msra.mxu0 0.0
  %2745 = vmatprep.subr.mxu0 0.0
  %2746 = vmatpush1.xpose.msra.mxu0 0.0
  %2747 = vmatprep.subr.mxu0 0.0
  %2748 = vmatpush1.xpose.msra.mxu0 0.0
  %2749 = vmatprep.subr.mxu0 0.0
  %2750 = vmatpush1.xpose.msra.mxu0 0.0
  %2751 = vmatprep.subr.mxu0 0.0
  %2752 = vmatpush1.xpose.msra.mxu0 0.0
  %2753 = vmatprep.subr.mxu0 0.0
  %2754 = vmatpush1.xpose.msra.mxu0 0.0
  %2755 = vmatprep.subr.mxu0 0.0
  %2756 = vmatpush1.xpose.msra.mxu0 0.0
  %2757 = vmatprep.subr.mxu0 0.0
  %2758 = vmatpush1.xpose.msra.mxu0 0.0
  %2759 = vmatprep.subr.mxu0 0.0
  %2760 = vmatpush1.xpose.msra.mxu0 0.0
  %2761 = vmatprep.subr.mxu0 0.0
  %2762 = vmatpush1.xpose.msra.mxu0 0.0
  %2763 = vmatprep.subr.mxu0 0.0
  %2764 = vmatpush1.xpose.msra.mxu0 0.0
  %2765 = vmatprep.subr.mxu0 0.0
  %2766 = vmatpush1.xpose.msra.mxu0 0.0
  %2767 = vmatprep.subr.mxu0 0.0
  %2768 = vmatpush1.xpose.msra.mxu0 0.0
  %2769 = vmatprep.mubr.f32.mxu0 0.0
  %2770 = vmatmul.mubr.f32.gmra.mrb[0].mxu0 %v2701
  %v2771 = vpop.f32.mrb[0].mxu0
  %v2772 = vadd.f32 0.0, %v2771
  %v2773 = vpop.f32.mrb[0].mxu0
  %2774 = vdwg.mxu0
  %v2775 = vsel %vm32, %v2438, 0
  %v2777 = vsel %vm32, %v2452, 0
  %2779 = vmatprep.subr.mxu0 0.0
  %2780 = vmatpush1.xpose.msra.mxu0 %v2777
  %2781 = vmatprep.subr.mxu0 0.0
  %2782 = vmatpush1.xpose.msra.mxu0 0.0
  %2783 = vmatprep.subr.mxu0 0.0
  %2784 = vmatpush1.xpose.msra.mxu0 0.0
  %2785 = vmatprep.subr.mxu0 0.0
  %2786 = vmatpush1.xpose.msra.mxu0 0.0
  %2787 = vmatprep.subr.mxu0 0.0
  %2788 = vmatpush1.xpose.msra.mxu0 0.0
  %2789 = vmatprep.subr.mxu0 0.0
  %2790 = vmatpush1.xpose.msra.mxu0 0.0
  %2791 = vmatprep.subr.mxu0 0.0
  %2792 = vmatpush1.xpose.msra.mxu0 0.0
  %2793 = vmatprep.subr.mxu0 0.0
  %2794 = vmatpush1.xpose.msra.mxu0 0.0
  %2795 = vmatprep.subr.mxu0 0.0
  %2796 = vmatpush1.xpose.msra.mxu0 0.0
  %2797 = vmatprep.subr.mxu0 0.0
  %2798 = vmatpush1.xpose.msra.mxu0 0.0
  %2799 = vmatprep.subr.mxu0 0.0
  %2800 = vmatpush1.xpose.msra.mxu0 0.0
  %2801 = vmatprep.subr.mxu0 0.0
  %2802 = vmatpush1.xpose.msra.mxu0 0.0
  %2803 = vmatprep.subr.mxu0 0.0
  %2804 = vmatpush1.xpose.msra.mxu0 0.0
  %2805 = vmatprep.subr.mxu0 0.0
  %2806 = vmatpush1.xpose.msra.mxu0 0.0
  %2807 = vmatprep.subr.mxu0 0.0
  %2808 = vmatpush1.xpose.msra.mxu0 0.0
  %2809 = vmatprep.subr.mxu0 0.0
  %2810 = vmatpush1.xpose.msra.mxu0 0.0
  %2811 = vmatprep.subr.mxu0 0.0
  %2812 = vmatpush1.xpose.msra.mxu0 0.0
  %2813 = vmatprep.subr.mxu0 0.0
  %2814 = vmatpush1.xpose.msra.mxu0 0.0
  %2815 = vmatprep.subr.mxu0 0.0
  %2816 = vmatpush1.xpose.msra.mxu0 0.0
  %2817 = vmatprep.subr.mxu0 0.0
  %2818 = vmatpush1.xpose.msra.mxu0 0.0
  %2819 = vmatprep.subr.mxu0 0.0
  %2820 = vmatpush1.xpose.msra.mxu0 0.0
  %2821 = vmatprep.subr.mxu0 0.0
  %2822 = vmatpush1.xpose.msra.mxu0 0.0
  %2823 = vmatprep.subr.mxu0 0.0
  %2824 = vmatpush1.xpose.msra.mxu0 0.0
  %2825 = vmatprep.subr.mxu0 0.0
  %2826 = vmatpush1.xpose.msra.mxu0 0.0
  %2827 = vmatprep.subr.mxu0 0.0
  %2828 = vmatpush1.xpose.msra.mxu0 0.0
  %2829 = vmatprep.subr.mxu0 0.0
  %2830 = vmatpush1.xpose.msra.mxu0 0.0
  %2831 = vmatprep.subr.mxu0 0.0
  %2832 = vmatpush1.xpose.msra.mxu0 0.0
  %2833 = vmatprep.subr.mxu0 0.0
  %2834 = vmatpush1.xpose.msra.mxu0 0.0
  %2835 = vmatprep.subr.mxu0 0.0
  %2836 = vmatpush1.xpose.msra.mxu0 0.0
  %2837 = vmatprep.subr.mxu0 0.0
  %2838 = vmatpush1.xpose.msra.mxu0 0.0
  %2839 = vmatprep.subr.mxu0 0.0
  %2840 = vmatpush1.xpose.msra.mxu0 0.0
  %2841 = vmatprep.subr.mxu0 0.0
  %2842 = vmatpush1.xpose.msra.mxu0 0.0
  %2843 = vmatprep.mubr.f32.mxu0 0.0
  %2844 = vmatmul.mubr.f32.gmra.mrb[0].mxu0 %v2775
  %v2845 = vpop.f32.mrb[0].mxu0
  %v2846 = vadd.f32 0.0, %v2845
  %v2847 = vpop.f32.mrb[0].mxu0
  %2848 = vdwg.mxu0
  %v2849 = vsel %vm32, %v2440, 0
  %v2851 = vsel %vm32, %v2454, 0
  %2853 = vmatprep.subr.mxu0 0.0
  %2854 = vmatpush1.xpose.msra.mxu0 %v2851
  %2855 = vmatprep.subr.mxu0 0.0
  %2856 = vmatpush1.xpose.msra.mxu0 0.0
  %2857 = vmatprep.subr.mxu0 0.0
  %2858 = vmatpush1.xpose.msra.mxu0 0.0
  %2859 = vmatprep.subr.mxu0 0.0
  %2860 = vmatpush1.xpose.msra.mxu0 0.0
  %2861 = vmatprep.subr.mxu0 0.0
  %2862 = vmatpush1.xpose.msra.mxu0 0.0
  %2863 = vmatprep.subr.mxu0 0.0
  %2864 = vmatpush1.xpose.msra.mxu0 0.0
  %2865 = vmatprep.subr.mxu0 0.0
  %2866 = vmatpush1.xpose.msra.mxu0 0.0
  %2867 = vmatprep.subr.mxu0 0.0
  %2868 = vmatpush1.xpose.msra.mxu0 0.0
  %2869 = vmatprep.subr.mxu0 0.0
  %2870 = vmatpush1.xpose.msra.mxu0 0.0
  %2871 = vmatprep.subr.mxu0 0.0
  %2872 = vmatpush1.xpose.msra.mxu0 0.0
  %2873 = vmatprep.subr.mxu0 0.0
  %2874 = vmatpush1.xpose.msra.mxu0 0.0
  %2875 = vmatprep.subr.mxu0 0.0
  %2876 = vmatpush1.xpose.msra.mxu0 0.0
  %2877 = vmatprep.subr.mxu0 0.0
  %2878 = vmatpush1.xpose.msra.mxu0 0.0
  %2879 = vmatprep.subr.mxu0 0.0
  %2880 = vmatpush1.xpose.msra.mxu0 0.0
  %2881 = vmatprep.subr.mxu0 0.0
  %2882 = vmatpush1.xpose.msra.mxu0 0.0
  %2883 = vmatprep.subr.mxu0 0.0
  %2884 = vmatpush1.xpose.msra.mxu0 0.0
  %2885 = vmatprep.subr.mxu0 0.0
  %2886 = vmatpush1.xpose.msra.mxu0 0.0
  %2887 = vmatprep.subr.mxu0 0.0
  %2888 = vmatpush1.xpose.msra.mxu0 0.0
  %2889 = vmatprep.subr.mxu0 0.0
  %2890 = vmatpush1.xpose.msra.mxu0 0.0
  %2891 = vmatprep.subr.mxu0 0.0
  %2892 = vmatpush1.xpose.msra.mxu0 0.0
  %2893 = vmatprep.subr.mxu0 0.0
  %2894 = vmatpush1.xpose.msra.mxu0 0.0
  %2895 = vmatprep.subr.mxu0 0.0
  %2896 = vmatpush1.xpose.msra.mxu0 0.0
  %2897 = vmatprep.subr.mxu0 0.0
  %2898 = vmatpush1.xpose.msra.mxu0 0.0
  %2899 = vmatprep.subr.mxu0 0.0
  %2900 = vmatpush1.xpose.msra.mxu0 0.0
  %2901 = vmatprep.subr.mxu0 0.0
  %2902 = vmatpush1.xpose.msra.mxu0 0.0
  %2903 = vmatprep.subr.mxu0 0.0
  %2904 = vmatpush1.xpose.msra.mxu0 0.0
  %2905 = vmatprep.subr.mxu0 0.0
  %2906 = vmatpush1.xpose.msra.mxu0 0.0
  %2907 = vmatprep.subr.mxu0 0.0
  %2908 = vmatpush1.xpose.msra.mxu0 0.0
  %2909 = vmatprep.subr.mxu0 0.0
  %2910 = vmatpush1.xpose.msra.mxu0 0.0
  %2911 = vmatprep.subr.mxu0 0.0
  %2912 = vmatpush1.xpose.msra.mxu0 0.0
  %2913 = vmatprep.subr.mxu0 0.0
  %2914 = vmatpush1.xpose.msra.mxu0 0.0
  %2915 = vmatprep.subr.mxu0 0.0
  %2916 = vmatpush1.xpose.msra.mxu0 0.0
  %2917 = vmatprep.mubr.f32.mxu0 0.0
  %2918 = vmatmul.mubr.f32.gmra.mrb[0].mxu0 %v2849
  %v2919 = vpop.f32.mrb[0].mxu0
  %v2920 = vadd.f32 0.0, %v2919
  %v2921 = vpop.f32.mrb[0].mxu0
  %2922 = vdwg.mxu0
  %v2923 = vsel %vm32, %v2442, 0
  %v2925 = vsel %vm32, %v2456, 0
  %2927 = vmatprep.subr.mxu0 0.0
  %2928 = vmatpush1.xpose.msra.mxu0 %v2925
  %2929 = vmatprep.subr.mxu0 0.0
  %2930 = vmatpush1.xpose.msra.mxu0 0.0
  %2931 = vmatprep.subr.mxu0 0.0
  %2932 = vmatpush1.xpose.msra.mxu0 0.0
  %2933 = vmatprep.subr.mxu0 0.0
  %2934 = vmatpush1.xpose.msra.mxu0 0.0
  %2935 = vmatprep.subr.mxu0 0.0
  %2936 = vmatpush1.xpose.msra.mxu0 0.0
  %2937 = vmatprep.subr.mxu0 0.0
  %2938 = vmatpush1.xpose.msra.mxu0 0.0
  %2939 = vmatprep.subr.mxu0 0.0
  %2940 = vmatpush1.xpose.msra.mxu0 0.0
  %2941 = vmatprep.subr.mxu0 0.0
  %2942 = vmatpush1.xpose.msra.mxu0 0.0
  %2943 = vmatprep.subr.mxu0 0.0
  %2944 = vmatpush1.xpose.msra.mxu0 0.0
  %2945 = vmatprep.subr.mxu0 0.0
  %2946 = vmatpush1.xpose.msra.mxu0 0.0
  %2947 = vmatprep.subr.mxu0 0.0
  %2948 = vmatpush1.xpose.msra.mxu0 0.0
  %2949 = vmatprep.subr.mxu0 0.0
  %2950 = vmatpush1.xpose.msra.mxu0 0.0
  %2951 = vmatprep.subr.mxu0 0.0
  %2952 = vmatpush1.xpose.msra.mxu0 0.0
  %2953 = vmatprep.subr.mxu0 0.0
  %2954 = vmatpush1.xpose.msra.mxu0 0.0
  %2955 = vmatprep.subr.mxu0 0.0
  %2956 = vmatpush1.xpose.msra.mxu0 0.0
  %2957 = vmatprep.subr.mxu0 0.0
  %2958 = vmatpush1.xpose.msra.mxu0 0.0
  %2959 = vmatprep.subr.mxu0 0.0
  %2960 = vmatpush1.xpose.msra.mxu0 0.0
  %2961 = vmatprep.subr.mxu0 0.0
  %2962 = vmatpush1.xpose.msra.mxu0 0.0
  %2963 = vmatprep.subr.mxu0 0.0
  %2964 = vmatpush1.xpose.msra.mxu0 0.0
  %2965 = vmatprep.subr.mxu0 0.0
  %2966 = vmatpush1.xpose.msra.mxu0 0.0
  %2967 = vmatprep.subr.mxu0 0.0
  %2968 = vmatpush1.xpose.msra.mxu0 0.0
  %2969 = vmatprep.subr.mxu0 0.0
  %2970 = vmatpush1.xpose.msra.mxu0 0.0
  %2971 = vmatprep.subr.mxu0 0.0
  %2972 = vmatpush1.xpose.msra.mxu0 0.0
  %2973 = vmatprep.subr.mxu0 0.0
  %2974 = vmatpush1.xpose.msra.mxu0 0.0
  %2975 = vmatprep.subr.mxu0 0.0
  %2976 = vmatpush1.xpose.msra.mxu0 0.0
  %2977 = vmatprep.subr.mxu0 0.0
  %2978 = vmatpush1.xpose.msra.mxu0 0.0
  %2979 = vmatprep.subr.mxu0 0.0
  %2980 = vmatpush1.xpose.msra.mxu0 0.0
  %2981 = vmatprep.subr.mxu0 0.0
  %2982 = vmatpush1.xpose.msra.mxu0 0.0
  %2983 = vmatprep.subr.mxu0 0.0
  %2984 = vmatpush1.xpose.msra.mxu0 0.0
  %2985 = vmatprep.subr.mxu0 0.0
  %2986 = vmatpush1.xpose.msra.mxu0 0.0
  %2987 = vmatprep.subr.mxu0 0.0
  %2988 = vmatpush1.xpose.msra.mxu0 0.0
  %2989 = vmatprep.subr.mxu0 0.0
  %2990 = vmatpush1.xpose.msra.mxu0 0.0
  %2991 = vmatprep.mubr.f32.mxu0 0.0
  %2992 = vmatmul.mubr.f32.gmra.mrb[0].mxu0 %v2923
  %v2993 = vpop.f32.mrb[0].mxu0
  %v2994 = vadd.f32 0.0, %v2993
  %v2995 = vpop.f32.mrb[0].mxu0
  %2996 = vdwg.mxu0
  %v2997 = vsel %vm32, %v2444, 0
  %v2999 = vsel %vm32, %v2458, 0
  %3001 = vmatprep.subr.mxu0 0.0
  %3002 = vmatpush1.xpose.msra.mxu0 %v2999
  %3003 = vmatprep.subr.mxu0 0.0
  %3004 = vmatpush1.xpose.msra.mxu0 0.0
  %3005 = vmatprep.subr.mxu0 0.0
  %3006 = vmatpush1.xpose.msra.mxu0 0.0
  %3007 = vmatprep.subr.mxu0 0.0
  %3008 = vmatpush1.xpose.msra.mxu0 0.0
  %3009 = vmatprep.subr.mxu0 0.0
  %3010 = vmatpush1.xpose.msra.mxu0 0.0
  %3011 = vmatprep.subr.mxu0 0.0
  %3012 = vmatpush1.xpose.msra.mxu0 0.0
  %3013 = vmatprep.subr.mxu0 0.0
  %3014 = vmatpush1.xpose.msra.mxu0 0.0
  %3015 = vmatprep.subr.mxu0 0.0
  %3016 = vmatpush1.xpose.msra.mxu0 0.0
  %3017 = vmatprep.subr.mxu0 0.0
  %3018 = vmatpush1.xpose.msra.mxu0 0.0
  %3019 = vmatprep.subr.mxu0 0.0
  %3020 = vmatpush1.xpose.msra.mxu0 0.0
  %3021 = vmatprep.subr.mxu0 0.0
  %3022 = vmatpush1.xpose.msra.mxu0 0.0
  %3023 = vmatprep.subr.mxu0 0.0
  %3024 = vmatpush1.xpose.msra.mxu0 0.0
  %3025 = vmatprep.subr.mxu0 0.0
  %3026 = vmatpush1.xpose.msra.mxu0 0.0
  %3027 = vmatprep.subr.mxu0 0.0
  %3028 = vmatpush1.xpose.msra.mxu0 0.0
  %3029 = vmatprep.subr.mxu0 0.0
  %3030 = vmatpush1.xpose.msra.mxu0 0.0
  %3031 = vmatprep.subr.mxu0 0.0
  %3032 = vmatpush1.xpose.msra.mxu0 0.0
  %3033 = vmatprep.subr.mxu0 0.0
  %3034 = vmatpush1.xpose.msra.mxu0 0.0
  %3035 = vmatprep.subr.mxu0 0.0
  %3036 = vmatpush1.xpose.msra.mxu0 0.0
  %3037 = vmatprep.subr.mxu0 0.0
  %3038 = vmatpush1.xpose.msra.mxu0 0.0
  %3039 = vmatprep.subr.mxu0 0.0
  %3040 = vmatpush1.xpose.msra.mxu0 0.0
  %3041 = vmatprep.subr.mxu0 0.0
  %3042 = vmatpush1.xpose.msra.mxu0 0.0
  %3043 = vmatprep.subr.mxu0 0.0
  %3044 = vmatpush1.xpose.msra.mxu0 0.0
  %3045 = vmatprep.subr.mxu0 0.0
  %3046 = vmatpush1.xpose.msra.mxu0 0.0
  %3047 = vmatprep.subr.mxu0 0.0
  %3048 = vmatpush1.xpose.msra.mxu0 0.0
  %3049 = vmatprep.subr.mxu0 0.0
  %3050 = vmatpush1.xpose.msra.mxu0 0.0
  %3051 = vmatprep.subr.mxu0 0.0
  %3052 = vmatpush1.xpose.msra.mxu0 0.0
  %3053 = vmatprep.subr.mxu0 0.0
  %3054 = vmatpush1.xpose.msra.mxu0 0.0
  %3055 = vmatprep.subr.mxu0 0.0
  %3056 = vmatpush1.xpose.msra.mxu0 0.0
  %3057 = vmatprep.subr.mxu0 0.0
  %3058 = vmatpush1.xpose.msra.mxu0 0.0
  %3059 = vmatprep.subr.mxu0 0.0
  %3060 = vmatpush1.xpose.msra.mxu0 0.0
  %3061 = vmatprep.subr.mxu0 0.0
  %3062 = vmatpush1.xpose.msra.mxu0 0.0
  %3063 = vmatprep.subr.mxu0 0.0
  %3064 = vmatpush1.xpose.msra.mxu0 0.0
  %3065 = vmatprep.mubr.f32.mxu0 0.0
  %3066 = vmatmul.mubr.f32.gmra.mrb[0].mxu0 %v2997
  %v3067 = vpop.f32.mrb[0].mxu0
  %v3068 = vadd.f32 0.0, %v3067
  %v3069 = vpop.f32.mrb[0].mxu0
  %3070 = vdwg.mxu0
  %v3071 = vmul.f32 %v2550, 0.25
  %v3072 = vmul.f32 %v2624, 0.25
  %v3073 = vmul.f32 %v2698, 0.25
  %v3074 = vmul.f32 %v2772, 0.25
  %v3075 = vmul.f32 %v2846, 0.25
  %v3076 = vmul.f32 %v2920, 0.25
  %v3077 = vmul.f32 %v2994, 0.25
  %v3078 = vmul.f32 %v3068, 0.25
  %v3079 = vsel %vm1043, %v3071, -inf
  %3080 = vmax.xlane.f32.xlu0 %v3079
  %v3081 = vpop.xlane.xlu0 %3080
  %v3082 = vsel %vm1043, %v3072, -inf
  %3083 = vmax.xlane.f32.xlu0 %v3082
  %v3084 = vpop.xlane.xlu0 %3083
  %v3085 = vsel %vm1043, %v3073, -inf
  %3086 = vmax.xlane.f32.xlu0 %v3085
  %v3087 = vpop.xlane.xlu0 %3086
  %v3088 = vsel %vm1043, %v3074, -inf
  %3089 = vmax.xlane.f32.xlu0 %v3088
  %v3090 = vpop.xlane.xlu0 %3089
  %v3091 = vsel %vm1043, %v3075, -inf
  %3092 = vmax.xlane.f32.xlu0 %v3091
  %v3093 = vpop.xlane.xlu0 %3092
  %v3094 = vsel %vm1043, %v3076, -inf
  %3095 = vmax.xlane.f32.xlu0 %v3094
  %v3096 = vpop.xlane.xlu0 %3095
  %v3097 = vsel %vm1043, %v3077, -inf
  %3098 = vmax.xlane.f32.xlu0 %v3097
  %v3099 = vpop.xlane.xlu0 %3098
  %v3100 = vsel %vm1043, %v3078, -inf
  %3101 = vmax.xlane.f32.xlu0 %v3100
  %v3102 = vpop.xlane.xlu0 %3101
  %v3103 = vsub.f32 %v3071, %v3081
  %v3104 = vsub.f32 %v3072, %v3084
  %v3105 = vsub.f32 %v3073, %v3087
  %v3106 = vsub.f32 %v3074, %v3090
  %v3107 = vsub.f32 %v3075, %v3093
  %v3108 = vsub.f32 %v3076, %v3096
  %v3109 = vsub.f32 %v3077, %v3099
  %v3110 = vsub.f32 %v3078, %v3102
  %v3111 = vmul.f32 %v3103, 1.442695
  %v3112 = vpow.pop %v3111
  %v3113 = vmul.f32 %v3104, 1.442695
  %v3114 = vpow.pop %v3113
  %v3115 = vmul.f32 %v3105, 1.442695
  %v3116 = vpow.pop %v3115
  %v3117 = vmul.f32 %v3106, 1.442695
  %v3118 = vpow.pop %v3117
  %v3119 = vmul.f32 %v3107, 1.442695
  %v3120 = vpow.pop %v3119
  %v3121 = vmul.f32 %v3108, 1.442695
  %v3122 = vpow.pop %v3121
  %v3123 = vmul.f32 %v3109, 1.442695
  %v3124 = vpow.pop %v3123
  %v3125 = vmul.f32 %v3110, 1.442695
  %v3126 = vpow.pop %v3125
  %v3127 = vsel %vm1043, %v3112, 0.0
  %3128 = vadd.xlane.f32.xlu0 %v3127
  %v3129 = vpop.xlane.xlu0 %3128
  %v3130 = vsel %vm1043, %v3114, 0.0
  %3131 = vadd.xlane.f32.xlu0 %v3130
  %v3132 = vpop.xlane.xlu0 %3131
  %v3133 = vsel %vm1043, %v3116, 0.0
  %3134 = vadd.xlane.f32.xlu0 %v3133
  %v3135 = vpop.xlane.xlu0 %3134
  %v3136 = vsel %vm1043, %v3118, 0.0
  %3137 = vadd.xlane.f32.xlu0 %v3136
  %v3138 = vpop.xlane.xlu0 %3137
  %v3139 = vsel %vm1043, %v3120, 0.0
  %3140 = vadd.xlane.f32.xlu0 %v3139
  %v3141 = vpop.xlane.xlu0 %3140
  %v3142 = vsel %vm1043, %v3122, 0.0
  %3143 = vadd.xlane.f32.xlu0 %v3142
  %v3144 = vpop.xlane.xlu0 %3143
  %v3145 = vsel %vm1043, %v3124, 0.0
  %3146 = vadd.xlane.f32.xlu0 %v3145
  %v3147 = vpop.xlane.xlu0 %3146
  %v3148 = vsel %vm1043, %v3126, 0.0
  %3149 = vadd.xlane.f32.xlu0 %v3148
  %v3150 = vpop.xlane.xlu0 %3149
  %v3151 = vrcp.pop %v3129
  %v3152 = vrcp.pop %v3132
  %v3153 = vrcp.pop %v3135
  %v3154 = vrcp.pop %v3138
  %v3155 = vrcp.pop %v3141
  %v3156 = vrcp.pop %v3144
  %v3157 = vrcp.pop %v3147
  %v3158 = vrcp.pop %v3150
  %v3159 = vmul.f32 %v3112, %v3151
  %v3160 = vmul.f32 %v3114, %v3152
  %v3161 = vmul.f32 %v3116, %v3153
  %v3162 = vmul.f32 %v3118, %v3154
  %v3163 = vmul.f32 %v3120, %v3155
  %v3164 = vmul.f32 %v3122, %v3156
  %v3165 = vmul.f32 %v3124, %v3157
  %v3166 = vmul.f32 %v3126, %v3158
  %v3168 = vsel %vm1043, %v3159, 0
  %3170 = vmatprep.subr.mxu0 0.0
  %3171 = vmatpush1.msra.mxu0 %v2423
  %3172 = vmatprep.subr.mxu0 0.0
  %3173 = vmatpush1.msra.mxu0 0.0
  %3174 = vmatprep.subr.mxu0 0.0
  %3175 = vmatpush1.msra.mxu0 0.0
  %3176 = vmatprep.subr.mxu0 0.0
  %3177 = vmatpush1.msra.mxu0 0.0
  %3178 = vmatprep.subr.mxu0 0.0
  %3179 = vmatpush1.msra.mxu0 0.0
  %3180 = vmatprep.subr.mxu0 0.0
  %3181 = vmatpush1.msra.mxu0 0.0
  %3182 = vmatprep.subr.mxu0 0.0
  %3183 = vmatpush1.msra.mxu0 0.0
  %3184 = vmatprep.subr.mxu0 0.0
  %3185 = vmatpush1.msra.mxu0 0.0
  %3186 = vmatprep.subr.mxu0 0.0
  %3187 = vmatpush1.msra.mxu0 0.0
  %3188 = vmatprep.subr.mxu0 0.0
  %3189 = vmatpush1.msra.mxu0 0.0
  %3190 = vmatprep.subr.mxu0 0.0
  %3191 = vmatpush1.msra.mxu0 0.0
  %3192 = vmatprep.subr.mxu0 0.0
  %3193 = vmatpush1.msra.mxu0 0.0
  %3194 = vmatprep.subr.mxu0 0.0
  %3195 = vmatpush1.msra.mxu0 0.0
  %3196 = vmatprep.subr.mxu0 0.0
  %3197 = vmatpush1.msra.mxu0 0.0
  %3198 = vmatprep.subr.mxu0 0.0
  %3199 = vmatpush1.msra.mxu0 0.0
  %3200 = vmatprep.subr.mxu0 0.0
  %3201 = vmatpush1.msra.mxu0 0.0
  %3202 = vmatprep.subr.mxu0 0.0
  %3203 = vmatpush1.msra.mxu0 0.0
  %3204 = vmatprep.subr.mxu0 0.0
  %3205 = vmatpush1.msra.mxu0 0.0
  %3206 = vmatprep.subr.mxu0 0.0
  %3207 = vmatpush1.msra.mxu0 0.0
  %3208 = vmatprep.subr.mxu0 0.0
  %3209 = vmatpush1.msra.mxu0 0.0
  %3210 = vmatprep.subr.mxu0 0.0
  %3211 = vmatpush1.msra.mxu0 0.0
  %3212 = vmatprep.subr.mxu0 0.0
  %3213 = vmatpush1.msra.mxu0 0.0
  %3214 = vmatprep.subr.mxu0 0.0
  %3215 = vmatpush1.msra.mxu0 0.0
  %3216 = vmatprep.subr.mxu0 0.0
  %3217 = vmatpush1.msra.mxu0 0.0
  %3218 = vmatprep.subr.mxu0 0.0
  %3219 = vmatpush1.msra.mxu0 0.0
  %3220 = vmatprep.subr.mxu0 0.0
  %3221 = vmatpush1.msra.mxu0 0.0
  %3222 = vmatprep.subr.mxu0 0.0
  %3223 = vmatpush1.msra.mxu0 0.0
  %3224 = vmatprep.subr.mxu0 0.0
  %3225 = vmatpush1.msra.mxu0 0.0
  %3226 = vmatprep.subr.mxu0 0.0
  %3227 = vmatpush1.msra.mxu0 0.0
  %3228 = vmatprep.subr.mxu0 0.0
  %3229 = vmatpush1.msra.mxu0 0.0
  %3230 = vmatprep.subr.mxu0 0.0
  %3231 = vmatpush1.msra.mxu0 0.0
  %3232 = vmatprep.subr.mxu0 0.0
  %3233 = vmatpush1.msra.mxu0 0.0
  %3234 = vmatprep.mubr.f32.mxu0 0.0
  %3235 = vmatmul.mubr.f32.gmra.mrb[0].mxu0 %v3168
  %v3236 = vpop.f32.mrb[0].mxu0
  %v3237 = vadd.f32 0.0, %v3236
  %v3238 = vpop.f32.mrb[0].mxu0
  %3239 = vdwg.mxu0
  %v3241 = vsel %vm1043, %v3160, 0
  %3243 = vmatprep.subr.mxu0 0.0
  %3244 = vmatpush1.msra.mxu0 %v2428
  %3245 = vmatprep.subr.mxu0 0.0
  %3246 = vmatpush1.msra.mxu0 0.0
  %3247 = vmatprep.subr.mxu0 0.0
  %3248 = vmatpush1.msra.mxu0 0.0
  %3249 = vmatprep.subr.mxu0 0.0
  %3250 = vmatpush1.msra.mxu0 0.0
  %3251 = vmatprep.subr.mxu0 0.0
  %3252 = vmatpush1.msra.mxu0 0.0
  %3253 = vmatprep.subr.mxu0 0.0
  %3254 = vmatpush1.msra.mxu0 0.0
  %3255 = vmatprep.subr.mxu0 0.0
  %3256 = vmatpush1.msra.mxu0 0.0
  %3257 = vmatprep.subr.mxu0 0.0
  %3258 = vmatpush1.msra.mxu0 0.0
  %3259 = vmatprep.subr.mxu0 0.0
  %3260 = vmatpush1.msra.mxu0 0.0
  %3261 = vmatprep.subr.mxu0 0.0
  %3262 = vmatpush1.msra.mxu0 0.0
  %3263 = vmatprep.subr.mxu0 0.0
  %3264 = vmatpush1.msra.mxu0 0.0
  %3265 = vmatprep.subr.mxu0 0.0
  %3266 = vmatpush1.msra.mxu0 0.0
  %3267 = vmatprep.subr.mxu0 0.0
  %3268 = vmatpush1.msra.mxu0 0.0
  %3269 = vmatprep.subr.mxu0 0.0
  %3270 = vmatpush1.msra.mxu0 0.0
  %3271 = vmatprep.subr.mxu0 0.0
  %3272 = vmatpush1.msra.mxu0 0.0
  %3273 = vmatprep.subr.mxu0 0.0
  %3274 = vmatpush1.msra.mxu0 0.0
  %3275 = vmatprep.subr.mxu0 0.0
  %3276 = vmatpush1.msra.mxu0 0.0
  %3277 = vmatprep.subr.mxu0 0.0
  %3278 = vmatpush1.msra.mxu0 0.0
  %3279 = vmatprep.subr.mxu0 0.0
  %3280 = vmatpush1.msra.mxu0 0.0
  %3281 = vmatprep.subr.mxu0 0.0
  %3282 = vmatpush1.msra.mxu0 0.0
  %3283 = vmatprep.subr.mxu0 0.0
  %3284 = vmatpush1.msra.mxu0 0.0
  %3285 = vmatprep.subr.mxu0 0.0
  %3286 = vmatpush1.msra.mxu0 0.0
  %3287 = vmatprep.subr.mxu0 0.0
  %3288 = vmatpush1.msra.mxu0 0.0
  %3289 = vmatprep.subr.mxu0 0.0
  %3290 = vmatpush1.msra.mxu0 0.0
  %3291 = vmatprep.subr.mxu0 0.0
  %3292 = vmatpush1.msra.mxu0 0.0
  %3293 = vmatprep.subr.mxu0 0.0
  %3294 = vmatpush1.msra.mxu0 0.0
  %3295 = vmatprep.subr.mxu0 0.0
  %3296 = vmatpush1.msra.mxu0 0.0
  %3297 = vmatprep.subr.mxu0 0.0
  %3298 = vmatpush1.msra.mxu0 0.0
  %3299 = vmatprep.subr.mxu0 0.0
  %3300 = vmatpush1.msra.mxu0 0.0
  %3301 = vmatprep.subr.mxu0 0.0
  %3302 = vmatpush1.msra.mxu0 0.0
  %3303 = vmatprep.subr.mxu0 0.0
  %3304 = vmatpush1.msra.mxu0 0.0
  %3305 = vmatprep.subr.mxu0 0.0
  %3306 = vmatpush1.msra.mxu0 0.0
  %3307 = vmatprep.mubr.f32.mxu0 0.0
  %3308 = vmatmul.mubr.f32.gmra.mrb[0].mxu0 %v3241
  %v3309 = vpop.f32.mrb[0].mxu0
  %v3310 = vadd.f32 0.0, %v3309
  %v3311 = vpop.f32.mrb[0].mxu0
  %3312 = vdwg.mxu0
  %v3314 = vsel %vm1043, %v3161, 0
  %3316 = vmatprep.subr.mxu0 0.0
  %3317 = vmatpush1.msra.mxu0 %v2462
  %3318 = vmatprep.subr.mxu0 0.0
  %3319 = vmatpush1.msra.mxu0 0.0
  %3320 = vmatprep.subr.mxu0 0.0
  %3321 = vmatpush1.msra.mxu0 0.0
  %3322 = vmatprep.subr.mxu0 0.0
  %3323 = vmatpush1.msra.mxu0 0.0
  %3324 = vmatprep.subr.mxu0 0.0
  %3325 = vmatpush1.msra.mxu0 0.0
  %3326 = vmatprep.subr.mxu0 0.0
  %3327 = vmatpush1.msra.mxu0 0.0
  %3328 = vmatprep.subr.mxu0 0.0
  %3329 = vmatpush1.msra.mxu0 0.0
  %3330 = vmatprep.subr.mxu0 0.0
  %3331 = vmatpush1.msra.mxu0 0.0
  %3332 = vmatprep.subr.mxu0 0.0
  %3333 = vmatpush1.msra.mxu0 0.0
  %3334 = vmatprep.subr.mxu0 0.0
  %3335 = vmatpush1.msra.mxu0 0.0
  %3336 = vmatprep.subr.mxu0 0.0
  %3337 = vmatpush1.msra.mxu0 0.0
  %3338 = vmatprep.subr.mxu0 0.0
  %3339 = vmatpush1.msra.mxu0 0.0
  %3340 = vmatprep.subr.mxu0 0.0
  %3341 = vmatpush1.msra.mxu0 0.0
  %3342 = vmatprep.subr.mxu0 0.0
  %3343 = vmatpush1.msra.mxu0 0.0
  %3344 = vmatprep.subr.mxu0 0.0
  %3345 = vmatpush1.msra.mxu0 0.0
  %3346 = vmatprep.subr.mxu0 0.0
  %3347 = vmatpush1.msra.mxu0 0.0
  %3348 = vmatprep.subr.mxu0 0.0
  %3349 = vmatpush1.msra.mxu0 0.0
  %3350 = vmatprep.subr.mxu0 0.0
  %3351 = vmatpush1.msra.mxu0 0.0
  %3352 = vmatprep.subr.mxu0 0.0
  %3353 = vmatpush1.msra.mxu0 0.0
  %3354 = vmatprep.subr.mxu0 0.0
  %3355 = vmatpush1.msra.mxu0 0.0
  %3356 = vmatprep.subr.mxu0 0.0
  %3357 = vmatpush1.msra.mxu0 0.0
  %3358 = vmatprep.subr.mxu0 0.0
  %3359 = vmatpush1.msra.mxu0 0.0
  %3360 = vmatprep.subr.mxu0 0.0
  %3361 = vmatpush1.msra.mxu0 0.0
  %3362 = vmatprep.subr.mxu0 0.0
  %3363 = vmatpush1.msra.mxu0 0.0
  %3364 = vmatprep.subr.mxu0 0.0
  %3365 = vmatpush1.msra.mxu0 0.0
  %3366 = vmatprep.subr.mxu0 0.0
  %3367 = vmatpush1.msra.mxu0 0.0
  %3368 = vmatprep.subr.mxu0 0.0
  %3369 = vmatpush1.msra.mxu0 0.0
  %3370 = vmatprep.subr.mxu0 0.0
  %3371 = vmatpush1.msra.mxu0 0.0
  %3372 = vmatprep.subr.mxu0 0.0
  %3373 = vmatpush1.msra.mxu0 0.0
  %3374 = vmatprep.subr.mxu0 0.0
  %3375 = vmatpush1.msra.mxu0 0.0
  %3376 = vmatprep.subr.mxu0 0.0
  %3377 = vmatpush1.msra.mxu0 0.0
  %3378 = vmatprep.subr.mxu0 0.0
  %3379 = vmatpush1.msra.mxu0 0.0
  %3380 = vmatprep.mubr.f32.mxu0 0.0
  %3381 = vmatmul.mubr.f32.gmra.mrb[0].mxu0 %v3314
  %v3382 = vpop.f32.mrb[0].mxu0
  %v3383 = vadd.f32 0.0, %v3382
  %v3384 = vpop.f32.mrb[0].mxu0
  %3385 = vdwg.mxu0
  %v3387 = vsel %vm1043, %v3162, 0
  %3389 = vmatprep.subr.mxu0 0.0
  %3390 = vmatpush1.msra.mxu0 %v2464
  %3391 = vmatprep.subr.mxu0 0.0
  %3392 = vmatpush1.msra.mxu0 0.0
  %3393 = vmatprep.subr.mxu0 0.0
  %3394 = vmatpush1.msra.mxu0 0.0
  %3395 = vmatprep.subr.mxu0 0.0
  %3396 = vmatpush1.msra.mxu0 0.0
  %3397 = vmatprep.subr.mxu0 0.0
  %3398 = vmatpush1.msra.mxu0 0.0
  %3399 = vmatprep.subr.mxu0 0.0
  %3400 = vmatpush1.msra.mxu0 0.0
  %3401 = vmatprep.subr.mxu0 0.0
  %3402 = vmatpush1.msra.mxu0 0.0
  %3403 = vmatprep.subr.mxu0 0.0
  %3404 = vmatpush1.msra.mxu0 0.0
  %3405 = vmatprep.subr.mxu0 0.0
  %3406 = vmatpush1.msra.mxu0 0.0
  %3407 = vmatprep.subr.mxu0 0.0
  %3408 = vmatpush1.msra.mxu0 0.0
  %3409 = vmatprep.subr.mxu0 0.0
  %3410 = vmatpush1.msra.mxu0 0.0
  %3411 = vmatprep.subr.mxu0 0.0
  %3412 = vmatpush1.msra.mxu0 0.0
  %3413 = vmatprep.subr.mxu0 0.0
  %3414 = vmatpush1.msra.mxu0 0.0
  %3415 = vmatprep.subr.mxu0 0.0
  %3416 = vmatpush1.msra.mxu0 0.0
  %3417 = vmatprep.subr.mxu0 0.0
  %3418 = vmatpush1.msra.mxu0 0.0
  %3419 = vmatprep.subr.mxu0 0.0
  %3420 = vmatpush1.msra.mxu0 0.0
  %3421 = vmatprep.subr.mxu0 0.0
  %3422 = vmatpush1.msra.mxu0 0.0
  %3423 = vmatprep.subr.mxu0 0.0
  %3424 = vmatpush1.msra.mxu0 0.0
  %3425 = vmatprep.subr.mxu0 0.0
  %3426 = vmatpush1.msra.mxu0 0.0
  %3427 = vmatprep.subr.mxu0 0.0
  %3428 = vmatpush1.msra.mxu0 0.0
  %3429 = vmatprep.subr.mxu0 0.0
  %3430 = vmatpush1.msra.mxu0 0.0
  %3431 = vmatprep.subr.mxu0 0.0
  %3432 = vmatpush1.msra.mxu0 0.0
  %3433 = vmatprep.subr.mxu0 0.0
  %3434 = vmatpush1.msra.mxu0 0.0
  %3435 = vmatprep.subr.mxu0 0.0
  %3436 = vmatpush1.msra.mxu0 0.0
  %3437 = vmatprep.subr.mxu0 0.0
  %3438 = vmatpush1.msra.mxu0 0.0
  %3439 = vmatprep.subr.mxu0 0.0
  %3440 = vmatpush1.msra.mxu0 0.0
  %3441 = vmatprep.subr.mxu0 0.0
  %3442 = vmatpush1.msra.mxu0 0.0
  %3443 = vmatprep.subr.mxu0 0.0
  %3444 = vmatpush1.msra.mxu0 0.0
  %3445 = vmatprep.subr.mxu0 0.0
  %3446 = vmatpush1.msra.mxu0 0.0
  %3447 = vmatprep.subr.mxu0 0.0
  %3448 = vmatpush1.msra.mxu0 0.0
  %3449 = vmatprep.subr.mxu0 0.0
  %3450 = vmatpush1.msra.mxu0 0.0
  %3451 = vmatprep.subr.mxu0 0.0
  %3452 = vmatpush1.msra.mxu0 0.0
  %3453 = vmatprep.mubr.f32.mxu0 0.0
  %3454 = vmatmul.mubr.f32.gmra.mrb[0].mxu0 %v3387
  %v3455 = vpop.f32.mrb[0].mxu0
  %v3456 = vadd.f32 0.0, %v3455
  %v3457 = vpop.f32.mrb[0].mxu0
  %3458 = vdwg.mxu0
  %v3460 = vsel %vm1043, %v3163, 0
  %3462 = vmatprep.subr.mxu0 0.0
  %3463 = vmatpush1.msra.mxu0 %v2468
  %3464 = vmatprep.subr.mxu0 0.0
  %3465 = vmatpush1.msra.mxu0 0.0
  %3466 = vmatprep.subr.mxu0 0.0
  %3467 = vmatpush1.msra.mxu0 0.0
  %3468 = vmatprep.subr.mxu0 0.0
  %3469 = vmatpush1.msra.mxu0 0.0
  %3470 = vmatprep.subr.mxu0 0.0
  %3471 = vmatpush1.msra.mxu0 0.0
  %3472 = vmatprep.subr.mxu0 0.0
  %3473 = vmatpush1.msra.mxu0 0.0
  %3474 = vmatprep.subr.mxu0 0.0
  %3475 = vmatpush1.msra.mxu0 0.0
  %3476 = vmatprep.subr.mxu0 0.0
  %3477 = vmatpush1.msra.mxu0 0.0
  %3478 = vmatprep.subr.mxu0 0.0
  %3479 = vmatpush1.msra.mxu0 0.0
  %3480 = vmatprep.subr.mxu0 0.0
  %3481 = vmatpush1.msra.mxu0 0.0
  %3482 = vmatprep.subr.mxu0 0.0
  %3483 = vmatpush1.msra.mxu0 0.0
  %3484 = vmatprep.subr.mxu0 0.0
  %3485 = vmatpush1.msra.mxu0 0.0
  %3486 = vmatprep.subr.mxu0 0.0
  %3487 = vmatpush1.msra.mxu0 0.0
  %3488 = vmatprep.subr.mxu0 0.0
  %3489 = vmatpush1.msra.mxu0 0.0
  %3490 = vmatprep.subr.mxu0 0.0
  %3491 = vmatpush1.msra.mxu0 0.0
  %3492 = vmatprep.subr.mxu0 0.0
  %3493 = vmatpush1.msra.mxu0 0.0
  %3494 = vmatprep.subr.mxu0 0.0
  %3495 = vmatpush1.msra.mxu0 0.0
  %3496 = vmatprep.subr.mxu0 0.0
  %3497 = vmatpush1.msra.mxu0 0.0
  %3498 = vmatprep.subr.mxu0 0.0
  %3499 = vmatpush1.msra.mxu0 0.0
  %3500 = vmatprep.subr.mxu0 0.0
  %3501 = vmatpush1.msra.mxu0 0.0
  %3502 = vmatprep.subr.mxu0 0.0
  %3503 = vmatpush1.msra.mxu0 0.0
  %3504 = vmatprep.subr.mxu0 0.0
  %3505 = vmatpush1.msra.mxu0 0.0
  %3506 = vmatprep.subr.mxu0 0.0
  %3507 = vmatpush1.msra.mxu0 0.0
  %3508 = vmatprep.subr.mxu0 0.0
  %3509 = vmatpush1.msra.mxu0 0.0
  %3510 = vmatprep.subr.mxu0 0.0
  %3511 = vmatpush1.msra.mxu0 0.0
  %3512 = vmatprep.subr.mxu0 0.0
  %3513 = vmatpush1.msra.mxu0 0.0
  %3514 = vmatprep.subr.mxu0 0.0
  %3515 = vmatpush1.msra.mxu0 0.0
  %3516 = vmatprep.subr.mxu0 0.0
  %3517 = vmatpush1.msra.mxu0 0.0
  %3518 = vmatprep.subr.mxu0 0.0
  %3519 = vmatpush1.msra.mxu0 0.0
  %3520 = vmatprep.subr.mxu0 0.0
  %3521 = vmatpush1.msra.mxu0 0.0
  %3522 = vmatprep.subr.mxu0 0.0
  %3523 = vmatpush1.msra.mxu0 0.0
  %3524 = vmatprep.subr.mxu0 0.0
  %3525 = vmatpush1.msra.mxu0 0.0
  %3526 = vmatprep.mubr.f32.mxu0 0.0
  %3527 = vmatmul.mubr.f32.gmra.mrb[0].mxu0 %v3460
  %v3528 = vpop.f32.mrb[0].mxu0
  %v3529 = vadd.f32 0.0, %v3528
  %v3530 = vpop.f32.mrb[0].mxu0
  %3531 = vdwg.mxu0
  %v3533 = vsel %vm1043, %v3164, 0
  %3535 = vmatprep.subr.mxu0 0.0
  %3536 = vmatpush1.msra.mxu0 %v2470
  %3537 = vmatprep.subr.mxu0 0.0
  %3538 = vmatpush1.msra.mxu0 0.0
  %3539 = vmatprep.subr.mxu0 0.0
  %3540 = vmatpush1.msra.mxu0 0.0
  %3541 = vmatprep.subr.mxu0 0.0
  %3542 = vmatpush1.msra.mxu0 0.0
  %3543 = vmatprep.subr.mxu0 0.0
  %3544 = vmatpush1.msra.mxu0 0.0
  %3545 = vmatprep.subr.mxu0 0.0
  %3546 = vmatpush1.msra.mxu0 0.0
  %3547 = vmatprep.subr.mxu0 0.0
  %3548 = vmatpush1.msra.mxu0 0.0
  %3549 = vmatprep.subr.mxu0 0.0
  %3550 = vmatpush1.msra.mxu0 0.0
  %3551 = vmatprep.subr.mxu0 0.0
  %3552 = vmatpush1.msra.mxu0 0.0
  %3553 = vmatprep.subr.mxu0 0.0
  %3554 = vmatpush1.msra.mxu0 0.0
  %3555 = vmatprep.subr.mxu0 0.0
  %3556 = vmatpush1.msra.mxu0 0.0
  %3557 = vmatprep.subr.mxu0 0.0
  %3558 = vmatpush1.msra.mxu0 0.0
  %3559 = vmatprep.subr.mxu0 0.0
  %3560 = vmatpush1.msra.mxu0 0.0
  %3561 = vmatprep.subr.mxu0 0.0
  %3562 = vmatpush1.msra.mxu0 0.0
  %3563 = vmatprep.subr.mxu0 0.0
  %3564 = vmatpush1.msra.mxu0 0.0
  %3565 = vmatprep.subr.mxu0 0.0
  %3566 = vmatpush1.msra.mxu0 0.0
  %3567 = vmatprep.subr.mxu0 0.0
  %3568 = vmatpush1.msra.mxu0 0.0
  %3569 = vmatprep.subr.mxu0 0.0
  %3570 = vmatpush1.msra.mxu0 0.0
  %3571 = vmatprep.subr.mxu0 0.0
  %3572 = vmatpush1.msra.mxu0 0.0
  %3573 = vmatprep.subr.mxu0 0.0
  %3574 = vmatpush1.msra.mxu0 0.0
  %3575 = vmatprep.subr.mxu0 0.0
  %3576 = vmatpush1.msra.mxu0 0.0
  %3577 = vmatprep.subr.mxu0 0.0
  %3578 = vmatpush1.msra.mxu0 0.0
  %3579 = vmatprep.subr.mxu0 0.0
  %3580 = vmatpush1.msra.mxu0 0.0
  %3581 = vmatprep.subr.mxu0 0.0
  %3582 = vmatpush1.msra.mxu0 0.0
  %3583 = vmatprep.subr.mxu0 0.0
  %3584 = vmatpush1.msra.mxu0 0.0
  %3585 = vmatprep.subr.mxu0 0.0
  %3586 = vmatpush1.msra.mxu0 0.0
  %3587 = vmatprep.subr.mxu0 0.0
  %3588 = vmatpush1.msra.mxu0 0.0
  %3589 = vmatprep.subr.mxu0 0.0
  %3590 = vmatpush1.msra.mxu0 0.0
  %3591 = vmatprep.subr.mxu0 0.0
  %3592 = vmatpush1.msra.mxu0 0.0
  %3593 = vmatprep.subr.mxu0 0.0
  %3594 = vmatpush1.msra.mxu0 0.0
  %3595 = vmatprep.subr.mxu0 0.0
  %3596 = vmatpush1.msra.mxu0 0.0
  %3597 = vmatprep.subr.mxu0 0.0
  %3598 = vmatpush1.msra.mxu0 0.0
  %3599 = vmatprep.mubr.f32.mxu0 0.0
  %3600 = vmatmul.mubr.f32.gmra.mrb[0].mxu0 %v3533
  %v3601 = vpop.f32.mrb[0].mxu0
  %v3602 = vadd.f32 0.0, %v3601
  %v3603 = vpop.f32.mrb[0].mxu0
  %3604 = vdwg.mxu0
  %v3606 = vsel %vm1043, %v3165, 0
  %3608 = vmatprep.subr.mxu0 0.0
  %3609 = vmatpush1.msra.mxu0 %v2474
  %3610 = vmatprep.subr.mxu0 0.0
  %3611 = vmatpush1.msra.mxu0 0.0
  %3612 = vmatprep.subr.mxu0 0.0
  %3613 = vmatpush1.msra.mxu0 0.0
  %3614 = vmatprep.subr.mxu0 0.0
  %3615 = vmatpush1.msra.mxu0 0.0
  %3616 = vmatprep.subr.mxu0 0.0
  %3617 = vmatpush1.msra.mxu0 0.0
  %3618 = vmatprep.subr.mxu0 0.0
  %3619 = vmatpush1.msra.mxu0 0.0
  %3620 = vmatprep.subr.mxu0 0.0
  %3621 = vmatpush1.msra.mxu0 0.0
  %3622 = vmatprep.subr.mxu0 0.0
  %3623 = vmatpush1.msra.mxu0 0.0
  %3624 = vmatprep.subr.mxu0 0.0
  %3625 = vmatpush1.msra.mxu0 0.0
  %3626 = vmatprep.subr.mxu0 0.0
  %3627 = vmatpush1.msra.mxu0 0.0
  %3628 = vmatprep.subr.mxu0 0.0
  %3629 = vmatpush1.msra.mxu0 0.0
  %3630 = vmatprep.subr.mxu0 0.0
  %3631 = vmatpush1.msra.mxu0 0.0
  %3632 = vmatprep.subr.mxu0 0.0
  %3633 = vmatpush1.msra.mxu0 0.0
  %3634 = vmatprep.subr.mxu0 0.0
  %3635 = vmatpush1.msra.mxu0 0.0
  %3636 = vmatprep.subr.mxu0 0.0
  %3637 = vmatpush1.msra.mxu0 0.0
  %3638 = vmatprep.subr.mxu0 0.0
  %3639 = vmatpush1.msra.mxu0 0.0
  %3640 = vmatprep.subr.mxu0 0.0
  %3641 = vmatpush1.msra.mxu0 0.0
  %3642 = vmatprep.subr.mxu0 0.0
  %3643 = vmatpush1.msra.mxu0 0.0
  %3644 = vmatprep.subr.mxu0 0.0
  %3645 = vmatpush1.msra.mxu0 0.0
  %3646 = vmatprep.subr.mxu0 0.0
  %3647 = vmatpush1.msra.mxu0 0.0
  %3648 = vmatprep.subr.mxu0 0.0
  %3649 = vmatpush1.msra.mxu0 0.0
  %3650 = vmatprep.subr.mxu0 0.0
  %3651 = vmatpush1.msra.mxu0 0.0
  %3652 = vmatprep.subr.mxu0 0.0
  %3653 = vmatpush1.msra.mxu0 0.0
  %3654 = vmatprep.subr.mxu0 0.0
  %3655 = vmatpush1.msra.mxu0 0.0
  %3656 = vmatprep.subr.mxu0 0.0
  %3657 = vmatpush1.msra.mxu0 0.0
  %3658 = vmatprep.subr.mxu0 0.0
  %3659 = vmatpush1.msra.mxu0 0.0
  %3660 = vmatprep.subr.mxu0 0.0
  %3661 = vmatpush1.msra.mxu0 0.0
  %3662 = vmatprep.subr.mxu0 0.0
  %3663 = vmatpush1.msra.mxu0 0.0
  %3664 = vmatprep.subr.mxu0 0.0
  %3665 = vmatpush1.msra.mxu0 0.0
  %3666 = vmatprep.subr.mxu0 0.0
  %3667 = vmatpush1.msra.mxu0 0.0
  %3668 = vmatprep.subr.mxu0 0.0
  %3669 = vmatpush1.msra.mxu0 0.0
  %3670 = vmatprep.subr.mxu0 0.0
  %3671 = vmatpush1.msra.mxu0 0.0
  %3672 = vmatprep.mubr.f32.mxu0 0.0
  %3673 = vmatmul.mubr.f32.gmra.mrb[0].mxu0 %v3606
  %v3674 = vpop.f32.mrb[0].mxu0
  %v3675 = vadd.f32 0.0, %v3674
  %v3676 = vpop.f32.mrb[0].mxu0
  %3677 = vdwg.mxu0
  %v3679 = vsel %vm1043, %v3166, 0
  %3681 = vmatprep.subr.mxu0 0.0
  %3682 = vmatpush1.msra.mxu0 %v2476
  %3683 = vmatprep.subr.mxu0 0.0
  %3684 = vmatpush1.msra.mxu0 0.0
  %3685 = vmatprep.subr.mxu0 0.0
  %3686 = vmatpush1.msra.mxu0 0.0
  %3687 = vmatprep.subr.mxu0 0.0
  %3688 = vmatpush1.msra.mxu0 0.0
  %3689 = vmatprep.subr.mxu0 0.0
  %3690 = vmatpush1.msra.mxu0 0.0
  %3691 = vmatprep.subr.mxu0 0.0
  %3692 = vmatpush1.msra.mxu0 0.0
  %3693 = vmatprep.subr.mxu0 0.0
  %3694 = vmatpush1.msra.mxu0 0.0
  %3695 = vmatprep.subr.mxu0 0.0
  %3696 = vmatpush1.msra.mxu0 0.0
  %3697 = vmatprep.subr.mxu0 0.0
  %3698 = vmatpush1.msra.mxu0 0.0
  %3699 = vmatprep.subr.mxu0 0.0
  %3700 = vmatpush1.msra.mxu0 0.0
  %3701 = vmatprep.subr.mxu0 0.0
  %3702 = vmatpush1.msra.mxu0 0.0
  %3703 = vmatprep.subr.mxu0 0.0
  %3704 = vmatpush1.msra.mxu0 0.0
  %3705 = vmatprep.subr.mxu0 0.0
  %3706 = vmatpush1.msra.mxu0 0.0
  %3707 = vmatprep.subr.mxu0 0.0
  %3708 = vmatpush1.msra.mxu0 0.0
  %3709 = vmatprep.subr.mxu0 0.0
  %3710 = vmatpush1.msra.mxu0 0.0
  %3711 = vmatprep.subr.mxu0 0.0
  %3712 = vmatpush1.msra.mxu0 0.0
  %3713 = vmatprep.subr.mxu0 0.0
  %3714 = vmatpush1.msra.mxu0 0.0
  %3715 = vmatprep.subr.mxu0 0.0
  %3716 = vmatpush1.msra.mxu0 0.0
  %3717 = vmatprep.subr.mxu0 0.0
  %3718 = vmatpush1.msra.mxu0 0.0
  %3719 = vmatprep.subr.mxu0 0.0
  %3720 = vmatpush1.msra.mxu0 0.0
  %3721 = vmatprep.subr.mxu0 0.0
  %3722 = vmatpush1.msra.mxu0 0.0
  %3723 = vmatprep.subr.mxu0 0.0
  %3724 = vmatpush1.msra.mxu0 0.0
  %3725 = vmatprep.subr.mxu0 0.0
  %3726 = vmatpush1.msra.mxu0 0.0
  %3727 = vmatprep.subr.mxu0 0.0
  %3728 = vmatpush1.msra.mxu0 0.0
  %3729 = vmatprep.subr.mxu0 0.0
  %3730 = vmatpush1.msra.mxu0 0.0
  %3731 = vmatprep.subr.mxu0 0.0
  %3732 = vmatpush1.msra.mxu0 0.0
  %3733 = vmatprep.subr.mxu0 0.0
  %3734 = vmatpush1.msra.mxu0 0.0
  %3735 = vmatprep.subr.mxu0 0.0
  %3736 = vmatpush1.msra.mxu0 0.0
  %3737 = vmatprep.subr.mxu0 0.0
  %3738 = vmatpush1.msra.mxu0 0.0
  %3739 = vmatprep.subr.mxu0 0.0
  %3740 = vmatpush1.msra.mxu0 0.0
  %3741 = vmatprep.subr.mxu0 0.0
  %3742 = vmatpush1.msra.mxu0 0.0
  %3743 = vmatprep.subr.mxu0 0.0
  %3744 = vmatpush1.msra.mxu0 0.0
  %3745 = vmatprep.mubr.f32.mxu0 0.0
  %3746 = vmatmul.mubr.f32.gmra.mrb[0].mxu0 %v3679
  %v3747 = vpop.f32.mrb[0].mxu0
  %v3748 = vadd.f32 0.0, %v3747
  %v3749 = vpop.f32.mrb[0].mxu0
  %3750 = vdwg.mxu0
  %3753 = vrot.lane.b32.xlu0 %v3383, 16
  %v3754 = vpop.permute.xlu0 %3753
  %3755 = vrot.lane.b32.xlu0 %v3456, 16
  %v3756 = vpop.permute.xlu0 %3755
  %3761 = vrot.lane.b32.xlu0 %v3529, 32
  %v3762 = vpop.permute.xlu0 %3761
  %3763 = vrot.lane.b32.xlu0 %v3602, 32
  %v3764 = vpop.permute.xlu0 %3763
  %3769 = vrot.lane.b32.xlu0 %v3675, 48
  %v3770 = vpop.permute.xlu0 %3769
  %3771 = vrot.lane.b32.xlu0 %v3748, 48
  %v3772 = vpop.permute.xlu0 %3771
  %v3775 = vsel %vm32, %v3237, %v3754
  %v3776 = vsel %vm32, %v3310, %v3756
  %v3777 = vsel %vm1742, %v3775, %v3762
  %v3778 = vsel %vm1742, %v3776, %v3764
  %v3779 = vsel %vm1745, %v3777, %v3770
  %v3780 = vsel %vm1745, %v3778, %v3772
  %v3781 = vlaneseq
  %v3782 = vshrl.u32 %v3781, 7
  %v3783 = vsub.s32 3, %v3782
  %v3784 = vrot.slane %v2186, %v3783
  %v3786 = vsel %vm155, %v3779, 0
  %v3789 = vsel %vm155, %v3780, 0
  %3791 = vmatprep.subr.mxu0 0.0
  %3792 = vmatpush1.msra.mxu0 %v2177
  %3793 = vmatprep.subr.mxu0 0.0
  %3794 = vmatpush1.msra.mxu0 %v2178
  %3795 = vmatprep.subr.mxu0 0.0
  %3796 = vmatpush1.msra.mxu0 %v2179
  %3797 = vmatprep.subr.mxu0 0.0
  %3798 = vmatpush1.msra.mxu0 %v2180
  %3799 = vmatprep.subr.mxu0 0.0
  %3800 = vmatpush1.msra.mxu0 %v2181
  %3801 = vmatprep.subr.mxu0 0.0
  %3802 = vmatpush1.msra.mxu0 %v2182
  %3803 = vmatprep.subr.mxu0 0.0
  %3804 = vmatpush1.msra.mxu0 %v2183
  %3805 = vmatprep.subr.mxu0 0.0
  %3806 = vmatpush1.msra.mxu0 %v2184
  %3807 = vmatprep.subr.mxu0 0.0
  %3808 = vmatpush1.msra.mxu0 0.0
  %3809 = vmatprep.subr.mxu0 0.0
  %3810 = vmatpush1.msra.mxu0 0.0
  %3811 = vmatprep.subr.mxu0 0.0
  %3812 = vmatpush1.msra.mxu0 0.0
  %3813 = vmatprep.subr.mxu0 0.0
  %3814 = vmatpush1.msra.mxu0 0.0
  %3815 = vmatprep.subr.mxu0 0.0
  %3816 = vmatpush1.msra.mxu0 0.0
  %3817 = vmatprep.subr.mxu0 0.0
  %3818 = vmatpush1.msra.mxu0 0.0
  %3819 = vmatprep.subr.mxu0 0.0
  %3820 = vmatpush1.msra.mxu0 0.0
  %3821 = vmatprep.subr.mxu0 0.0
  %3822 = vmatpush1.msra.mxu0 0.0
  %3823 = vmatprep.subr.mxu0 0.0
  %3824 = vmatpush1.msra.mxu0 0.0
  %3825 = vmatprep.subr.mxu0 0.0
  %3826 = vmatpush1.msra.mxu0 0.0
  %3827 = vmatprep.subr.mxu0 0.0
  %3828 = vmatpush1.msra.mxu0 0.0
  %3829 = vmatprep.subr.mxu0 0.0
  %3830 = vmatpush1.msra.mxu0 0.0
  %3831 = vmatprep.subr.mxu0 0.0
  %3832 = vmatpush1.msra.mxu0 0.0
  %3833 = vmatprep.subr.mxu0 0.0
  %3834 = vmatpush1.msra.mxu0 0.0
  %3835 = vmatprep.subr.mxu0 0.0
  %3836 = vmatpush1.msra.mxu0 0.0
  %3837 = vmatprep.subr.mxu0 0.0
  %3838 = vmatpush1.msra.mxu0 0.0
  %3839 = vmatprep.subr.mxu0 0.0
  %3840 = vmatpush1.msra.mxu0 0.0
  %3841 = vmatprep.subr.mxu0 0.0
  %3842 = vmatpush1.msra.mxu0 0.0
  %3843 = vmatprep.subr.mxu0 0.0
  %3844 = vmatpush1.msra.mxu0 0.0
  %3845 = vmatprep.subr.mxu0 0.0
  %3846 = vmatpush1.msra.mxu0 0.0
  %3847 = vmatprep.subr.mxu0 0.0
  %3848 = vmatpush1.msra.mxu0 0.0
  %3849 = vmatprep.subr.mxu0 0.0
  %3850 = vmatpush1.msra.mxu0 0.0
  %3851 = vmatprep.subr.mxu0 0.0
  %3852 = vmatpush1.msra.mxu0 0.0
  %3853 = vmatprep.subr.mxu0 0.0
  %3854 = vmatpush1.msra.mxu0 0.0
  %3855 = vmatprep.mubr.f32.mxu0 0.0
  %3856 = vmatmul.mubr.f32.gmra.mrb[0].mxu0 %v3786
  %v3857 = vpop.f32.mrb[0].mxu0
  %v3858 = vadd.f32 %v3784, %v3857
  %v3859 = vpop.f32.mrb[0].mxu0
  %3860 = vmatprep.mubr.f32.mxu0 0.0
  %3861 = vmatmul.mubr.f32.gmra.mrb[0].mxu0 %v3789
  %v3862 = vpop.f32.mrb[0].mxu0
  %v3863 = vadd.f32 %v3784, %v3862
  %v3864 = vpop.f32.mrb[0].mxu0
  %3865 = vdwg.mxu0
  %v3866 = vadd.f32 %v2147, %v3858
  %v3867 = vadd.f32 %v2148, %v3863
  %v3868 = vsel %vm155, %v3866, 0.0
  %3869 = vadd.xlane.f32.xlu0 %v3868
  %v3870 = vpop.xlane.xlu0 %3869
  %v3871 = vsel %vm155, %v3867, 0.0
  %3872 = vadd.xlane.f32.xlu0 %v3871
  %v3873 = vpop.xlane.xlu0 %3872
  %v3874 = vmul.f32 %v3870, %v1841
  %v3875 = vmul.f32 %v3873, %v1841
  %v3876 = vmul.f32 %v3866, %v3866
  %v3877 = vmul.f32 %v3867, %v3867
  %v3878 = vsel %vm155, %v3876, 0.0
  %3879 = vadd.xlane.f32.xlu0 %v3878
  %v3880 = vpop.xlane.xlu0 %3879
  %v3881 = vsel %vm155, %v3877, 0.0
  %3882 = vadd.xlane.f32.xlu0 %v3881
  %v3883 = vpop.xlane.xlu0 %3882
  %v3884 = vmul.f32 %v3880, %v1841
  %v3885 = vmul.f32 %v3883, %v1841
  %v3886 = vmul.f32 %v3874, %v3874
  %v3887 = vmul.f32 %v3875, %v3875
  %v3888 = vsub.f32 %v3884, %v3886
  %v3889 = vsub.f32 %v3885, %v3887
  %v3890 = vsub.f32 %v3866, %v3874
  %v3891 = vsub.f32 %v3867, %v3875
  %v3892 = vadd.f32 %v3888, 1e-05
  %v3893 = vadd.f32 %v3889, 1e-05
  %v3894 = vrsqrt.pop %v3892
  %v3895 = vrsqrt.pop %v3893
  %v3896 = vmul.f32 %v3890, %v3894
  %v3897 = vmul.f32 %v3891, %v3895
  %v3898 = vlaneseq
  %v3899 = vshrl.u32 %v3898, 7
  %v3900 = vsub.s32 5, %v3899
  %v3901 = vrot.slane %v2186, %v3900
  %v3902 = vmul.f32 %v3896, %v3901
  %v3903 = vmul.f32 %v3897, %v3901
  %v3904 = vlaneseq
  %v3905 = vshrl.u32 %v3904, 7
  %v3906 = vsub.s32 6, %v3905
  %v3907 = vrot.slane %v2186, %v3906
  %v3908 = vadd.f32 %v3902, %v3907
  %v3909 = vadd.f32 %v3903, %v3907
  %s3910 = scalar_lea.vmem %s3, 144
  %v3911 = vld [vmem:[%s3910] sm:$0xff]
  %v3912 = vld [vmem:[%s3910 + $0x8] sm:$0xff]
  %v3913 = vld [vmem:[%s3910 + $0x10] sm:$0xff]
  %v3914 = vld [vmem:[%s3910 + $0x18] sm:$0xff]
  %v3915 = vld [vmem:[%s3910 + $0x20] sm:$0xff]
  %v3916 = vld [vmem:[%s3910 + $0x28] sm:$0xff]
  %v3917 = vld [vmem:[%s3910 + $0x30] sm:$0xff]
  %v3918 = vld [vmem:[%s3910 + $0x38] sm:$0xff]
  %v3919 = vld [vmem:[%s3910 + $0x40] sm:$0xff]
  %v3920 = vld [vmem:[%s3910 + $0x48] sm:$0xff]
  %v3921 = vld [vmem:[%s3910 + $0x50] sm:$0xff]
  %v3922 = vld [vmem:[%s3910 + $0x58] sm:$0xff]
  %v3923 = vld [vmem:[%s3910 + $0x60] sm:$0xff]
  %v3924 = vld [vmem:[%s3910 + $0x68] sm:$0xff]
  %v3925 = vld [vmem:[%s3910 + $0x70] sm:$0xff]
  %v3926 = vld [vmem:[%s3910 + $0x78] sm:$0xff]
  %s3927 = scalar_lea.vmem %s3910, 128
  %v3928 = vld [vmem:[%s3927] ss:$8 sm:$0x3]
  %v3930 = vlaneseq
  %v3931 = vshrl.u32 %v3930, 7
  %v3932 = vsub.s32 0, %v3931
  %v3933 = vrot.slane %v3928, %v3932
  %v3934 = vlaneseq
  %v3935 = vshrl.u32 %v3934, 7
  %v3936 = vsub.s32 1, %v3935
  %v3937 = vrot.slane %v3928, %v3936
  %v3941 = vsel %vm155, %v3908, 0
  %v3944 = vsel %vm155, %v3909, 0
  %3946 = vmatprep.subr.mxu0 %v3912
  %3947 = vmatpush1.msra.mxu0 %v3911
  %3948 = vmatprep.subr.mxu0 %v3914
  %3949 = vmatpush1.msra.mxu0 %v3913
  %3950 = vmatprep.subr.mxu0 %v3916
  %3951 = vmatpush1.msra.mxu0 %v3915
  %3952 = vmatprep.subr.mxu0 %v3918
  %3953 = vmatpush1.msra.mxu0 %v3917
  %3954 = vmatprep.subr.mxu0 %v3920
  %3955 = vmatpush1.msra.mxu0 %v3919
  %3956 = vmatprep.subr.mxu0 %v3922
  %3957 = vmatpush1.msra.mxu0 %v3921
  %3958 = vmatprep.subr.mxu0 %v3924
  %3959 = vmatpush1.msra.mxu0 %v3923
  %3960 = vmatprep.subr.mxu0 %v3926
  %3961 = vmatpush1.msra.mxu0 %v3925
  %3962 = vmatprep.subr.mxu0 0.0
  %3963 = vmatpush1.msra.mxu0 0.0
  %3964 = vmatprep.subr.mxu0 0.0
  %3965 = vmatpush1.msra.mxu0 0.0
  %3966 = vmatprep.subr.mxu0 0.0
  %3967 = vmatpush1.msra.mxu0 0.0
  %3968 = vmatprep.subr.mxu0 0.0
  %3969 = vmatpush1.msra.mxu0 0.0
  %3970 = vmatprep.subr.mxu0 0.0
  %3971 = vmatpush1.msra.mxu0 0.0
  %3972 = vmatprep.subr.mxu0 0.0
  %3973 = vmatpush1.msra.mxu0 0.0
  %3974 = vmatprep.subr.mxu0 0.0
  %3975 = vmatpush1.msra.mxu0 0.0
  %3976 = vmatprep.subr.mxu0 0.0
  %3977 = vmatpush1.msra.mxu0 0.0
  %3978 = vmatprep.subr.mxu0 0.0
  %3979 = vmatpush1.msra.mxu0 0.0
  %3980 = vmatprep.subr.mxu0 0.0
  %3981 = vmatpush1.msra.mxu0 0.0
  %3982 = vmatprep.subr.mxu0 0.0
  %3983 = vmatpush1.msra.mxu0 0.0
  %3984 = vmatprep.subr.mxu0 0.0
  %3985 = vmatpush1.msra.mxu0 0.0
  %3986 = vmatprep.subr.mxu0 0.0
  %3987 = vmatpush1.msra.mxu0 0.0
  %3988 = vmatprep.subr.mxu0 0.0
  %3989 = vmatpush1.msra.mxu0 0.0
  %3990 = vmatprep.subr.mxu0 0.0
  %3991 = vmatpush1.msra.mxu0 0.0
  %3992 = vmatprep.subr.mxu0 0.0
  %3993 = vmatpush1.msra.mxu0 0.0
  %3994 = vmatprep.subr.mxu0 0.0
  %3995 = vmatpush1.msra.mxu0 0.0
  %3996 = vmatprep.subr.mxu0 0.0
  %3997 = vmatpush1.msra.mxu0 0.0
  %3998 = vmatprep.subr.mxu0 0.0
  %3999 = vmatpush1.msra.mxu0 0.0
  %4000 = vmatprep.subr.mxu0 0.0
  %4001 = vmatpush1.msra.mxu0 0.0
  %4002 = vmatprep.subr.mxu0 0.0
  %4003 = vmatpush1.msra.mxu0 0.0
  %4004 = vmatprep.subr.mxu0 0.0
  %4005 = vmatpush1.msra.mxu0 0.0
  %4006 = vmatprep.subr.mxu0 0.0
  %4007 = vmatpush1.msra.mxu0 0.0
  %4008 = vmatprep.subr.mxu0 0.0
  %4009 = vmatpush1.msra.mxu0 0.0
  %4010 = vmatprep.mubr.f32.mxu0 0.0
  %4011 = vmatmul.mubr.f32.gmra.mrb[0].mxu0 %v3941
  %v4012 = vpop.f32.mrb[0].mxu0
  %v4013 = vadd.f32 %v3933, %v4012
  %v4014 = vpop.f32.mrb[0].mxu0
  %v4015 = vadd.f32 %v3937, %v4014
  %4016 = vmatprep.mubr.f32.mxu0 0.0
  %4017 = vmatmul.mubr.f32.gmra.mrb[0].mxu0 %v3944
  %v4018 = vpop.f32.mrb[0].mxu0
  %v4019 = vadd.f32 %v3933, %v4018
  %v4020 = vpop.f32.mrb[0].mxu0
  %v4021 = vadd.f32 %v3937, %v4020
  %4022 = vdwg.mxu0
  %v4023 = vmax.f32 %v4013, 0.0
  %v4024 = vmax.f32 %v4015, 0.0
  %v4025 = vmax.f32 %v4019, 0.0
  %v4026 = vmax.f32 %v4021, 0.0
  %s4027 = scalar_lea.vmem %s4, 256
  %v4028 = vld [vmem:[%s4027] sm:$0xff]
  %v4029 = vld [vmem:[%s4027 + $0x8] sm:$0xff]
  %v4030 = vld [vmem:[%s4027 + $0x10] sm:$0xff]
  %v4031 = vld [vmem:[%s4027 + $0x18] sm:$0xff]
  %v4032 = vld [vmem:[%s4027 + $0x20] sm:$0xff]
  %v4033 = vld [vmem:[%s4027 + $0x28] sm:$0xff]
  %v4034 = vld [vmem:[%s4027 + $0x30] sm:$0xff]
  %v4035 = vld [vmem:[%s4027 + $0x38] sm:$0xff]
  %v4036 = vld [vmem:[%s4027 + $0x40] sm:$0xff]
  %v4037 = vld [vmem:[%s4027 + $0x48] sm:$0xff]
  %v4038 = vld [vmem:[%s4027 + $0x50] sm:$0xff]
  %v4039 = vld [vmem:[%s4027 + $0x58] sm:$0xff]
  %v4040 = vld [vmem:[%s4027 + $0x60] sm:$0xff]
  %v4041 = vld [vmem:[%s4027 + $0x68] sm:$0xff]
  %v4042 = vld [vmem:[%s4027 + $0x70] sm:$0xff]
  %v4043 = vld [vmem:[%s4027 + $0x78] sm:$0xff]
  %v4044 = vld [vmem:[%s4027 + $0x80] sm:$0xff]
  %v4045 = vld [vmem:[%s4027 + $0x88] sm:$0xff]
  %v4046 = vld [vmem:[%s4027 + $0x90] sm:$0xff]
  %v4047 = vld [vmem:[%s4027 + $0x98] sm:$0xff]
  %v4048 = vld [vmem:[%s4027 + $0xa0] sm:$0xff]
  %v4049 = vld [vmem:[%s4027 + $0xa8] sm:$0xff]
  %v4050 = vld [vmem:[%s4027 + $0xb0] sm:$0xff]
  %v4051 = vld [vmem:[%s4027 + $0xb8] sm:$0xff]
  %v4052 = vld [vmem:[%s4027 + $0xc0] sm:$0xff]
  %v4053 = vld [vmem:[%s4027 + $0xc8] sm:$0xff]
  %v4054 = vld [vmem:[%s4027 + $0xd0] sm:$0xff]
  %v4055 = vld [vmem:[%s4027 + $0xd8] sm:$0xff]
  %v4056 = vld [vmem:[%s4027 + $0xe0] sm:$0xff]
  %v4057 = vld [vmem:[%s4027 + $0xe8] sm:$0xff]
  %v4058 = vld [vmem:[%s4027 + $0xf0] sm:$0xff]
  %v4059 = vld [vmem:[%s4027 + $0xf8] sm:$0xff]
  %v4060 = vlaneseq
  %v4061 = vshrl.u32 %v4060, 7
  %v4062 = vsub.s32 4, %v4061
  %v4063 = vrot.slane %v2186, %v4062
  %4064 = vmatprep.subr.mxu0 0.0
  %4065 = vmatpush1.msra.mxu0 %v4028
  %4066 = vmatprep.subr.mxu0 0.0
  %4067 = vmatpush1.msra.mxu0 %v4029
  %4068 = vmatprep.subr.mxu0 0.0
  %4069 = vmatpush1.msra.mxu0 %v4030
  %4070 = vmatprep.subr.mxu0 0.0
  %4071 = vmatpush1.msra.mxu0 %v4031
  %4072 = vmatprep.subr.mxu0 0.0
  %4073 = vmatpush1.msra.mxu0 %v4032
  %4074 = vmatprep.subr.mxu0 0.0
  %4075 = vmatpush1.msra.mxu0 %v4033
  %4076 = vmatprep.subr.mxu0 0.0
  %4077 = vmatpush1.msra.mxu0 %v4034
  %4078 = vmatprep.subr.mxu0 0.0
  %4079 = vmatpush1.msra.mxu0 %v4035
  %4080 = vmatprep.subr.mxu0 0.0
  %4081 = vmatpush1.msra.mxu0 %v4036
  %4082 = vmatprep.subr.mxu0 0.0
  %4083 = vmatpush1.msra.mxu0 %v4037
  %4084 = vmatprep.subr.mxu0 0.0
  %4085 = vmatpush1.msra.mxu0 %v4038
  %4086 = vmatprep.subr.mxu0 0.0
  %4087 = vmatpush1.msra.mxu0 %v4039
  %4088 = vmatprep.subr.mxu0 0.0
  %4089 = vmatpush1.msra.mxu0 %v4040
  %4090 = vmatprep.subr.mxu0 0.0
  %4091 = vmatpush1.msra.mxu0 %v4041
  %4092 = vmatprep.subr.mxu0 0.0
  %4093 = vmatpush1.msra.mxu0 %v4042
  %4094 = vmatprep.subr.mxu0 0.0
  %4095 = vmatpush1.msra.mxu0 %v4043
  %4096 = vmatprep.subr.mxu0 0.0
  %4097 = vmatpush1.msra.mxu0 %v4044
  %4098 = vmatprep.subr.mxu0 0.0
  %4099 = vmatpush1.msra.mxu0 %v4045
  %4100 = vmatprep.subr.mxu0 0.0
  %4101 = vmatpush1.msra.mxu0 %v4046
  %4102 = vmatprep.subr.mxu0 0.0
  %4103 = vmatpush1.msra.mxu0 %v4047
  %4104 = vmatprep.subr.mxu0 0.0
  %4105 = vmatpush1.msra.mxu0 %v4048
  %4106 = vmatprep.subr.mxu0 0.0
  %4107 = vmatpush1.msra.mxu0 %v4049
  %4108 = vmatprep.subr.mxu0 0.0
  %4109 = vmatpush1.msra.mxu0 %v4050
  %4110 = vmatprep.subr.mxu0 0.0
  %4111 = vmatpush1.msra.mxu0 %v4051
  %4112 = vmatprep.subr.mxu0 0.0
  %4113 = vmatpush1.msra.mxu0 %v4052
  %4114 = vmatprep.subr.mxu0 0.0
  %4115 = vmatpush1.msra.mxu0 %v4053
  %4116 = vmatprep.subr.mxu0 0.0
  %4117 = vmatpush1.msra.mxu0 %v4054
  %4118 = vmatprep.subr.mxu0 0.0
  %4119 = vmatpush1.msra.mxu0 %v4055
  %4120 = vmatprep.subr.mxu0 0.0
  %4121 = vmatpush1.msra.mxu0 %v4056
  %4122 = vmatprep.subr.mxu0 0.0
  %4123 = vmatpush1.msra.mxu0 %v4057
  %4124 = vmatprep.subr.mxu0 0.0
  %4125 = vmatpush1.msra.mxu0 %v4058
  %4126 = vmatprep.subr.mxu0 0.0
  %4127 = vmatpush1.msra.mxu0 %v4059
  %4128 = vmatprep.mubr.f32.mxu0 %v4024
  %4129 = vmatmul.mubr.f32.gmra.mrb[0].mxu0 %v4023
  %v4130 = vpop.f32.mrb[0].mxu0
  %v4131 = vadd.f32 %v4063, %v4130
  %v4132 = vpop.f32.mrb[0].mxu0
  %4133 = vmatprep.mubr.f32.mxu0 %v4026
  %4134 = vmatmul.mubr.f32.gmra.mrb[0].mxu0 %v4025
  %v4135 = vpop.f32.mrb[0].mxu0
  %v4136 = vadd.f32 %v4063, %v4135
  %v4137 = vpop.f32.mrb[0].mxu0
  %4138 = vdwg.mxu0
  %v4139 = vadd.f32 %v3908, %v4131
  %v4140 = vadd.f32 %v3909, %v4136
  %v4141 = vsel %vm155, %v4139, 0.0
  %4142 = vadd.xlane.f32.xlu0 %v4141
  %v4143 = vpop.xlane.xlu0 %4142
  %v4144 = vsel %vm155, %v4140, 0.0
  %4145 = vadd.xlane.f32.xlu0 %v4144
  %v4146 = vpop.xlane.xlu0 %4145
  %v4147 = vmul.f32 %v4143, %v1841
  %v4148 = vmul.f32 %v4146, %v1841
  %v4149 = vmul.f32 %v4139, %v4139
  %v4150 = vmul.f32 %v4140, %v4140
  %v4151 = vsel %vm155, %v4149, 0.0
  %4152 = vadd.xlane.f32.xlu0 %v4151
  %v4153 = vpop.xlane.xlu0 %4152
  %v4154 = vsel %vm155, %v4150, 0.0
  %4155 = vadd.xlane.f32.xlu0 %v4154
  %v4156 = vpop.xlane.xlu0 %4155
  %v4157 = vmul.f32 %v4153, %v1841
  %v4158 = vmul.f32 %v4156, %v1841
  %v4159 = vmul.f32 %v4147, %v4147
  %v4160 = vmul.f32 %v4148, %v4148
  %v4161 = vsub.f32 %v4157, %v4159
  %v4162 = vsub.f32 %v4158, %v4160
  %v4163 = vsub.f32 %v4139, %v4147
  %v4164 = vsub.f32 %v4140, %v4148
  %v4165 = vadd.f32 %v4161, 1e-05
  %v4166 = vadd.f32 %v4162, 1e-05
  %v4167 = vrsqrt.pop %v4165
  %v4168 = vrsqrt.pop %v4166
  %v4169 = vmul.f32 %v4163, %v4167
  %v4170 = vmul.f32 %v4164, %v4168
  %v4171 = vlaneseq
  %v4172 = vshrl.u32 %v4171, 7
  %v4173 = vsub.s32 7, %v4172
  %v4174 = vrot.slane %v2186, %v4173
  %v4175 = vmul.f32 %v4169, %v4174
  %v4176 = vmul.f32 %v4170, %v4174
  %v4177 = vlaneseq
  %v4178 = vshrl.u32 %v4177, 7
  %v4179 = vsub.s32 0, %v4178
  %v4180 = vrot.slane %v2187, %v4179
  %v4181 = vadd.f32 %v4175, %v4180
  %v4182 = vadd.f32 %v4176, %v4180
  %v4183 = vld [vmem:[%s1 + $0x11] sm:$0x1]
  %v4184 = vld [vmem:[%s1 + $0x12] sm:$0x1]
  %v4185 = vlaneseq
  %v4186 = vshrl.u32 %v4185, 7
  %v4187 = vsub.s32 0, %v4186
  %v4188 = vrot.slane %v4183, %v4187
  %v4189 = vmul.f32 %v4181, %v4188
  %v4190 = vmul.f32 %v4182, %v4188
  %v4191 = vsel %vm155, %v4189, 0.0
  %4192 = vadd.xlane.f32.xlu0 %v4191
  %v4193 = vpop.xlane.xlu0 %4192
  %v4194 = vsel %vm155, %v4190, 0.0
  %4195 = vadd.xlane.f32.xlu0 %v4194
  %v4196 = vpop.xlane.xlu0 %4195
  %v4197 = vlaneseq
  %v4198 = vshrl.u32 %v4197, 7
  %v4199 = vsub.s32 0, %v4198
  %v4200 = vrot.slane %v4184, %v4199
  %v4201 = vadd.f32 %v4193, %v4200
  %v4202 = vadd.f32 %v4196, %v4200
  %vm4203 = vcmask 7168
  %4204 = vst.msk [vmem:[%s6] sm:$0xff] %vm4203, %v4201
  %4205 = vst.msk [vmem:[%s6 + $0x8] sm:$0xff] %vm4203, %v4202
  // Predicated region
  $region26: #{fwd.1} parent=0 // pred_check
    _
  $region27: #{fwd.1} parent=0 // pred_check_branch
    %4207 = sbr.rel (0) target = $region29
  $region28: #{fwd.1} parent=0 // pred_region
    _
  $region29: #{fwd.1} parent=0 // pred_fallthru
    _
  // Predicated region
  $region30: #{fwd.1} parent=0 // pred_check
    _
  $region31: #{fwd.1} parent=0 // pred_check_branch
    %4209 = sbr.rel (0) target = $region33
  $region32: #{fwd.1} parent=0 // pred_region
    _
  $region33: #{fwd.1} parent=0 // pred_fallthru
    _

</llo_original>
